<compile_context>
chip_gen: v7x
topology: tpu7x:2x2x1
jax: 0.10.0
libtpu: 0.0.40
codegen_flags: <defaults>
</compile_context>

<pallas_src>
import functools

import jax
import jax.numpy as jnp
from jax import lax
from jax.experimental import pallas as pl
from jax.experimental.pallas import tpu as pltpu


def _round_up(x, m):
    return (x + m - 1) // m * m


def _layer_norm_f32(x, gamma, beta, eps):
    # Two XLU reductions (mean, centered variance); rsqrt -> EUP.  All f32.
    mean = jnp.mean(x, axis=-1, keepdims=True)
    xc = x - mean
    var = jnp.mean(xc * xc, axis=-1, keepdims=True)
    inv = lax.rsqrt(var + eps)
    return xc * inv * gamma + beta


def _word_emb_ln_kernel(ids_ref, wte_hbm, g_ref, b_ref, out_ref,
                        gbuf, sem, *, tm, eps):
    """Double-buffered HBM row gather + LayerNorm for one tile of tm tokens.

    gbuf holds two (tm, D) slots stacked along the row axis (2*tm, D).
    Requires sequential grid execution -> dimension_semantics=("arbitrary",).
    """
    i = pl.program_id(0)
    n = pl.num_programs(0)
    cur = i % 2

    def issue(tile_idx, slot):
        base = tile_idx * tm
        dst0 = slot * tm

        def issue_one(t):
            row = ids_ref[base + t]
            pltpu.make_async_copy(
                wte_hbm.at[pl.ds(row, 1), :],
                gbuf.at[pl.ds(dst0 + t, 1), :],
                sem.at[slot]).start()

        if tm <= 128:
            # Full unroll: descriptor issue stays pipelined, code size is fine.
            for t in range(tm):
                issue_one(t)
        else:
            # Partial unroll bounds code size while keeping the scalar /
            # vector-misc (DMA descriptor) slots busy.
            def body(t, carry):
                issue_one(t)
                return carry
            lax.fori_loop(0, tm, body, 0, unroll=8)

    # Pipeline prime: tile 0 -> slot 0.
    @pl.when(i == 0)
    def _():
        issue(0, 0)

    # Prefetch next tile into the other slot.  NOTE: its SMEM id reads happen
    # BEFORE the .wait() below (wait breaks SMEM sst->sld forwarding).
    @pl.when(i + 1 < n)
    def _():
        issue(i + 1, (i + 1) % 2)

    # Single aggregate drain: every row copy signaled sem[cur] with one row's
    # bytes, so one (tm, D)-sized wait absorbs all tm of them.
    off = pl.multiple_of(cur * tm, tm)
    pltpu.make_async_copy(wte_hbm.at[pl.ds(0, tm), :],
                          gbuf.at[pl.ds(off, tm), :],
                          sem.at[cur]).wait()

    x = gbuf[pl.ds(off, tm), :].astype(jnp.float32)          # (tm, D) f32
    y = _layer_norm_f32(x, g_ref[...], b_ref[...], eps)
    out_ref[...] = y.astype(out_ref.dtype)


def _pos_emb_ln_kernel(wpe_ref, g_ref, b_ref, out_ref, *, eps):
    x = wpe_ref[...].astype(jnp.float32)
    out_ref[...] = _layer_norm_f32(x, g_ref[...], b_ref[...], eps).astype(
        out_ref.dtype)


def gpt2_embedding(ids, wte, wpe, gamma1, beta1, gamma2, beta2,
                   *, eps=1e-5, tm_max=256, broadcast_pos=False):
    """Returns (LN1(wte[ids]) [B,S,D], LN2(wpe[:S]) [S,D]).

    The positional output is identical for every batch row; pass
    broadcast_pos=True to materialize the PyTorch-shaped (B, S, D) copy.
    Dropout is eval-mode identity.
    """
    B, S = ids.shape
    V, D = wte.shape
    N = B * S

    # token-tile size: multiple of 8 sublanes, capped at tm_max
    tm = min(tm_max, _round_up(N, 8))
    # aggregate-wait descriptor reads wte_hbm[0:tm, :], so tm must fit vocab
    assert tm <= V, "token tile larger than vocab; lower tm_max"
    n_pad = _round_up(N, tm)
    num_tiles = n_pad // tm

    # flatten + clamp (guards the row DMA against OOB ids) + pad with row 0
    ids_flat = jnp.clip(ids.reshape(-1), 0, V - 1).astype(jnp.int32)
    if n_pad != N:
        ids_flat = jnp.concatenate(
            [ids_flat, jnp.zeros((n_pad - N,), jnp.int32)])

    # gamma/beta are tiny (D elems) -> host-side f32 cast is negligible
    g1 = gamma1.reshape(1, D).astype(jnp.float32)
    b1 = beta1.reshape(1, D).astype(jnp.float32)
    g2 = gamma2.reshape(1, D).astype(jnp.float32)
    b2 = beta2.reshape(1, D).astype(jnp.float32)

    # ---- word embeddings: double-buffered DMA row gather + LayerNorm1 ----
    word_kernel = functools.partial(_word_emb_ln_kernel, tm=tm, eps=eps)
    word_padded = pl.pallas_call(
        word_kernel,
        out_shape=jax.ShapeDtypeStruct((n_pad, D), wte.dtype),
        grid_spec=pltpu.PrefetchScalarGridSpec(
            num_scalar_prefetch=1,                   # ids -> SMEM
            grid=(num_tiles,),
            in_specs=[
                pl.BlockSpec(memory_space=pl.ANY),            # wte stays in HBM
                pl.BlockSpec((1, D), lambda i, ids: (0, 0)),  # gamma1
                pl.BlockSpec((1, D), lambda i, ids: (0, 0)),  # beta1
            ],
            out_specs=pl.BlockSpec((tm, D), lambda i, ids: (i, 0)),
            scratch_shapes=[pltpu.VMEM((2 * tm, D), wte.dtype),   # 2 slots
                            pltpu.SemaphoreType.DMA((2,))],
        ),
        compiler_params=pltpu.CompilerParams(
            # "arbitrary": the cross-iteration DMA double-buffer needs
            # sequential grid execution on one core.
            # TODO(synk): v7x 2-TC split would need a per-core pipeline prime.
            dimension_semantics=("arbitrary",),
            vmem_limit_bytes=32 * 1024 * 1024),
    )(ids_flat, wte, g1, b1)

    word_out = word_padded[:N].reshape(B, S, D)

    # ---- positional embeddings: LN2(wpe[:S]) once, no materialized bcast ----
    pos_kernel = functools.partial(_pos_emb_ln_kernel, eps=eps)
    vmem = pl.BlockSpec(memory_space=pltpu.MemorySpace.VMEM)
    pos_out = pl.pallas_call(
        pos_kernel,
        out_shape=jax.ShapeDtypeStruct((S, D), wpe.dtype),
        in_specs=[vmem, vmem, vmem],
        out_specs=vmem,
        compiler_params=pltpu.CompilerParams(
            vmem_limit_bytes=32 * 1024 * 1024),
    )(wpe[:S], g2, b2)

    if broadcast_pos:
        pos_out = jnp.broadcast_to(pos_out[None, :, :], (B, S, D))
    return word_out, pos_out


def _reference(ids, wte, wpe, g1, b1, g2, b2, eps=1e-5):
    B, S = ids.shape

    def ln(x, g, b):
        m = x.mean(-1, keepdims=True)
        v = ((x - m) ** 2).mean(-1, keepdims=True)
        return (x - m) / jnp.sqrt(v + eps) * g + b

    w = ln(wte[ids], g1, b1)
    p = ln(wpe[jnp.arange(S)], g2, b2)
    p = jnp.broadcast_to(p[None], (B, S, p.shape[-1]))
    return w, p


if __name__ == "__main__":
    # small synthetic config: vocab=64, max_seq=16, dim_model=32, batch=2, seq=8
    B, S, V, MAX_SEQ, D = 2, 8, 64, 16, 32
    EPS = 1e-5

    key = jax.random.PRNGKey(0)
    k_ids, k_wte, k_wpe = jax.random.split(key, 3)

    ids = jax.random.randint(k_ids, (B, S), 0, V, dtype=jnp.int32)
    # nn.Embedding default init ~ N(0, 1); LayerNorm: gamma=1, beta=0
    wte = jax.random.normal(k_wte, (V, D), dtype=jnp.float32)
    wpe = jax.random.normal(k_wpe, (MAX_SEQ, D), dtype=jnp.float32)
    gamma1 = jnp.ones((D,), jnp.float32)
    beta1 = jnp.zeros((D,), jnp.float32)
    gamma2 = jnp.ones((D,), jnp.float32)
    beta2 = jnp.zeros((D,), jnp.float32)

    ref_w, ref_p = _reference(ids, wte, wpe, gamma1, beta1, gamma2, beta2, EPS)

    # default tile size (single tile -> prime-only path)
    word_out, pos_out = gpt2_embedding(ids, wte, wpe, gamma1, beta1,
                                       gamma2, beta2, eps=EPS)
    jax.block_until_ready((word_out, pos_out))
    assert word_out.shape == (B, S, D)
    assert pos_out.shape == (S, D)
    assert jnp.allclose(word_out, ref_w, atol=1e-4, rtol=1e-4)
    pos_b = jnp.broadcast_to(pos_out[None, :, :], (B, S, D))
    assert jnp.allclose(pos_b, ref_p, atol=1e-4, rtol=1e-4)

    # small tile size (2 tiles -> exercises the cross-step double buffer)
    word_out2, pos_out2 = gpt2_embedding(ids, wte, wpe, gamma1, beta1,
                                         gamma2, beta2, eps=EPS, tm_max=8,
                                         broadcast_pos=True)
    jax.block_until_ready((word_out2, pos_out2))
    assert jnp.allclose(word_out2, ref_w, atol=1e-4, rtol=1e-4)
    assert jnp.allclose(pos_out2, ref_p, atol=1e-4, rtol=1e-4)

    print("KERNEL_OK")
</pallas_src>

<mosaic_0001>
module attributes {stable_mosaic.version = 11 : i64} {
  func.func @_word_emb_ln_kernel(%arg0: i32, %arg1: memref<16xi32, #tpu.memory_space<smem>>, %arg2: memref<64x32xf32, #tpu.memory_space<any>>, %arg3: memref<1x32xf32, #tpu.memory_space<vmem>>, %arg4: memref<1x32xf32, #tpu.memory_space<vmem>>, %arg5: memref<16x32xf32, #tpu.memory_space<vmem>>, %arg6: memref<32x32xf32, #tpu.memory_space<vmem>>, %arg7: memref<2x!tpu.dma_semaphore, #tpu.memory_space<semaphore_mem>>) attributes {dimension_semantics = [#tpu.dimension_semantics<arbitrary>], iteration_bounds = array<i64: 1>, scalar_prefetch = 1 : i64, scratch_operands = 2 : i64, tpu.core_type = #tpu.core_type<tc>, window_params = [{}, {pipeline_mode = #tpu.pipeline_mode<synchronous>, transform_indices = @transform_1, window_bounds = array<i64: 1, 32>}, {pipeline_mode = #tpu.pipeline_mode<synchronous>, transform_indices = @transform_2, window_bounds = array<i64: 1, 32>}, {transform_indices = @transform_3, window_bounds = array<i64: 16, 32>}]} {
    %c2_i32 = arith.constant 2 : i32
    %c0_i32 = arith.constant 0 : i32
    %0 = arith.cmpi eq, %c2_i32, %c0_i32 : i32
    %c1_i32 = arith.constant 1 : i32
    %1 = arith.select %0, %c1_i32, %c2_i32 : i32
    %2 = arith.remsi %arg0, %1 : i32
    %c0_i32_0 = arith.constant 0 : i32
    %3 = arith.cmpi ne, %2, %c0_i32_0 : i32
    %c0_i32_1 = arith.constant 0 : i32
    %4 = arith.cmpi slt, %2, %c0_i32_1 : i32
    %c0_i32_2 = arith.constant 0 : i32
    %5 = arith.cmpi slt, %1, %c0_i32_2 : i32
    %6 = arith.xori %4, %5 : i1
    %7 = arith.andi %6, %3 : i1
    %8 = arith.addi %2, %1 : i32
    %9 = arith.select %7, %8, %2 : i32
    %c0_i32_3 = arith.constant 0 : i32
    %10 = arith.cmpi eq, %arg0, %c0_i32_3 : i32
    %11 = arith.extui %10 : i1 to i32
    %c0_i32_4 = arith.constant 0 : i32
    %12 = arith.cmpi ne, %11, %c0_i32_4 : i32
    scf.if %12 {
      %c0_21 = arith.constant 0 : index
      %48 = memref.load %arg1[%c0_21] : memref<16xi32, #tpu.memory_space<smem>>
      %c0_i32_22 = arith.constant 0 : i32
      %c0_i32_23 = arith.constant 0 : i32
      %49 = tpu.memref_slice %arg2[%48, %c0_i32_23] : memref<64x32xf32, #tpu.memory_space<any>> -> memref<1x32xf32, #tpu.memory_space<any>>
      %c0_i32_24 = arith.constant 0 : i32
      %c0_i32_25 = arith.constant 0 : i32
      %50 = tpu.memref_slice %arg6[%c0_i32_24, %c0_i32_25] : memref<32x32xf32, #tpu.memory_space<vmem>> -> memref<1x32xf32, #tpu.memory_space<vmem>>
      %51 = tpu.memref_slice %arg7[%c0_i32_22] : memref<2x!tpu.dma_semaphore, #tpu.memory_space<semaphore_mem>> -> memref<1x!tpu.dma_semaphore, #tpu.memory_space<semaphore_mem>>
      %52 = tpu.memref_squeeze %51 : memref<1x!tpu.dma_semaphore, #tpu.memory_space<semaphore_mem>> -> memref<!tpu.dma_semaphore, #tpu.memory_space<semaphore_mem>>
      tpu.enqueue_dma source(%49 : memref<1x32xf32, #tpu.memory_space<any>>) target(%50 : memref<1x32xf32, #tpu.memory_space<vmem>>) target_semaphore(%52 : memref<!tpu.dma_semaphore, #tpu.memory_space<semaphore_mem>>)
      %c1 = arith.constant 1 : index
      %53 = memref.load %arg1[%c1] : memref<16xi32, #tpu.memory_space<smem>>
      %c0_i32_26 = arith.constant 0 : i32
      %c0_i32_27 = arith.constant 0 : i32
      %54 = tpu.memref_slice %arg2[%53, %c0_i32_27] : memref<64x32xf32, #tpu.memory_space<any>> -> memref<1x32xf32, #tpu.memory_space<any>>
      %c1_i32_28 = arith.constant 1 : i32
      %c0_i32_29 = arith.constant 0 : i32
      %55 = tpu.memref_slice %arg6[%c1_i32_28, %c0_i32_29] : memref<32x32xf32, #tpu.memory_space<vmem>> -> memref<1x32xf32, #tpu.memory_space<vmem>>
      %56 = tpu.memref_slice %arg7[%c0_i32_26] : memref<2x!tpu.dma_semaphore, #tpu.memory_space<semaphore_mem>> -> memref<1x!tpu.dma_semaphore, #tpu.memory_space<semaphore_mem>>
      %57 = tpu.memref_squeeze %56 : memref<1x!tpu.dma_semaphore, #tpu.memory_space<semaphore_mem>> -> memref<!tpu.dma_semaphore, #tpu.memory_space<semaphore_mem>>
      tpu.enqueue_dma source(%54 : memref<1x32xf32, #tpu.memory_space<any>>) target(%55 : memref<1x32xf32, #tpu.memory_space<vmem>>) target_semaphore(%57 : memref<!tpu.dma_semaphore, #tpu.memory_space<semaphore_mem>>)
      %c2 = arith.constant 2 : index
      %58 = memref.load %arg1[%c2] : memref<16xi32, #tpu.memory_space<smem>>
      %c0_i32_30 = arith.constant 0 : i32
      %c0_i32_31 = arith.constant 0 : i32
      %59 = tpu.memref_slice %arg2[%58, %c0_i32_31] : memref<64x32xf32, #tpu.memory_space<any>> -> memref<1x32xf32, #tpu.memory_space<any>>
      %c2_i32_32 = arith.constant 2 : i32
      %c0_i32_33 = arith.constant 0 : i32
      %60 = tpu.memref_slice %arg6[%c2_i32_32, %c0_i32_33] : memref<32x32xf32, #tpu.memory_space<vmem>> -> memref<1x32xf32, #tpu.memory_space<vmem>>
      %61 = tpu.memref_slice %arg7[%c0_i32_30] : memref<2x!tpu.dma_semaphore, #tpu.memory_space<semaphore_mem>> -> memref<1x!tpu.dma_semaphore, #tpu.memory_space<semaphore_mem>>
      %62 = tpu.memref_squeeze %61 : memref<1x!tpu.dma_semaphore, #tpu.memory_space<semaphore_mem>> -> memref<!tpu.dma_semaphore, #tpu.memory_space<semaphore_mem>>
      tpu.enqueue_dma source(%59 : memref<1x32xf32, #tpu.memory_space<any>>) target(%60 : memref<1x32xf32, #tpu.memory_space<vmem>>) target_semaphore(%62 : memref<!tpu.dma_semaphore, #tpu.memory_space<semaphore_mem>>)
      %c3 = arith.constant 3 : index
      %63 = memref.load %arg1[%c3] : memref<16xi32, #tpu.memory_space<smem>>
      %c0_i32_34 = arith.constant 0 : i32
      %c0_i32_35 = arith.constant 0 : i32
      %64 = tpu.memref_slice %arg2[%63, %c0_i32_35] : memref<64x32xf32, #tpu.memory_space<any>> -> memref<1x32xf32, #tpu.memory_space<any>>
      %c3_i32 = arith.constant 3 : i32
      %c0_i32_36 = arith.constant 0 : i32
      %65 = tpu.memref_slice %arg6[%c3_i32, %c0_i32_36] : memref<32x32xf32, #tpu.memory_space<vmem>> -> memref<1x32xf32, #tpu.memory_space<vmem>>
      %66 = tpu.memref_slice %arg7[%c0_i32_34] : memref<2x!tpu.dma_semaphore, #tpu.memory_space<semaphore_mem>> -> memref<1x!tpu.dma_semaphore, #tpu.memory_space<semaphore_mem>>
      %67 = tpu.memref_squeeze %66 : memref<1x!tpu.dma_semaphore, #tpu.memory_space<semaphore_mem>> -> memref<!tpu.dma_semaphore, #tpu.memory_space<semaphore_mem>>
      tpu.enqueue_dma source(%64 : memref<1x32xf32, #tpu.memory_space<any>>) target(%65 : memref<1x32xf32, #tpu.memory_space<vmem>>) target_semaphore(%67 : memref<!tpu.dma_semaphore, #tpu.memory_space<semaphore_mem>>)
      %c4 = arith.constant 4 : index
      %68 = memref.load %arg1[%c4] : memref<16xi32, #tpu.memory_space<smem>>
      %c0_i32_37 = arith.constant 0 : i32
      %c0_i32_38 = arith.constant 0 : i32
      %69 = tpu.memref_slice %arg2[%68, %c0_i32_38] : memref<64x32xf32, #tpu.memory_space<any>> -> memref<1x32xf32, #tpu.memory_space<any>>
      %c4_i32 = arith.constant 4 : i32
      %c0_i32_39 = arith.constant 0 : i32
      %70 = tpu.memref_slice %arg6[%c4_i32, %c0_i32_39] : memref<32x32xf32, #tpu.memory_space<vmem>> -> memref<1x32xf32, #tpu.memory_space<vmem>>
      %71 = tpu.memref_slice %arg7[%c0_i32_37] : memref<2x!tpu.dma_semaphore, #tpu.memory_space<semaphore_mem>> -> memref<1x!tpu.dma_semaphore, #tpu.memory_space<semaphore_mem>>
      %72 = tpu.memref_squeeze %71 : memref<1x!tpu.dma_semaphore, #tpu.memory_space<semaphore_mem>> -> memref<!tpu.dma_semaphore, #tpu.memory_space<semaphore_mem>>
      tpu.enqueue_dma source(%69 : memref<1x32xf32, #tpu.memory_space<any>>) target(%70 : memref<1x32xf32, #tpu.memory_space<vmem>>) target_semaphore(%72 : memref<!tpu.dma_semaphore, #tpu.memory_space<semaphore_mem>>)
      %c5 = arith.constant 5 : index
      %73 = memref.load %arg1[%c5] : memref<16xi32, #tpu.memory_space<smem>>
      %c0_i32_40 = arith.constant 0 : i32
      %c0_i32_41 = arith.constant 0 : i32
      %74 = tpu.memref_slice %arg2[%73, %c0_i32_41] : memref<64x32xf32, #tpu.memory_space<any>> -> memref<1x32xf32, #tpu.memory_space<any>>
      %c5_i32 = arith.constant 5 : i32
      %c0_i32_42 = arith.constant 0 : i32
      %75 = tpu.memref_slice %arg6[%c5_i32, %c0_i32_42] : memref<32x32xf32, #tpu.memory_space<vmem>> -> memref<1x32xf32, #tpu.memory_space<vmem>>
      %76 = tpu.memref_slice %arg7[%c0_i32_40] : memref<2x!tpu.dma_semaphore, #tpu.memory_space<semaphore_mem>> -> memref<1x!tpu.dma_semaphore, #tpu.memory_space<semaphore_mem>>
      %77 = tpu.memref_squeeze %76 : memref<1x!tpu.dma_semaphore, #tpu.memory_space<semaphore_mem>> -> memref<!tpu.dma_semaphore, #tpu.memory_space<semaphore_mem>>
      tpu.enqueue_dma source(%74 : memref<1x32xf32, #tpu.memory_space<any>>) target(%75 : memref<1x32xf32, #tpu.memory_space<vmem>>) target_semaphore(%77 : memref<!tpu.dma_semaphore, #tpu.memory_space<semaphore_mem>>)
      %c6 = arith.constant 6 : index
      %78 = memref.load %arg1[%c6] : memref<16xi32, #tpu.memory_space<smem>>
      %c0_i32_43 = arith.constant 0 : i32
      %c0_i32_44 = arith.constant 0 : i32
      %79 = tpu.memref_slice %arg2[%78, %c0_i32_44] : memref<64x32xf32, #tpu.memory_space<any>> -> memref<1x32xf32, #tpu.memory_space<any>>
      %c6_i32 = arith.constant 6 : i32
      %c0_i32_45 = arith.constant 0 : i32
      %80 = tpu.memref_slice %arg6[%c6_i32, %c0_i32_45] : memref<32x32xf32, #tpu.memory_space<vmem>> -> memref<1x32xf32, #tpu.memory_space<vmem>>
      %81 = tpu.memref_slice %arg7[%c0_i32_43] : memref<2x!tpu.dma_semaphore, #tpu.memory_space<semaphore_mem>> -> memref<1x!tpu.dma_semaphore, #tpu.memory_space<semaphore_mem>>
      %82 = tpu.memref_squeeze %81 : memref<1x!tpu.dma_semaphore, #tpu.memory_space<semaphore_mem>> -> memref<!tpu.dma_semaphore, #tpu.memory_space<semaphore_mem>>
      tpu.enqueue_dma source(%79 : memref<1x32xf32, #tpu.memory_space<any>>) target(%80 : memref<1x32xf32, #tpu.memory_space<vmem>>) target_semaphore(%82 : memref<!tpu.dma_semaphore, #tpu.memory_space<semaphore_mem>>)
      %c7 = arith.constant 7 : index
      %83 = memref.load %arg1[%c7] : memref<16xi32, #tpu.memory_space<smem>>
      %c0_i32_46 = arith.constant 0 : i32
      %c0_i32_47 = arith.constant 0 : i32
      %84 = tpu.memref_slice %arg2[%83, %c0_i32_47] : memref<64x32xf32, #tpu.memory_space<any>> -> memref<1x32xf32, #tpu.memory_space<any>>
      %c7_i32 = arith.constant 7 : i32
      %c0_i32_48 = arith.constant 0 : i32
      %85 = tpu.memref_slice %arg6[%c7_i32, %c0_i32_48] : memref<32x32xf32, #tpu.memory_space<vmem>> -> memref<1x32xf32, #tpu.memory_space<vmem>>
      %86 = tpu.memref_slice %arg7[%c0_i32_46] : memref<2x!tpu.dma_semaphore, #tpu.memory_space<semaphore_mem>> -> memref<1x!tpu.dma_semaphore, #tpu.memory_space<semaphore_mem>>
      %87 = tpu.memref_squeeze %86 : memref<1x!tpu.dma_semaphore, #tpu.memory_space<semaphore_mem>> -> memref<!tpu.dma_semaphore, #tpu.memory_space<semaphore_mem>>
      tpu.enqueue_dma source(%84 : memref<1x32xf32, #tpu.memory_space<any>>) target(%85 : memref<1x32xf32, #tpu.memory_space<vmem>>) target_semaphore(%87 : memref<!tpu.dma_semaphore, #tpu.memory_space<semaphore_mem>>)
      %c8 = arith.constant 8 : index
      %88 = memref.load %arg1[%c8] : memref<16xi32, #tpu.memory_space<smem>>
      %c0_i32_49 = arith.constant 0 : i32
      %c0_i32_50 = arith.constant 0 : i32
      %89 = tpu.memref_slice %arg2[%88, %c0_i32_50] : memref<64x32xf32, #tpu.memory_space<any>> -> memref<1x32xf32, #tpu.memory_space<any>>
      %c8_i32 = arith.constant 8 : i32
      %c0_i32_51 = arith.constant 0 : i32
      %90 = tpu.memref_slice %arg6[%c8_i32, %c0_i32_51] : memref<32x32xf32, #tpu.memory_space<vmem>> -> memref<1x32xf32, #tpu.memory_space<vmem>>
      %91 = tpu.memref_slice %arg7[%c0_i32_49] : memref<2x!tpu.dma_semaphore, #tpu.memory_space<semaphore_mem>> -> memref<1x!tpu.dma_semaphore, #tpu.memory_space<semaphore_mem>>
      %92 = tpu.memref_squeeze %91 : memref<1x!tpu.dma_semaphore, #tpu.memory_space<semaphore_mem>> -> memref<!tpu.dma_semaphore, #tpu.memory_space<semaphore_mem>>
      tpu.enqueue_dma source(%89 : memref<1x32xf32, #tpu.memory_space<any>>) target(%90 : memref<1x32xf32, #tpu.memory_space<vmem>>) target_semaphore(%92 : memref<!tpu.dma_semaphore, #tpu.memory_space<semaphore_mem>>)
      %c9 = arith.constant 9 : index
      %93 = memref.load %arg1[%c9] : memref<16xi32, #tpu.memory_space<smem>>
      %c0_i32_52 = arith.constant 0 : i32
      %c0_i32_53 = arith.constant 0 : i32
      %94 = tpu.memref_slice %arg2[%93, %c0_i32_53] : memref<64x32xf32, #tpu.memory_space<any>> -> memref<1x32xf32, #tpu.memory_space<any>>
      %c9_i32 = arith.constant 9 : i32
      %c0_i32_54 = arith.constant 0 : i32
      %95 = tpu.memref_slice %arg6[%c9_i32, %c0_i32_54] : memref<32x32xf32, #tpu.memory_space<vmem>> -> memref<1x32xf32, #tpu.memory_space<vmem>>
      %96 = tpu.memref_slice %arg7[%c0_i32_52] : memref<2x!tpu.dma_semaphore, #tpu.memory_space<semaphore_mem>> -> memref<1x!tpu.dma_semaphore, #tpu.memory_space<semaphore_mem>>
      %97 = tpu.memref_squeeze %96 : memref<1x!tpu.dma_semaphore, #tpu.memory_space<semaphore_mem>> -> memref<!tpu.dma_semaphore, #tpu.memory_space<semaphore_mem>>
      tpu.enqueue_dma source(%94 : memref<1x32xf32, #tpu.memory_space<any>>) target(%95 : memref<1x32xf32, #tpu.memory_space<vmem>>) target_semaphore(%97 : memref<!tpu.dma_semaphore, #tpu.memory_space<semaphore_mem>>)
      %c10 = arith.constant 10 : index
      %98 = memref.load %arg1[%c10] : memref<16xi32, #tpu.memory_space<smem>>
      %c0_i32_55 = arith.constant 0 : i32
      %c0_i32_56 = arith.constant 0 : i32
      %99 = tpu.memref_slice %arg2[%98, %c0_i32_56] : memref<64x32xf32, #tpu.memory_space<any>> -> memref<1x32xf32, #tpu.memory_space<any>>
      %c10_i32 = arith.constant 10 : i32
      %c0_i32_57 = arith.constant 0 : i32
      %100 = tpu.memref_slice %arg6[%c10_i32, %c0_i32_57] : memref<32x32xf32, #tpu.memory_space<vmem>> -> memref<1x32xf32, #tpu.memory_space<vmem>>
      %101 = tpu.memref_slice %arg7[%c0_i32_55] : memref<2x!tpu.dma_semaphore, #tpu.memory_space<semaphore_mem>> -> memref<1x!tpu.dma_semaphore, #tpu.memory_space<semaphore_mem>>
      %102 = tpu.memref_squeeze %101 : memref<1x!tpu.dma_semaphore, #tpu.memory_space<semaphore_mem>> -> memref<!tpu.dma_semaphore, #tpu.memory_space<semaphore_mem>>
      tpu.enqueue_dma source(%99 : memref<1x32xf32, #tpu.memory_space<any>>) target(%100 : memref<1x32xf32, #tpu.memory_space<vmem>>) target_semaphore(%102 : memref<!tpu.dma_semaphore, #tpu.memory_space<semaphore_mem>>)
      %c11 = arith.constant 11 : index
      %103 = memref.load %arg1[%c11] : memref<16xi32, #tpu.memory_space<smem>>
      %c0_i32_58 = arith.constant 0 : i32
      %c0_i32_59 = arith.constant 0 : i32
      %104 = tpu.memref_slice %arg2[%103, %c0_i32_59] : memref<64x32xf32, #tpu.memory_space<any>> -> memref<1x32xf32, #tpu.memory_space<any>>
      %c11_i32 = arith.constant 11 : i32
      %c0_i32_60 = arith.constant 0 : i32
      %105 = tpu.memref_slice %arg6[%c11_i32, %c0_i32_60] : memref<32x32xf32, #tpu.memory_space<vmem>> -> memref<1x32xf32, #tpu.memory_space<vmem>>
      %106 = tpu.memref_slice %arg7[%c0_i32_58] : memref<2x!tpu.dma_semaphore, #tpu.memory_space<semaphore_mem>> -> memref<1x!tpu.dma_semaphore, #tpu.memory_space<semaphore_mem>>
      %107 = tpu.memref_squeeze %106 : memref<1x!tpu.dma_semaphore, #tpu.memory_space<semaphore_mem>> -> memref<!tpu.dma_semaphore, #tpu.memory_space<semaphore_mem>>
      tpu.enqueue_dma source(%104 : memref<1x32xf32, #tpu.memory_space<any>>) target(%105 : memref<1x32xf32, #tpu.memory_space<vmem>>) target_semaphore(%107 : memref<!tpu.dma_semaphore, #tpu.memory_space<semaphore_mem>>)
      %c12 = arith.constant 12 : index
      %108 = memref.load %arg1[%c12] : memref<16xi32, #tpu.memory_space<smem>>
      %c0_i32_61 = arith.constant 0 : i32
      %c0_i32_62 = arith.constant 0 : i32
      %109 = tpu.memref_slice %arg2[%108, %c0_i32_62] : memref<64x32xf32, #tpu.memory_space<any>> -> memref<1x32xf32, #tpu.memory_space<any>>
      %c12_i32 = arith.constant 12 : i32
      %c0_i32_63 = arith.constant 0 : i32
      %110 = tpu.memref_slice %arg6[%c12_i32, %c0_i32_63] : memref<32x32xf32, #tpu.memory_space<vmem>> -> memref<1x32xf32, #tpu.memory_space<vmem>>
      %111 = tpu.memref_slice %arg7[%c0_i32_61] : memref<2x!tpu.dma_semaphore, #tpu.memory_space<semaphore_mem>> -> memref<1x!tpu.dma_semaphore, #tpu.memory_space<semaphore_mem>>
      %112 = tpu.memref_squeeze %111 : memref<1x!tpu.dma_semaphore, #tpu.memory_space<semaphore_mem>> -> memref<!tpu.dma_semaphore, #tpu.memory_space<semaphore_mem>>
      tpu.enqueue_dma source(%109 : memref<1x32xf32, #tpu.memory_space<any>>) target(%110 : memref<1x32xf32, #tpu.memory_space<vmem>>) target_semaphore(%112 : memref<!tpu.dma_semaphore, #tpu.memory_space<semaphore_mem>>)
      %c13 = arith.constant 13 : index
      %113 = memref.load %arg1[%c13] : memref<16xi32, #tpu.memory_space<smem>>
      %c0_i32_64 = arith.constant 0 : i32
      %c0_i32_65 = arith.constant 0 : i32
      %114 = tpu.memref_slice %arg2[%113, %c0_i32_65] : memref<64x32xf32, #tpu.memory_space<any>> -> memref<1x32xf32, #tpu.memory_space<any>>
      %c13_i32 = arith.constant 13 : i32
      %c0_i32_66 = arith.constant 0 : i32
      %115 = tpu.memref_slice %arg6[%c13_i32, %c0_i32_66] : memref<32x32xf32, #tpu.memory_space<vmem>> -> memref<1x32xf32, #tpu.memory_space<vmem>>
      %116 = tpu.memref_slice %arg7[%c0_i32_64] : memref<2x!tpu.dma_semaphore, #tpu.memory_space<semaphore_mem>> -> memref<1x!tpu.dma_semaphore, #tpu.memory_space<semaphore_mem>>
      %117 = tpu.memref_squeeze %116 : memref<1x!tpu.dma_semaphore, #tpu.memory_space<semaphore_mem>> -> memref<!tpu.dma_semaphore, #tpu.memory_space<semaphore_mem>>
      tpu.enqueue_dma source(%114 : memref<1x32xf32, #tpu.memory_space<any>>) target(%115 : memref<1x32xf32, #tpu.memory_space<vmem>>) target_semaphore(%117 : memref<!tpu.dma_semaphore, #tpu.memory_space<semaphore_mem>>)
      %c14 = arith.constant 14 : index
      %118 = memref.load %arg1[%c14] : memref<16xi32, #tpu.memory_space<smem>>
      %c0_i32_67 = arith.constant 0 : i32
      %c0_i32_68 = arith.constant 0 : i32
      %119 = tpu.memref_slice %arg2[%118, %c0_i32_68] : memref<64x32xf32, #tpu.memory_space<any>> -> memref<1x32xf32, #tpu.memory_space<any>>
      %c14_i32 = arith.constant 14 : i32
      %c0_i32_69 = arith.constant 0 : i32
      %120 = tpu.memref_slice %arg6[%c14_i32, %c0_i32_69] : memref<32x32xf32, #tpu.memory_space<vmem>> -> memref<1x32xf32, #tpu.memory_space<vmem>>
      %121 = tpu.memref_slice %arg7[%c0_i32_67] : memref<2x!tpu.dma_semaphore, #tpu.memory_space<semaphore_mem>> -> memref<1x!tpu.dma_semaphore, #tpu.memory_space<semaphore_mem>>
      %122 = tpu.memref_squeeze %121 : memref<1x!tpu.dma_semaphore, #tpu.memory_space<semaphore_mem>> -> memref<!tpu.dma_semaphore, #tpu.memory_space<semaphore_mem>>
      tpu.enqueue_dma source(%119 : memref<1x32xf32, #tpu.memory_space<any>>) target(%120 : memref<1x32xf32, #tpu.memory_space<vmem>>) target_semaphore(%122 : memref<!tpu.dma_semaphore, #tpu.memory_space<semaphore_mem>>)
      %c15 = arith.constant 15 : index
      %123 = memref.load %arg1[%c15] : memref<16xi32, #tpu.memory_space<smem>>
      %c0_i32_70 = arith.constant 0 : i32
      %c0_i32_71 = arith.constant 0 : i32
      %124 = tpu.memref_slice %arg2[%123, %c0_i32_71] : memref<64x32xf32, #tpu.memory_space<any>> -> memref<1x32xf32, #tpu.memory_space<any>>
      %c15_i32 = arith.constant 15 : i32
      %c0_i32_72 = arith.constant 0 : i32
      %125 = tpu.memref_slice %arg6[%c15_i32, %c0_i32_72] : memref<32x32xf32, #tpu.memory_space<vmem>> -> memref<1x32xf32, #tpu.memory_space<vmem>>
      %126 = tpu.memref_slice %arg7[%c0_i32_70] : memref<2x!tpu.dma_semaphore, #tpu.memory_space<semaphore_mem>> -> memref<1x!tpu.dma_semaphore, #tpu.memory_space<semaphore_mem>>
      %127 = tpu.memref_squeeze %126 : memref<1x!tpu.dma_semaphore, #tpu.memory_space<semaphore_mem>> -> memref<!tpu.dma_semaphore, #tpu.memory_space<semaphore_mem>>
      tpu.enqueue_dma source(%124 : memref<1x32xf32, #tpu.memory_space<any>>) target(%125 : memref<1x32xf32, #tpu.memory_space<vmem>>) target_semaphore(%127 : memref<!tpu.dma_semaphore, #tpu.memory_space<semaphore_mem>>)
    } else {
    }
    %c1_i32_5 = arith.constant 1 : i32
    %13 = arith.addi %arg0, %c1_i32_5 : i32
    %c1_i32_6 = arith.constant 1 : i32
    %14 = arith.cmpi slt, %13, %c1_i32_6 : i32
    %15 = arith.extui %14 : i1 to i32
    %c0_i32_7 = arith.constant 0 : i32
    %16 = arith.cmpi ne, %15, %c0_i32_7 : i32
    scf.if %16 {
      %c1_i32_21 = arith.constant 1 : i32
      %48 = arith.addi %arg0, %c1_i32_21 : i32
      %c1_i32_22 = arith.constant 1 : i32
      %49 = arith.addi %arg0, %c1_i32_22 : i32
      %c2_i32_23 = arith.constant 2 : i32
      %c0_i32_24 = arith.constant 0 : i32
      %50 = arith.cmpi eq, %c2_i32_23, %c0_i32_24 : i32
      %c1_i32_25 = arith.constant 1 : i32
      %51 = arith.select %50, %c1_i32_25, %c2_i32_23 : i32
      %52 = arith.remsi %49, %51 : i32
      %c0_i32_26 = arith.constant 0 : i32
      %53 = arith.cmpi ne, %52, %c0_i32_26 : i32
      %c0_i32_27 = arith.constant 0 : i32
      %54 = arith.cmpi slt, %52, %c0_i32_27 : i32
      %c0_i32_28 = arith.constant 0 : i32
      %55 = arith.cmpi slt, %51, %c0_i32_28 : i32
      %56 = arith.xori %54, %55 : i1
      %57 = arith.andi %56, %53 : i1
      %58 = arith.addi %52, %51 : i32
      %59 = arith.select %57, %58, %52 : i32
      %c16_i32_29 = arith.constant 16 : i32
      %60 = arith.muli %48, %c16_i32_29 : i32
      %c16_i32_30 = arith.constant 16 : i32
      %61 = arith.muli %59, %c16_i32_30 : i32
      %c0_i32_31 = arith.constant 0 : i32
      %62 = arith.addi %60, %c0_i32_31 : i32
      %63 = arith.index_cast %62 : i32 to index
      %64 = memref.load %arg1[%63] : memref<16xi32, #tpu.memory_space<smem>>
      %c0_i32_32 = arith.constant 0 : i32
      %65 = arith.addi %61, %c0_i32_32 : i32
      %c0_i32_33 = arith.constant 0 : i32
      %66 = tpu.memref_slice %arg2[%64, %c0_i32_33] : memref<64x32xf32, #tpu.memory_space<any>> -> memref<1x32xf32, #tpu.memory_space<any>>
      %c0_i32_34 = arith.constant 0 : i32
      %67 = tpu.memref_slice %arg6[%65, %c0_i32_34] : memref<32x32xf32, #tpu.memory_space<vmem>> -> memref<1x32xf32, #tpu.memory_space<vmem>>
      %68 = tpu.memref_slice %arg7[%59] : memref<2x!tpu.dma_semaphore, #tpu.memory_space<semaphore_mem>> -> memref<1x!tpu.dma_semaphore, #tpu.memory_space<semaphore_mem>>
      %69 = tpu.memref_squeeze %68 : memref<1x!tpu.dma_semaphore, #tpu.memory_space<semaphore_mem>> -> memref<!tpu.dma_semaphore, #tpu.memory_space<semaphore_mem>>
      tpu.enqueue_dma source(%66 : memref<1x32xf32, #tpu.memory_space<any>>) target(%67 : memref<1x32xf32, #tpu.memory_space<vmem>>) target_semaphore(%69 : memref<!tpu.dma_semaphore, #tpu.memory_space<semaphore_mem>>)
      %c1_i32_35 = arith.constant 1 : i32
      %70 = arith.addi %60, %c1_i32_35 : i32
      %71 = arith.index_cast %70 : i32 to index
      %72 = memref.load %arg1[%71] : memref<16xi32, #tpu.memory_space<smem>>
      %c1_i32_36 = arith.constant 1 : i32
      %73 = arith.addi %61, %c1_i32_36 : i32
      %c0_i32_37 = arith.constant 0 : i32
      %74 = tpu.memref_slice %arg2[%72, %c0_i32_37] : memref<64x32xf32, #tpu.memory_space<any>> -> memref<1x32xf32, #tpu.memory_space<any>>
      %c0_i32_38 = arith.constant 0 : i32
      %75 = tpu.memref_slice %arg6[%73, %c0_i32_38] : memref<32x32xf32, #tpu.memory_space<vmem>> -> memref<1x32xf32, #tpu.memory_space<vmem>>
      %76 = tpu.memref_slice %arg7[%59] : memref<2x!tpu.dma_semaphore, #tpu.memory_space<semaphore_mem>> -> memref<1x!tpu.dma_semaphore, #tpu.memory_space<semaphore_mem>>
      %77 = tpu.memref_squeeze %76 : memref<1x!tpu.dma_semaphore, #tpu.memory_space<semaphore_mem>> -> memref<!tpu.dma_semaphore, #tpu.memory_space<semaphore_mem>>
      tpu.enqueue_dma source(%74 : memref<1x32xf32, #tpu.memory_space<any>>) target(%75 : memref<1x32xf32, #tpu.memory_space<vmem>>) target_semaphore(%77 : memref<!tpu.dma_semaphore, #tpu.memory_space<semaphore_mem>>)
      %c2_i32_39 = arith.constant 2 : i32
      %78 = arith.addi %60, %c2_i32_39 : i32
      %79 = arith.index_cast %78 : i32 to index
      %80 = memref.load %arg1[%79] : memref<16xi32, #tpu.memory_space<smem>>
      %c2_i32_40 = arith.constant 2 : i32
      %81 = arith.addi %61, %c2_i32_40 : i32
      %c0_i32_41 = arith.constant 0 : i32
      %82 = tpu.memref_slice %arg2[%80, %c0_i32_41] : memref<64x32xf32, #tpu.memory_space<any>> -> memref<1x32xf32, #tpu.memory_space<any>>
      %c0_i32_42 = arith.constant 0 : i32
      %83 = tpu.memref_slice %arg6[%81, %c0_i32_42] : memref<32x32xf32, #tpu.memory_space<vmem>> -> memref<1x32xf32, #tpu.memory_space<vmem>>
      %84 = tpu.memref_slice %arg7[%59] : memref<2x!tpu.dma_semaphore, #tpu.memory_space<semaphore_mem>> -> memref<1x!tpu.dma_semaphore, #tpu.memory_space<semaphore_mem>>
      %85 = tpu.memref_squeeze %84 : memref<1x!tpu.dma_semaphore, #tpu.memory_space<semaphore_mem>> -> memref<!tpu.dma_semaphore, #tpu.memory_space<semaphore_mem>>
      tpu.enqueue_dma source(%82 : memref<1x32xf32, #tpu.memory_space<any>>) target(%83 : memref<1x32xf32, #tpu.memory_space<vmem>>) target_semaphore(%85 : memref<!tpu.dma_semaphore, #tpu.memory_space<semaphore_mem>>)
      %c3_i32 = arith.constant 3 : i32
      %86 = arith.addi %60, %c3_i32 : i32
      %87 = arith.index_cast %86 : i32 to index
      %88 = memref.load %arg1[%87] : memref<16xi32, #tpu.memory_space<smem>>
      %c3_i32_43 = arith.constant 3 : i32
      %89 = arith.addi %61, %c3_i32_43 : i32
      %c0_i32_44 = arith.constant 0 : i32
      %90 = tpu.memref_slice %arg2[%88, %c0_i32_44] : memref<64x32xf32, #tpu.memory_space<any>> -> memref<1x32xf32, #tpu.memory_space<any>>
      %c0_i32_45 = arith.constant 0 : i32
      %91 = tpu.memref_slice %arg6[%89, %c0_i32_45] : memref<32x32xf32, #tpu.memory_space<vmem>> -> memref<1x32xf32, #tpu.memory_space<vmem>>
      %92 = tpu.memref_slice %arg7[%59] : memref<2x!tpu.dma_semaphore, #tpu.memory_space<semaphore_mem>> -> memref<1x!tpu.dma_semaphore, #tpu.memory_space<semaphore_mem>>
      %93 = tpu.memref_squeeze %92 : memref<1x!tpu.dma_semaphore, #tpu.memory_space<semaphore_mem>> -> memref<!tpu.dma_semaphore, #tpu.memory_space<semaphore_mem>>
      tpu.enqueue_dma source(%90 : memref<1x32xf32, #tpu.memory_space<any>>) target(%91 : memref<1x32xf32, #tpu.memory_space<vmem>>) target_semaphore(%93 : memref<!tpu.dma_semaphore, #tpu.memory_space<semaphore_mem>>)
      %c4_i32 = arith.constant 4 : i32
      %94 = arith.addi %60, %c4_i32 : i32
      %95 = arith.index_cast %94 : i32 to index
      %96 = memref.load %arg1[%95] : memref<16xi32, #tpu.memory_space<smem>>
      %c4_i32_46 = arith.constant 4 : i32
      %97 = arith.addi %61, %c4_i32_46 : i32
      %c0_i32_47 = arith.constant 0 : i32
      %98 = tpu.memref_slice %arg2[%96, %c0_i32_47] : memref<64x32xf32, #tpu.memory_space<any>> -> memref<1x32xf32, #tpu.memory_space<any>>
      %c0_i32_48 = arith.constant 0 : i32
      %99 = tpu.memref_slice %arg6[%97, %c0_i32_48] : memref<32x32xf32, #tpu.memory_space<vmem>> -> memref<1x32xf32, #tpu.memory_space<vmem>>
      %100 = tpu.memref_slice %arg7[%59] : memref<2x!tpu.dma_semaphore, #tpu.memory_space<semaphore_mem>> -> memref<1x!tpu.dma_semaphore, #tpu.memory_space<semaphore_mem>>
      %101 = tpu.memref_squeeze %100 : memref<1x!tpu.dma_semaphore, #tpu.memory_space<semaphore_mem>> -> memref<!tpu.dma_semaphore, #tpu.memory_space<semaphore_mem>>
      tpu.enqueue_dma source(%98 : memref<1x32xf32, #tpu.memory_space<any>>) target(%99 : memref<1x32xf32, #tpu.memory_space<vmem>>) target_semaphore(%101 : memref<!tpu.dma_semaphore, #tpu.memory_space<semaphore_mem>>)
      %c5_i32 = arith.constant 5 : i32
      %102 = arith.addi %60, %c5_i32 : i32
      %103 = arith.index_cast %102 : i32 to index
      %104 = memref.load %arg1[%103] : memref<16xi32, #tpu.memory_space<smem>>
      %c5_i32_49 = arith.constant 5 : i32
      %105 = arith.addi %61, %c5_i32_49 : i32
      %c0_i32_50 = arith.constant 0 : i32
      %106 = tpu.memref_slice %arg2[%104, %c0_i32_50] : memref<64x32xf32, #tpu.memory_space<any>> -> memref<1x32xf32, #tpu.memory_space<any>>
      %c0_i32_51 = arith.constant 0 : i32
      %107 = tpu.memref_slice %arg6[%105, %c0_i32_51] : memref<32x32xf32, #tpu.memory_space<vmem>> -> memref<1x32xf32, #tpu.memory_space<vmem>>
      %108 = tpu.memref_slice %arg7[%59] : memref<2x!tpu.dma_semaphore, #tpu.memory_space<semaphore_mem>> -> memref<1x!tpu.dma_semaphore, #tpu.memory_space<semaphore_mem>>
      %109 = tpu.memref_squeeze %108 : memref<1x!tpu.dma_semaphore, #tpu.memory_space<semaphore_mem>> -> memref<!tpu.dma_semaphore, #tpu.memory_space<semaphore_mem>>
      tpu.enqueue_dma source(%106 : memref<1x32xf32, #tpu.memory_space<any>>) target(%107 : memref<1x32xf32, #tpu.memory_space<vmem>>) target_semaphore(%109 : memref<!tpu.dma_semaphore, #tpu.memory_space<semaphore_mem>>)
      %c6_i32 = arith.constant 6 : i32
      %110 = arith.addi %60, %c6_i32 : i32
      %111 = arith.index_cast %110 : i32 to index
      %112 = memref.load %arg1[%111] : memref<16xi32, #tpu.memory_space<smem>>
      %c6_i32_52 = arith.constant 6 : i32
      %113 = arith.addi %61, %c6_i32_52 : i32
      %c0_i32_53 = arith.constant 0 : i32
      %114 = tpu.memref_slice %arg2[%112, %c0_i32_53] : memref<64x32xf32, #tpu.memory_space<any>> -> memref<1x32xf32, #tpu.memory_space<any>>
      %c0_i32_54 = arith.constant 0 : i32
      %115 = tpu.memref_slice %arg6[%113, %c0_i32_54] : memref<32x32xf32, #tpu.memory_space<vmem>> -> memref<1x32xf32, #tpu.memory_space<vmem>>
      %116 = tpu.memref_slice %arg7[%59] : memref<2x!tpu.dma_semaphore, #tpu.memory_space<semaphore_mem>> -> memref<1x!tpu.dma_semaphore, #tpu.memory_space<semaphore_mem>>
      %117 = tpu.memref_squeeze %116 : memref<1x!tpu.dma_semaphore, #tpu.memory_space<semaphore_mem>> -> memref<!tpu.dma_semaphore, #tpu.memory_space<semaphore_mem>>
      tpu.enqueue_dma source(%114 : memref<1x32xf32, #tpu.memory_space<any>>) target(%115 : memref<1x32xf32, #tpu.memory_space<vmem>>) target_semaphore(%117 : memref<!tpu.dma_semaphore, #tpu.memory_space<semaphore_mem>>)
      %c7_i32 = arith.constant 7 : i32
      %118 = arith.addi %60, %c7_i32 : i32
      %119 = arith.index_cast %118 : i32 to index
      %120 = memref.load %arg1[%119] : memref<16xi32, #tpu.memory_space<smem>>
      %c7_i32_55 = arith.constant 7 : i32
      %121 = arith.addi %61, %c7_i32_55 : i32
      %c0_i32_56 = arith.constant 0 : i32
      %122 = tpu.memref_slice %arg2[%120, %c0_i32_56] : memref<64x32xf32, #tpu.memory_space<any>> -> memref<1x32xf32, #tpu.memory_space<any>>
      %c0_i32_57 = arith.constant 0 : i32
      %123 = tpu.memref_slice %arg6[%121, %c0_i32_57] : memref<32x32xf32, #tpu.memory_space<vmem>> -> memref<1x32xf32, #tpu.memory_space<vmem>>
      %124 = tpu.memref_slice %arg7[%59] : memref<2x!tpu.dma_semaphore, #tpu.memory_space<semaphore_mem>> -> memref<1x!tpu.dma_semaphore, #tpu.memory_space<semaphore_mem>>
      %125 = tpu.memref_squeeze %124 : memref<1x!tpu.dma_semaphore, #tpu.memory_space<semaphore_mem>> -> memref<!tpu.dma_semaphore, #tpu.memory_space<semaphore_mem>>
      tpu.enqueue_dma source(%122 : memref<1x32xf32, #tpu.memory_space<any>>) target(%123 : memref<1x32xf32, #tpu.memory_space<vmem>>) target_semaphore(%125 : memref<!tpu.dma_semaphore, #tpu.memory_space<semaphore_mem>>)
      %c8_i32 = arith.constant 8 : i32
      %126 = arith.addi %60, %c8_i32 : i32
      %127 = arith.index_cast %126 : i32 to index
      %128 = memref.load %arg1[%127] : memref<16xi32, #tpu.memory_space<smem>>
      %c8_i32_58 = arith.constant 8 : i32
      %129 = arith.addi %61, %c8_i32_58 : i32
      %c0_i32_59 = arith.constant 0 : i32
      %130 = tpu.memref_slice %arg2[%128, %c0_i32_59] : memref<64x32xf32, #tpu.memory_space<any>> -> memref<1x32xf32, #tpu.memory_space<any>>
      %c0_i32_60 = arith.constant 0 : i32
      %131 = tpu.memref_slice %arg6[%129, %c0_i32_60] : memref<32x32xf32, #tpu.memory_space<vmem>> -> memref<1x32xf32, #tpu.memory_space<vmem>>
      %132 = tpu.memref_slice %arg7[%59] : memref<2x!tpu.dma_semaphore, #tpu.memory_space<semaphore_mem>> -> memref<1x!tpu.dma_semaphore, #tpu.memory_space<semaphore_mem>>
      %133 = tpu.memref_squeeze %132 : memref<1x!tpu.dma_semaphore, #tpu.memory_space<semaphore_mem>> -> memref<!tpu.dma_semaphore, #tpu.memory_space<semaphore_mem>>
      tpu.enqueue_dma source(%130 : memref<1x32xf32, #tpu.memory_space<any>>) target(%131 : memref<1x32xf32, #tpu.memory_space<vmem>>) target_semaphore(%133 : memref<!tpu.dma_semaphore, #tpu.memory_space<semaphore_mem>>)
      %c9_i32 = arith.constant 9 : i32
      %134 = arith.addi %60, %c9_i32 : i32
      %135 = arith.index_cast %134 : i32 to index
      %136 = memref.load %arg1[%135] : memref<16xi32, #tpu.memory_space<smem>>
      %c9_i32_61 = arith.constant 9 : i32
      %137 = arith.addi %61, %c9_i32_61 : i32
      %c0_i32_62 = arith.constant 0 : i32
      %138 = tpu.memref_slice %arg2[%136, %c0_i32_62] : memref<64x32xf32, #tpu.memory_space<any>> -> memref<1x32xf32, #tpu.memory_space<any>>
      %c0_i32_63 = arith.constant 0 : i32
      %139 = tpu.memref_slice %arg6[%137, %c0_i32_63] : memref<32x32xf32, #tpu.memory_space<vmem>> -> memref<1x32xf32, #tpu.memory_space<vmem>>
      %140 = tpu.memref_slice %arg7[%59] : memref<2x!tpu.dma_semaphore, #tpu.memory_space<semaphore_mem>> -> memref<1x!tpu.dma_semaphore, #tpu.memory_space<semaphore_mem>>
      %141 = tpu.memref_squeeze %140 : memref<1x!tpu.dma_semaphore, #tpu.memory_space<semaphore_mem>> -> memref<!tpu.dma_semaphore, #tpu.memory_space<semaphore_mem>>
      tpu.enqueue_dma source(%138 : memref<1x32xf32, #tpu.memory_space<any>>) target(%139 : memref<1x32xf32, #tpu.memory_space<vmem>>) target_semaphore(%141 : memref<!tpu.dma_semaphore, #tpu.memory_space<semaphore_mem>>)
      %c10_i32 = arith.constant 10 : i32
      %142 = arith.addi %60, %c10_i32 : i32
      %143 = arith.index_cast %142 : i32 to index
      %144 = memref.load %arg1[%143] : memref<16xi32, #tpu.memory_space<smem>>
      %c10_i32_64 = arith.constant 10 : i32
      %145 = arith.addi %61, %c10_i32_64 : i32
      %c0_i32_65 = arith.constant 0 : i32
      %146 = tpu.memref_slice %arg2[%144, %c0_i32_65] : memref<64x32xf32, #tpu.memory_space<any>> -> memref<1x32xf32, #tpu.memory_space<any>>
      %c0_i32_66 = arith.constant 0 : i32
      %147 = tpu.memref_slice %arg6[%145, %c0_i32_66] : memref<32x32xf32, #tpu.memory_space<vmem>> -> memref<1x32xf32, #tpu.memory_space<vmem>>
      %148 = tpu.memref_slice %arg7[%59] : memref<2x!tpu.dma_semaphore, #tpu.memory_space<semaphore_mem>> -> memref<1x!tpu.dma_semaphore, #tpu.memory_space<semaphore_mem>>
      %149 = tpu.memref_squeeze %148 : memref<1x!tpu.dma_semaphore, #tpu.memory_space<semaphore_mem>> -> memref<!tpu.dma_semaphore, #tpu.memory_space<semaphore_mem>>
      tpu.enqueue_dma source(%146 : memref<1x32xf32, #tpu.memory_space<any>>) target(%147 : memref<1x32xf32, #tpu.memory_space<vmem>>) target_semaphore(%149 : memref<!tpu.dma_semaphore, #tpu.memory_space<semaphore_mem>>)
      %c11_i32 = arith.constant 11 : i32
      %150 = arith.addi %60, %c11_i32 : i32
      %151 = arith.index_cast %150 : i32 to index
      %152 = memref.load %arg1[%151] : memref<16xi32, #tpu.memory_space<smem>>
      %c11_i32_67 = arith.constant 11 : i32
      %153 = arith.addi %61, %c11_i32_67 : i32
      %c0_i32_68 = arith.constant 0 : i32
      %154 = tpu.memref_slice %arg2[%152, %c0_i32_68] : memref<64x32xf32, #tpu.memory_space<any>> -> memref<1x32xf32, #tpu.memory_space<any>>
      %c0_i32_69 = arith.constant 0 : i32
      %155 = tpu.memref_slice %arg6[%153, %c0_i32_69] : memref<32x32xf32, #tpu.memory_space<vmem>> -> memref<1x32xf32, #tpu.memory_space<vmem>>
      %156 = tpu.memref_slice %arg7[%59] : memref<2x!tpu.dma_semaphore, #tpu.memory_space<semaphore_mem>> -> memref<1x!tpu.dma_semaphore, #tpu.memory_space<semaphore_mem>>
      %157 = tpu.memref_squeeze %156 : memref<1x!tpu.dma_semaphore, #tpu.memory_space<semaphore_mem>> -> memref<!tpu.dma_semaphore, #tpu.memory_space<semaphore_mem>>
      tpu.enqueue_dma source(%154 : memref<1x32xf32, #tpu.memory_space<any>>) target(%155 : memref<1x32xf32, #tpu.memory_space<vmem>>) target_semaphore(%157 : memref<!tpu.dma_semaphore, #tpu.memory_space<semaphore_mem>>)
      %c12_i32 = arith.constant 12 : i32
      %158 = arith.addi %60, %c12_i32 : i32
      %159 = arith.index_cast %158 : i32 to index
      %160 = memref.load %arg1[%159] : memref<16xi32, #tpu.memory_space<smem>>
      %c12_i32_70 = arith.constant 12 : i32
      %161 = arith.addi %61, %c12_i32_70 : i32
      %c0_i32_71 = arith.constant 0 : i32
      %162 = tpu.memref_slice %arg2[%160, %c0_i32_71] : memref<64x32xf32, #tpu.memory_space<any>> -> memref<1x32xf32, #tpu.memory_space<any>>
      %c0_i32_72 = arith.constant 0 : i32
      %163 = tpu.memref_slice %arg6[%161, %c0_i32_72] : memref<32x32xf32, #tpu.memory_space<vmem>> -> memref<1x32xf32, #tpu.memory_space<vmem>>
      %164 = tpu.memref_slice %arg7[%59] : memref<2x!tpu.dma_semaphore, #tpu.memory_space<semaphore_mem>> -> memref<1x!tpu.dma_semaphore, #tpu.memory_space<semaphore_mem>>
      %165 = tpu.memref_squeeze %164 : memref<1x!tpu.dma_semaphore, #tpu.memory_space<semaphore_mem>> -> memref<!tpu.dma_semaphore, #tpu.memory_space<semaphore_mem>>
      tpu.enqueue_dma source(%162 : memref<1x32xf32, #tpu.memory_space<any>>) target(%163 : memref<1x32xf32, #tpu.memory_space<vmem>>) target_semaphore(%165 : memref<!tpu.dma_semaphore, #tpu.memory_space<semaphore_mem>>)
      %c13_i32 = arith.constant 13 : i32
      %166 = arith.addi %60, %c13_i32 : i32
      %167 = arith.index_cast %166 : i32 to index
      %168 = memref.load %arg1[%167] : memref<16xi32, #tpu.memory_space<smem>>
      %c13_i32_73 = arith.constant 13 : i32
      %169 = arith.addi %61, %c13_i32_73 : i32
      %c0_i32_74 = arith.constant 0 : i32
      %170 = tpu.memref_slice %arg2[%168, %c0_i32_74] : memref<64x32xf32, #tpu.memory_space<any>> -> memref<1x32xf32, #tpu.memory_space<any>>
      %c0_i32_75 = arith.constant 0 : i32
      %171 = tpu.memref_slice %arg6[%169, %c0_i32_75] : memref<32x32xf32, #tpu.memory_space<vmem>> -> memref<1x32xf32, #tpu.memory_space<vmem>>
      %172 = tpu.memref_slice %arg7[%59] : memref<2x!tpu.dma_semaphore, #tpu.memory_space<semaphore_mem>> -> memref<1x!tpu.dma_semaphore, #tpu.memory_space<semaphore_mem>>
      %173 = tpu.memref_squeeze %172 : memref<1x!tpu.dma_semaphore, #tpu.memory_space<semaphore_mem>> -> memref<!tpu.dma_semaphore, #tpu.memory_space<semaphore_mem>>
      tpu.enqueue_dma source(%170 : memref<1x32xf32, #tpu.memory_space<any>>) target(%171 : memref<1x32xf32, #tpu.memory_space<vmem>>) target_semaphore(%173 : memref<!tpu.dma_semaphore, #tpu.memory_space<semaphore_mem>>)
      %c14_i32 = arith.constant 14 : i32
      %174 = arith.addi %60, %c14_i32 : i32
      %175 = arith.index_cast %174 : i32 to index
      %176 = memref.load %arg1[%175] : memref<16xi32, #tpu.memory_space<smem>>
      %c14_i32_76 = arith.constant 14 : i32
      %177 = arith.addi %61, %c14_i32_76 : i32
      %c0_i32_77 = arith.constant 0 : i32
      %178 = tpu.memref_slice %arg2[%176, %c0_i32_77] : memref<64x32xf32, #tpu.memory_space<any>> -> memref<1x32xf32, #tpu.memory_space<any>>
      %c0_i32_78 = arith.constant 0 : i32
      %179 = tpu.memref_slice %arg6[%177, %c0_i32_78] : memref<32x32xf32, #tpu.memory_space<vmem>> -> memref<1x32xf32, #tpu.memory_space<vmem>>
      %180 = tpu.memref_slice %arg7[%59] : memref<2x!tpu.dma_semaphore, #tpu.memory_space<semaphore_mem>> -> memref<1x!tpu.dma_semaphore, #tpu.memory_space<semaphore_mem>>
      %181 = tpu.memref_squeeze %180 : memref<1x!tpu.dma_semaphore, #tpu.memory_space<semaphore_mem>> -> memref<!tpu.dma_semaphore, #tpu.memory_space<semaphore_mem>>
      tpu.enqueue_dma source(%178 : memref<1x32xf32, #tpu.memory_space<any>>) target(%179 : memref<1x32xf32, #tpu.memory_space<vmem>>) target_semaphore(%181 : memref<!tpu.dma_semaphore, #tpu.memory_space<semaphore_mem>>)
      %c15_i32 = arith.constant 15 : i32
      %182 = arith.addi %60, %c15_i32 : i32
      %183 = arith.index_cast %182 : i32 to index
      %184 = memref.load %arg1[%183] : memref<16xi32, #tpu.memory_space<smem>>
      %c15_i32_79 = arith.constant 15 : i32
      %185 = arith.addi %61, %c15_i32_79 : i32
      %c0_i32_80 = arith.constant 0 : i32
      %186 = tpu.memref_slice %arg2[%184, %c0_i32_80] : memref<64x32xf32, #tpu.memory_space<any>> -> memref<1x32xf32, #tpu.memory_space<any>>
      %c0_i32_81 = arith.constant 0 : i32
      %187 = tpu.memref_slice %arg6[%185, %c0_i32_81] : memref<32x32xf32, #tpu.memory_space<vmem>> -> memref<1x32xf32, #tpu.memory_space<vmem>>
      %188 = tpu.memref_slice %arg7[%59] : memref<2x!tpu.dma_semaphore, #tpu.memory_space<semaphore_mem>> -> memref<1x!tpu.dma_semaphore, #tpu.memory_space<semaphore_mem>>
      %189 = tpu.memref_squeeze %188 : memref<1x!tpu.dma_semaphore, #tpu.memory_space<semaphore_mem>> -> memref<!tpu.dma_semaphore, #tpu.memory_space<semaphore_mem>>
      tpu.enqueue_dma source(%186 : memref<1x32xf32, #tpu.memory_space<any>>) target(%187 : memref<1x32xf32, #tpu.memory_space<vmem>>) target_semaphore(%189 : memref<!tpu.dma_semaphore, #tpu.memory_space<semaphore_mem>>)
    } else {
    }
    %c16_i32 = arith.constant 16 : i32
    %17 = arith.muli %9, %c16_i32 : i32
    %18 = tpu.assume_multiple %17, 16 : i32
    %c0_i32_8 = arith.constant 0 : i32
    %c0_i32_9 = arith.constant 0 : i32
    %19 = tpu.memref_slice %arg2[%c0_i32_8, %c0_i32_9] : memref<64x32xf32, #tpu.memory_space<any>> -> memref<16x32xf32, #tpu.memory_space<any>>
    %c0_i32_10 = arith.constant 0 : i32
    %20 = tpu.memref_slice %arg6[%18, %c0_i32_10] : memref<32x32xf32, #tpu.memory_space<vmem>> -> memref<16x32xf32, #tpu.memory_space<vmem>>
    %21 = tpu.memref_slice %arg7[%9] : memref<2x!tpu.dma_semaphore, #tpu.memory_space<semaphore_mem>> -> memref<1x!tpu.dma_semaphore, #tpu.memory_space<semaphore_mem>>
    %22 = tpu.memref_squeeze %21 : memref<1x!tpu.dma_semaphore, #tpu.memory_space<semaphore_mem>> -> memref<!tpu.dma_semaphore, #tpu.memory_space<semaphore_mem>>
    tpu.wait_dma2 semaphore(%22 : memref<!tpu.dma_semaphore, #tpu.memory_space<semaphore_mem>>) src(%19 : memref<16x32xf32, #tpu.memory_space<any>>) dst(%20 : memref<16x32xf32, #tpu.memory_space<vmem>>)
    %23 = arith.index_cast %18 : i32 to index
    %c0 = arith.constant 0 : index
    %24 = vector.load %arg6[%23, %c0] : memref<32x32xf32, #tpu.memory_space<vmem>>, vector<16x32xf32>
    %c0_11 = arith.constant 0 : index
    %c0_12 = arith.constant 0 : index
    %25 = vector.load %arg3[%c0_11, %c0_12] : memref<1x32xf32, #tpu.memory_space<vmem>>, vector<1x32xf32>
    %c0_13 = arith.constant 0 : index
    %c0_14 = arith.constant 0 : index
    %26 = vector.load %arg4[%c0_13, %c0_14] : memref<1x32xf32, #tpu.memory_space<vmem>>, vector<1x32xf32>
    %cst = arith.constant dense<0.000000e+00> : vector<16xf32>
    %27 = vector.multi_reduction <add>, %24, %cst [1] : vector<16x32xf32> to vector<16xf32>
    %28 = vector.shape_cast %27 : vector<16xf32> to vector<16x1xf32>
    %cst_15 = arith.constant 3.200000e+01 : f32
    %29 = vector.broadcast %cst_15 : f32 to vector<16x1xf32>
    %30 = arith.divf %28, %29 : vector<16x1xf32>
    %31 = vector.broadcast %30 : vector<16x1xf32> to vector<16x32xf32>
    %32 = arith.subf %24, %31 : vector<16x32xf32>
    %33 = arith.mulf %32, %32 : vector<16x32xf32>
    %cst_16 = arith.constant dense<0.000000e+00> : vector<16xf32>
    %34 = vector.multi_reduction <add>, %33, %cst_16 [1] : vector<16x32xf32> to vector<16xf32>
    %35 = vector.shape_cast %34 : vector<16xf32> to vector<16x1xf32>
    %cst_17 = arith.constant 3.200000e+01 : f32
    %36 = vector.broadcast %cst_17 : f32 to vector<16x1xf32>
    %37 = arith.divf %35, %36 : vector<16x1xf32>
    %cst_18 = arith.constant 9.99999974E-6 : f32
    %38 = vector.broadcast %cst_18 : f32 to vector<16x1xf32>
    %39 = arith.addf %37, %38 : vector<16x1xf32>
    %40 = math.rsqrt %39 : vector<16x1xf32>
    %41 = vector.broadcast %40 : vector<16x1xf32> to vector<16x32xf32>
    %42 = arith.mulf %32, %41 : vector<16x32xf32>
    %43 = vector.broadcast %25 : vector<1x32xf32> to vector<16x32xf32>
    %44 = arith.mulf %42, %43 : vector<16x32xf32>
    %45 = vector.broadcast %26 : vector<1x32xf32> to vector<16x32xf32>
    %46 = arith.addf %44, %45 : vector<16x32xf32>
    %c0_19 = arith.constant 0 : index
    %c0_20 = arith.constant 0 : index
    %47 = vector.load %arg5[%c0_19, %c0_20] : memref<16x32xf32, #tpu.memory_space<vmem>>, vector<16x32xf32>
    tpu.vector_store %arg5[%c0_19, %c0_20], %46 {strides = array<i32>} : memref<16x32xf32, #tpu.memory_space<vmem>>, vector<16x32xf32>,
    return
  }
  func.func @transform_1(%arg0: i32, %arg1: memref<16xi32, #tpu.memory_space<smem>>) -> (i32, i32) {
    %c0_i32 = arith.constant 0 : i32
    %c0_i32_0 = arith.constant 0 : i32
    %c0_i32_1 = arith.constant 0 : i32
    return %c0_i32, %c0_i32_0 : i32, i32
  }
  func.func @transform_2(%arg0: i32, %arg1: memref<16xi32, #tpu.memory_space<smem>>) -> (i32, i32) {
    %c0_i32 = arith.constant 0 : i32
    %c0_i32_0 = arith.constant 0 : i32
    %c0_i32_1 = arith.constant 0 : i32
    return %c0_i32, %c0_i32_0 : i32, i32
  }
  func.func @transform_3(%arg0: i32, %arg1: memref<16xi32, #tpu.memory_space<smem>>) -> (i32, i32) {
    %c0_i32 = arith.constant 0 : i32
    %c0_i32_0 = arith.constant 0 : i32
    return %arg0, %c0_i32 : i32, i32
  }
}

</mosaic_0001>

<llo_original>
// kernel: tpu_custom_call.1
$region0: #{tpu_custom_call.1}
  #allocation0 [shape = 'u32[]', space=smem, size = 0x4, offset = 0x4, fixed_abs, tag = 'smem constant byte address 0x4 - core index']
  #allocation1 [shape = 'u32[144,128]{1,0:T(1,128)}', space=vmem, size = 0x12000, scoped, tag = 'internal scratch']
  #allocation2 [shape = 'f32[32,32]{1,0:T(8,128)}', space=vmem, size = 0x4000, scoped, tag = 'scratch operand']
  #allocation3 [shape = 's32[2]{0}', space=sflag, size = 0x8, scoped, tag = 'scratch operand']
  #allocation4 [shape = 's32[1]{0}', space=sflag, size = 0x4, scoped, tag = 'scoped memory for tpu_custom_call.1']
  #allocation5 [shape = 'u8[512]{0}', space=smem, size = 0x200, scoped, tag = 'prefetched SMEM operand 0']
  #allocation8 [shape = 's32[]', space=sflag, size = 0x4, offset = 0, fixed_abs, tag = 'sflag constant byte address 0x0 - dummy sync flag']
  #allocation9 [shape = 's32[]', space=sflag, size = 0x4, offset = 0, fixed_abs, tag = 'sflag constant byte address 0x0 - dummy sync flag']
  #allocation10 [shape = 's32[]', space=sflag, size = 0x4, offset = 0, fixed_abs, tag = 'sflag constant byte address 0x0 - dummy sync flag']
  #allocation11 [shape = 's32[]', space=sflag, size = 0x4, offset = 0, fixed_abs, tag = 'sflag constant byte address 0x0 - dummy sync flag']
  #allocation12 [shape = 's32[]', space=sflag, size = 0x4, offset = 0, fixed_abs, tag = 'sflag constant byte address 0x0 - dummy sync flag']
  #allocation13 [shape = 's32[]', space=sflag, size = 0x4, offset = 0, fixed_abs, tag = 'sflag constant byte address 0x0 - dummy sync flag']
  #allocation14 [shape = 's32[]', space=sflag, size = 0x4, offset = 0, fixed_abs, tag = 'sflag constant byte address 0x0 - dummy sync flag']
  #allocation15 [shape = 's32[]', space=sflag, size = 0x4, offset = 0, fixed_abs, tag = 'sflag constant byte address 0x0 - dummy sync flag']
  #allocation16 [shape = 's32[]', space=sflag, size = 0x4, offset = 0, fixed_abs, tag = 'sflag constant byte address 0x0 - dummy sync flag']
  #allocation17 [shape = 's32[]', space=sflag, size = 0x4, offset = 0, fixed_abs, tag = 'sflag constant byte address 0x0 - dummy sync flag']
  #allocation18 [shape = 's32[]', space=sflag, size = 0x4, offset = 0, fixed_abs, tag = 'sflag constant byte address 0x0 - dummy sync flag']
  #allocation19 [shape = 's32[]', space=sflag, size = 0x4, offset = 0, fixed_abs, tag = 'sflag constant byte address 0x0 - dummy sync flag']
  #allocation20 [shape = 's32[]', space=sflag, size = 0x4, offset = 0, fixed_abs, tag = 'sflag constant byte address 0x0 - dummy sync flag']
  #allocation21 [shape = 's32[]', space=sflag, size = 0x4, offset = 0, fixed_abs, tag = 'sflag constant byte address 0x0 - dummy sync flag']
  #allocation22 [shape = 's32[]', space=sflag, size = 0x4, offset = 0, fixed_abs, tag = 'sflag constant byte address 0x0 - dummy sync flag']
  #allocation23 [shape = 's32[]', space=sflag, size = 0x4, offset = 0, fixed_abs, tag = 'sflag constant byte address 0x0 - dummy sync flag']
  #allocation24 [shape = 's32[]', space=sflag, size = 0x4, offset = 0, fixed_abs, tag = 'sflag constant byte address 0x0 - dummy sync flag']
  #allocation25 [shape = 's32[]', space=sflag, size = 0x4, offset = 0, fixed_abs, tag = 'sflag constant byte address 0x0 - dummy sync flag']
  #allocation26 [shape = 's32[]', space=sflag, size = 0x4, offset = 0, fixed_abs, tag = 'sflag constant byte address 0x0 - dummy sync flag']
  #allocation27 [shape = 's32[]', space=sflag, size = 0x4, offset = 0, fixed_abs, tag = 'sflag constant byte address 0x0 - dummy sync flag']
  #allocation28 [shape = 's32[]', space=sflag, size = 0x4, offset = 0, fixed_abs, tag = 'sflag constant byte address 0x0 - dummy sync flag']
  #allocation29 [shape = 's32[]', space=sflag, size = 0x4, offset = 0, fixed_abs, tag = 'sflag constant byte address 0x0 - dummy sync flag']
  #allocation30 [shape = 's32[]', space=sflag, size = 0x4, offset = 0, fixed_abs, tag = 'sflag constant byte address 0x0 - dummy sync flag']
  #allocation31 [shape = 's32[]', space=sflag, size = 0x4, offset = 0, fixed_abs, tag = 'sflag constant byte address 0x0 - dummy sync flag']
  #allocation32 [shape = 's32[]', space=sflag, size = 0x4, offset = 0, fixed_abs, tag = 'sflag constant byte address 0x0 - dummy sync flag']
  #allocation33 [shape = 's32[]', space=sflag, size = 0x4, offset = 0, fixed_abs, tag = 'sflag constant byte address 0x0 - dummy sync flag']
  #allocation34 [shape = 's32[]', space=sflag, size = 0x4, offset = 0, fixed_abs, tag = 'sflag constant byte address 0x0 - dummy sync flag']
  #allocation35 [shape = 's32[]', space=sflag, size = 0x4, offset = 0, fixed_abs, tag = 'sflag constant byte address 0x0 - dummy sync flag']
  #allocation36 [shape = 's32[]', space=sflag, size = 0x4, offset = 0, fixed_abs, tag = 'sflag constant byte address 0x0 - dummy sync flag']
  #allocation37 [shape = 's32[]', space=sflag, size = 0x4, offset = 0, fixed_abs, tag = 'sflag constant byte address 0x0 - dummy sync flag']
  #allocation38 [shape = 's32[]', space=sflag, size = 0x4, offset = 0, fixed_abs, tag = 'sflag constant byte address 0x0 - dummy sync flag']
  #allocation39 [shape = 's32[]', space=sflag, size = 0x4, offset = 0, fixed_abs, tag = 'sflag constant byte address 0x0 - dummy sync flag']
  %s0 = inlined_call_operand.vmem [shape: s32[16], index: 0, kind: input, shape index: {}]
  %s1 = inlined_call_operand.vmem [shape: f32[64,32], index: 1, kind: input, shape index: {}]
  %s2 = inlined_call_operand.vmem [shape: f32[1,32], index: 2, kind: input, shape index: {}]
  %s3 = inlined_call_operand.vmem [shape: f32[1,32], index: 3, kind: input, shape index: {}]
  %s4 = inlined_call_operand.hbm [shape: f32[16,32], index: 4, kind: output, shape index: {}]
  %s5 = sld [smem:[#allocation0]]
  $region986: #{tpu_custom_call.1} parent=0
    _
  %s7 = ssub.s32 1, %s5
  %s8 = scalar_select 0, %s7, %s5
  %s9 = sshll.u32 %s0, 4
  %s10 = int_to_ptr.vmem [resolvable:$true] %s9
  %12 = dma.vmem_to_smem %s10, 16, [#allocation5], [#allocation4]
  %13 = dma.done [#allocation4], 16
  %14 = sfence
  $region1: #{tpu_custom_call.1} parent=0
    #allocation6 [shape = 'u8[8192]{0}', space=vmem, size = 0x2000, scoped, tag = 'output window, operand 0, single buffered']
    #allocation7 [shape = 's32[1]{0}', space=sflag, size = 0x4, scoped, tag = 'scoped memory for tpu_custom_call.1']
    %15 = vsyncpa [#allocation7], 0
    // Predicated region
    $region2: #{tpu_custom_call.1} parent=1 // pred_check
      _
    $region3: #{tpu_custom_call.1} parent=1 // pred_check_branch
      %17 = sbr.rel (0) target = $region5
    $region4: #{tpu_custom_call.1} parent=1 // pred_region
      _
    $region5: #{tpu_custom_call.1} parent=1 // pred_fallthru
      _
    // Predicated region
    $region6: #{tpu_custom_call.1} parent=1 // pred_check
      _
    $region7: #{tpu_custom_call.1} parent=1 // pred_check_branch
      %19 = sbr.rel (0) target = $region9
    $region8: #{tpu_custom_call.1} parent=1 // pred_region
      _
    $region9: #{tpu_custom_call.1} parent=1 // pred_fallthru
      _
    %s20 = ssub.s32 0, 0
    %s21 = ssub.s32 0, 0
    %p22 = scmp.ne.s32.totalorder 0, 0
    %p23 = scmp.lt.s32.totalorder 0, 0
    %p24 = pnand %p23, %p22
    %p25 = pneg %p24
    %s26 = sadd.s32 0, 2
    %s27 = scalar_select %p25, %s26, 0
    %p28 = scmp.eq.s32.totalorder 0, 0
    // Predicated region
    $region10: #{tpu_custom_call.1} parent=1 // pred_check
      %p29 = pneg %p28
    $region11: #{tpu_custom_call.1} parent=1 // pred_check_branch
      %31 = sbr.rel (%p29) target = $region13
    $region12: #{tpu_custom_call.1} parent=1 // pred_region
      %s32 = sld [smem:[#allocation5]]
      %s33 = scalar_lea.vmem %s1, %s32
      %p35 = scmp.lt.u32.totalorder 1, 8
      %p36 = pneg %p35
      // Predicated region
      $region14: #{tpu_custom_call.1} parent=12 // pred_check
        _
      $region15: #{tpu_custom_call.1} parent=12 // pred_check_branch
        %38 = sbr.rel (%p35) target = $region17
      $region16: #{tpu_custom_call.1} parent=12 // pred_region
        %s53 = sand.u32 1, 7
        %p54 = scmp.eq.s32.totalorder %s53, 0
        %p55 = pneg %p54
        // Predicated region
        $region29: #{tpu_custom_call.1} parent=16 // pred_check
          _
        $region30: #{tpu_custom_call.1} parent=16 // pred_check_branch
          %57 = sbr.rel (%p54) target = $region32
        $region31: #{tpu_custom_call.1} parent=16 // pred_region
          %s58 = sand.u32 1, 7
          %s59 = ssub.s32 1, %s58
          %s60 = scalar_lea.vmem %s33, %s59
          %s61 = ssub.s32 1, %s58
          %s62 = scalar_lea.vmem [#allocation2], %s61
          %s63 = sshllo.u32 0, %s58
          loop: start=0, step=1, limit=1
          $region33: #{tpu_custom_call.1} parent=31 // loop_pre_header
            _
          $region34: #{tpu_custom_call.1} parent=31 // loop_header
            %s65 = sphi 0, %s69
            %p66 = scmp.ge.s32.totalorder %s65, 1
            %s70 = sphi %s60, %s60
            %s71 = sphi %s62, %s62
          $region35: #{tpu_custom_call.1} parent=31 // loop_header_branch
            %68 = sbr.rel (%p66) target = $region39
          $region36: #{tpu_custom_call.1} parent=31 // loop_body
            %v72 = vld [vmem:[%s70] sm:%s63]
            %73 = vst [vmem:[%s71] sm:%s63] %v72
          $region37: #{tpu_custom_call.1} parent=31 // loop_footer
            %s69 = sadd.s32 1, %s65
          $region38: #{tpu_custom_call.1} parent=31 // loop_footer_branch
            %64 = sbr.rel target = $region34
          $region39: #{tpu_custom_call.1} parent=31 // loop_exit
            _
        $region32: #{tpu_custom_call.1} parent=16 // pred_fallthru
          _
      $region17: #{tpu_custom_call.1} parent=12 // pred_fallthru
        _
      // Predicated region
      $region18: #{tpu_custom_call.1} parent=12 // pred_check
        %p39 = pneg %p35
      $region19: #{tpu_custom_call.1} parent=12 // pred_check_branch
        %41 = sbr.rel (%p39) target = $region21
      $region20: #{tpu_custom_call.1} parent=12 // pred_region
        %s42 = sshllo.u32 0, 1
        loop: start=0, step=1, limit=1
        $region22: #{tpu_custom_call.1} parent=20 // loop_pre_header
          _
        $region23: #{tpu_custom_call.1} parent=20 // loop_header
          %s44 = sphi 0, %s48
          %p45 = scmp.ge.s32.totalorder %s44, 1
          %s49 = sphi %s33, %s33
          %s50 = sphi [#allocation2], [#allocation2]
        $region24: #{tpu_custom_call.1} parent=20 // loop_header_branch
          %47 = sbr.rel (%p45) target = $region28
        $region25: #{tpu_custom_call.1} parent=20 // loop_body
          %v51 = vld [vmem:[%s49] sm:%s42]
          %52 = vst [vmem:[%s50] sm:%s42] %v51
        $region26: #{tpu_custom_call.1} parent=20 // loop_footer
          %s48 = sadd.s32 1, %s44
        $region27: #{tpu_custom_call.1} parent=20 // loop_footer_branch
          %43 = sbr.rel target = $region23
        $region28: #{tpu_custom_call.1} parent=20 // loop_exit
          _
      $region21: #{tpu_custom_call.1} parent=12 // pred_fallthru
        _
      // Predicated region
      $region40: #{tpu_custom_call.1} parent=12 // pred_check
        _
      $region41: #{tpu_custom_call.1} parent=12 // pred_check_branch
        %76 = sbr.rel (0) target = $region43
      $region42: #{tpu_custom_call.1} parent=12 // pred_region
        %77 = vsyncadd [#allocation3], 16
      $region43: #{tpu_custom_call.1} parent=12 // pred_fallthru
        _
      %s78 = sld [smem:[#allocation5 + $0x1]]
      %s79 = scalar_lea.vmem %s1, %s78
      %s80 = scalar_lea.vmem [#allocation2], 1
      %p82 = scmp.lt.u32.totalorder 1, 8
      %p83 = pneg %p82
      // Predicated region
      $region44: #{tpu_custom_call.1} parent=12 // pred_check
        _
      $region45: #{tpu_custom_call.1} parent=12 // pred_check_branch
        %85 = sbr.rel (%p82) target = $region47
      $region46: #{tpu_custom_call.1} parent=12 // pred_region
        %s100 = sand.u32 1, 7
        %p101 = scmp.eq.s32.totalorder %s100, 0
        %p102 = pneg %p101
        // Predicated region
        $region59: #{tpu_custom_call.1} parent=46 // pred_check
          _
        $region60: #{tpu_custom_call.1} parent=46 // pred_check_branch
          %104 = sbr.rel (%p101) target = $region62
        $region61: #{tpu_custom_call.1} parent=46 // pred_region
          %s105 = sand.u32 1, 7
          %s106 = ssub.s32 1, %s105
          %s107 = scalar_lea.vmem %s79, %s106
          %s108 = ssub.s32 1, %s105
          %s109 = scalar_lea.vmem %s80, %s108 [#allocation2]
          %s110 = sshllo.u32 0, %s105
          loop: start=0, step=1, limit=1
          $region63: #{tpu_custom_call.1} parent=61 // loop_pre_header
            _
          $region64: #{tpu_custom_call.1} parent=61 // loop_header
            %s112 = sphi 0, %s116
            %p113 = scmp.ge.s32.totalorder %s112, 1
            %s117 = sphi %s107, %s107
            %s118 = sphi %s109, %s109
          $region65: #{tpu_custom_call.1} parent=61 // loop_header_branch
            %115 = sbr.rel (%p113) target = $region69
          $region66: #{tpu_custom_call.1} parent=61 // loop_body
            %v119 = vld [vmem:[%s117] sm:%s110]
            %120 = vst [vmem:[%s118] sm:%s110] %v119
          $region67: #{tpu_custom_call.1} parent=61 // loop_footer
            %s116 = sadd.s32 1, %s112
          $region68: #{tpu_custom_call.1} parent=61 // loop_footer_branch
            %111 = sbr.rel target = $region64
          $region69: #{tpu_custom_call.1} parent=61 // loop_exit
            _
        $region62: #{tpu_custom_call.1} parent=46 // pred_fallthru
          _
      $region47: #{tpu_custom_call.1} parent=12 // pred_fallthru
        _
      // Predicated region
      $region48: #{tpu_custom_call.1} parent=12 // pred_check
        %p86 = pneg %p82
      $region49: #{tpu_custom_call.1} parent=12 // pred_check_branch
        %88 = sbr.rel (%p86) target = $region51
      $region50: #{tpu_custom_call.1} parent=12 // pred_region
        %s89 = sshllo.u32 0, 1
        loop: start=0, step=1, limit=1
        $region52: #{tpu_custom_call.1} parent=50 // loop_pre_header
          _
        $region53: #{tpu_custom_call.1} parent=50 // loop_header
          %s91 = sphi 0, %s95
          %p92 = scmp.ge.s32.totalorder %s91, 1
          %s96 = sphi %s79, %s79
          %s97 = sphi %s80, %s80
        $region54: #{tpu_custom_call.1} parent=50 // loop_header_branch
          %94 = sbr.rel (%p92) target = $region58
        $region55: #{tpu_custom_call.1} parent=50 // loop_body
          %v98 = vld [vmem:[%s96] sm:%s89]
          %99 = vst [vmem:[%s97] sm:%s89] %v98
        $region56: #{tpu_custom_call.1} parent=50 // loop_footer
          %s95 = sadd.s32 1, %s91
        $region57: #{tpu_custom_call.1} parent=50 // loop_footer_branch
          %90 = sbr.rel target = $region53
        $region58: #{tpu_custom_call.1} parent=50 // loop_exit
          _
      $region51: #{tpu_custom_call.1} parent=12 // pred_fallthru
        _
      // Predicated region
      $region70: #{tpu_custom_call.1} parent=12 // pred_check
        _
      $region71: #{tpu_custom_call.1} parent=12 // pred_check_branch
        %123 = sbr.rel (0) target = $region73
      $region72: #{tpu_custom_call.1} parent=12 // pred_region
        %124 = vsyncadd [#allocation3], 16
      $region73: #{tpu_custom_call.1} parent=12 // pred_fallthru
        _
      %s125 = sld [smem:[#allocation5 + $0x2]]
      %s126 = scalar_lea.vmem %s1, %s125
      %s127 = scalar_lea.vmem [#allocation2], 2
      %p129 = scmp.lt.u32.totalorder 1, 8
      %p130 = pneg %p129
      // Predicated region
      $region74: #{tpu_custom_call.1} parent=12 // pred_check
        _
      $region75: #{tpu_custom_call.1} parent=12 // pred_check_branch
        %132 = sbr.rel (%p129) target = $region77
      $region76: #{tpu_custom_call.1} parent=12 // pred_region
        %s147 = sand.u32 1, 7
        %p148 = scmp.eq.s32.totalorder %s147, 0
        %p149 = pneg %p148
        // Predicated region
        $region89: #{tpu_custom_call.1} parent=76 // pred_check
          _
        $region90: #{tpu_custom_call.1} parent=76 // pred_check_branch
          %151 = sbr.rel (%p148) target = $region92
        $region91: #{tpu_custom_call.1} parent=76 // pred_region
          %s152 = sand.u32 1, 7
          %s153 = ssub.s32 1, %s152
          %s154 = scalar_lea.vmem %s126, %s153
          %s155 = ssub.s32 1, %s152
          %s156 = scalar_lea.vmem %s127, %s155 [#allocation2]
          %s157 = sshllo.u32 0, %s152
          loop: start=0, step=1, limit=1
          $region93: #{tpu_custom_call.1} parent=91 // loop_pre_header
            _
          $region94: #{tpu_custom_call.1} parent=91 // loop_header
            %s159 = sphi 0, %s163
            %p160 = scmp.ge.s32.totalorder %s159, 1
            %s164 = sphi %s154, %s154
            %s165 = sphi %s156, %s156
          $region95: #{tpu_custom_call.1} parent=91 // loop_header_branch
            %162 = sbr.rel (%p160) target = $region99
          $region96: #{tpu_custom_call.1} parent=91 // loop_body
            %v166 = vld [vmem:[%s164] sm:%s157]
            %167 = vst [vmem:[%s165] sm:%s157] %v166
          $region97: #{tpu_custom_call.1} parent=91 // loop_footer
            %s163 = sadd.s32 1, %s159
          $region98: #{tpu_custom_call.1} parent=91 // loop_footer_branch
            %158 = sbr.rel target = $region94
          $region99: #{tpu_custom_call.1} parent=91 // loop_exit
            _
        $region92: #{tpu_custom_call.1} parent=76 // pred_fallthru
          _
      $region77: #{tpu_custom_call.1} parent=12 // pred_fallthru
        _
      // Predicated region
      $region78: #{tpu_custom_call.1} parent=12 // pred_check
        %p133 = pneg %p129
      $region79: #{tpu_custom_call.1} parent=12 // pred_check_branch
        %135 = sbr.rel (%p133) target = $region81
      $region80: #{tpu_custom_call.1} parent=12 // pred_region
        %s136 = sshllo.u32 0, 1
        loop: start=0, step=1, limit=1
        $region82: #{tpu_custom_call.1} parent=80 // loop_pre_header
          _
        $region83: #{tpu_custom_call.1} parent=80 // loop_header
          %s138 = sphi 0, %s142
          %p139 = scmp.ge.s32.totalorder %s138, 1
          %s143 = sphi %s126, %s126
          %s144 = sphi %s127, %s127
        $region84: #{tpu_custom_call.1} parent=80 // loop_header_branch
          %141 = sbr.rel (%p139) target = $region88
        $region85: #{tpu_custom_call.1} parent=80 // loop_body
          %v145 = vld [vmem:[%s143] sm:%s136]
          %146 = vst [vmem:[%s144] sm:%s136] %v145
        $region86: #{tpu_custom_call.1} parent=80 // loop_footer
          %s142 = sadd.s32 1, %s138
        $region87: #{tpu_custom_call.1} parent=80 // loop_footer_branch
          %137 = sbr.rel target = $region83
        $region88: #{tpu_custom_call.1} parent=80 // loop_exit
          _
      $region81: #{tpu_custom_call.1} parent=12 // pred_fallthru
        _
      // Predicated region
      $region100: #{tpu_custom_call.1} parent=12 // pred_check
        _
      $region101: #{tpu_custom_call.1} parent=12 // pred_check_branch
        %170 = sbr.rel (0) target = $region103
      $region102: #{tpu_custom_call.1} parent=12 // pred_region
        %171 = vsyncadd [#allocation3], 16
      $region103: #{tpu_custom_call.1} parent=12 // pred_fallthru
        _
      %s172 = sld [smem:[#allocation5 + $0x3]]
      %s173 = scalar_lea.vmem %s1, %s172
      %s174 = scalar_lea.vmem [#allocation2], 3
      %p176 = scmp.lt.u32.totalorder 1, 8
      %p177 = pneg %p176
      // Predicated region
      $region104: #{tpu_custom_call.1} parent=12 // pred_check
        _
      $region105: #{tpu_custom_call.1} parent=12 // pred_check_branch
        %179 = sbr.rel (%p176) target = $region107
      $region106: #{tpu_custom_call.1} parent=12 // pred_region
        %s194 = sand.u32 1, 7
        %p195 = scmp.eq.s32.totalorder %s194, 0
        %p196 = pneg %p195
        // Predicated region
        $region119: #{tpu_custom_call.1} parent=106 // pred_check
          _
        $region120: #{tpu_custom_call.1} parent=106 // pred_check_branch
          %198 = sbr.rel (%p195) target = $region122
        $region121: #{tpu_custom_call.1} parent=106 // pred_region
          %s199 = sand.u32 1, 7
          %s200 = ssub.s32 1, %s199
          %s201 = scalar_lea.vmem %s173, %s200
          %s202 = ssub.s32 1, %s199
          %s203 = scalar_lea.vmem %s174, %s202 [#allocation2]
          %s204 = sshllo.u32 0, %s199
          loop: start=0, step=1, limit=1
          $region123: #{tpu_custom_call.1} parent=121 // loop_pre_header
            _
          $region124: #{tpu_custom_call.1} parent=121 // loop_header
            %s206 = sphi 0, %s210
            %p207 = scmp.ge.s32.totalorder %s206, 1
            %s211 = sphi %s201, %s201
            %s212 = sphi %s203, %s203
          $region125: #{tpu_custom_call.1} parent=121 // loop_header_branch
            %209 = sbr.rel (%p207) target = $region129
          $region126: #{tpu_custom_call.1} parent=121 // loop_body
            %v213 = vld [vmem:[%s211] sm:%s204]
            %214 = vst [vmem:[%s212] sm:%s204] %v213
          $region127: #{tpu_custom_call.1} parent=121 // loop_footer
            %s210 = sadd.s32 1, %s206
          $region128: #{tpu_custom_call.1} parent=121 // loop_footer_branch
            %205 = sbr.rel target = $region124
          $region129: #{tpu_custom_call.1} parent=121 // loop_exit
            _
        $region122: #{tpu_custom_call.1} parent=106 // pred_fallthru
          _
      $region107: #{tpu_custom_call.1} parent=12 // pred_fallthru
        _
      // Predicated region
      $region108: #{tpu_custom_call.1} parent=12 // pred_check
        %p180 = pneg %p176
      $region109: #{tpu_custom_call.1} parent=12 // pred_check_branch
        %182 = sbr.rel (%p180) target = $region111
      $region110: #{tpu_custom_call.1} parent=12 // pred_region
        %s183 = sshllo.u32 0, 1
        loop: start=0, step=1, limit=1
        $region112: #{tpu_custom_call.1} parent=110 // loop_pre_header
          _
        $region113: #{tpu_custom_call.1} parent=110 // loop_header
          %s185 = sphi 0, %s189
          %p186 = scmp.ge.s32.totalorder %s185, 1
          %s190 = sphi %s173, %s173
          %s191 = sphi %s174, %s174
        $region114: #{tpu_custom_call.1} parent=110 // loop_header_branch
          %188 = sbr.rel (%p186) target = $region118
        $region115: #{tpu_custom_call.1} parent=110 // loop_body
          %v192 = vld [vmem:[%s190] sm:%s183]
          %193 = vst [vmem:[%s191] sm:%s183] %v192
        $region116: #{tpu_custom_call.1} parent=110 // loop_footer
          %s189 = sadd.s32 1, %s185
        $region117: #{tpu_custom_call.1} parent=110 // loop_footer_branch
          %184 = sbr.rel target = $region113
        $region118: #{tpu_custom_call.1} parent=110 // loop_exit
          _
      $region111: #{tpu_custom_call.1} parent=12 // pred_fallthru
        _
      // Predicated region
      $region130: #{tpu_custom_call.1} parent=12 // pred_check
        _
      $region131: #{tpu_custom_call.1} parent=12 // pred_check_branch
        %217 = sbr.rel (0) target = $region133
      $region132: #{tpu_custom_call.1} parent=12 // pred_region
        %218 = vsyncadd [#allocation3], 16
      $region133: #{tpu_custom_call.1} parent=12 // pred_fallthru
        _
      %s219 = sld [smem:[#allocation5 + $0x4]]
      %s220 = scalar_lea.vmem %s1, %s219
      %s221 = scalar_lea.vmem [#allocation2], 4
      %p223 = scmp.lt.u32.totalorder 1, 8
      %p224 = pneg %p223
      // Predicated region
      $region134: #{tpu_custom_call.1} parent=12 // pred_check
        _
      $region135: #{tpu_custom_call.1} parent=12 // pred_check_branch
        %226 = sbr.rel (%p223) target = $region137
      $region136: #{tpu_custom_call.1} parent=12 // pred_region
        %s241 = sand.u32 1, 7
        %p242 = scmp.eq.s32.totalorder %s241, 0
        %p243 = pneg %p242
        // Predicated region
        $region149: #{tpu_custom_call.1} parent=136 // pred_check
          _
        $region150: #{tpu_custom_call.1} parent=136 // pred_check_branch
          %245 = sbr.rel (%p242) target = $region152
        $region151: #{tpu_custom_call.1} parent=136 // pred_region
          %s246 = sand.u32 1, 7
          %s247 = ssub.s32 1, %s246
          %s248 = scalar_lea.vmem %s220, %s247
          %s249 = ssub.s32 1, %s246
          %s250 = scalar_lea.vmem %s221, %s249 [#allocation2]
          %s251 = sshllo.u32 0, %s246
          loop: start=0, step=1, limit=1
          $region153: #{tpu_custom_call.1} parent=151 // loop_pre_header
            _
          $region154: #{tpu_custom_call.1} parent=151 // loop_header
            %s253 = sphi 0, %s257
            %p254 = scmp.ge.s32.totalorder %s253, 1
            %s258 = sphi %s248, %s248
            %s259 = sphi %s250, %s250
          $region155: #{tpu_custom_call.1} parent=151 // loop_header_branch
            %256 = sbr.rel (%p254) target = $region159
          $region156: #{tpu_custom_call.1} parent=151 // loop_body
            %v260 = vld [vmem:[%s258] sm:%s251]
            %261 = vst [vmem:[%s259] sm:%s251] %v260
          $region157: #{tpu_custom_call.1} parent=151 // loop_footer
            %s257 = sadd.s32 1, %s253
          $region158: #{tpu_custom_call.1} parent=151 // loop_footer_branch
            %252 = sbr.rel target = $region154
          $region159: #{tpu_custom_call.1} parent=151 // loop_exit
            _
        $region152: #{tpu_custom_call.1} parent=136 // pred_fallthru
          _
      $region137: #{tpu_custom_call.1} parent=12 // pred_fallthru
        _
      // Predicated region
      $region138: #{tpu_custom_call.1} parent=12 // pred_check
        %p227 = pneg %p223
      $region139: #{tpu_custom_call.1} parent=12 // pred_check_branch
        %229 = sbr.rel (%p227) target = $region141
      $region140: #{tpu_custom_call.1} parent=12 // pred_region
        %s230 = sshllo.u32 0, 1
        loop: start=0, step=1, limit=1
        $region142: #{tpu_custom_call.1} parent=140 // loop_pre_header
          _
        $region143: #{tpu_custom_call.1} parent=140 // loop_header
          %s232 = sphi 0, %s236
          %p233 = scmp.ge.s32.totalorder %s232, 1
          %s237 = sphi %s220, %s220
          %s238 = sphi %s221, %s221
        $region144: #{tpu_custom_call.1} parent=140 // loop_header_branch
          %235 = sbr.rel (%p233) target = $region148
        $region145: #{tpu_custom_call.1} parent=140 // loop_body
          %v239 = vld [vmem:[%s237] sm:%s230]
          %240 = vst [vmem:[%s238] sm:%s230] %v239
        $region146: #{tpu_custom_call.1} parent=140 // loop_footer
          %s236 = sadd.s32 1, %s232
        $region147: #{tpu_custom_call.1} parent=140 // loop_footer_branch
          %231 = sbr.rel target = $region143
        $region148: #{tpu_custom_call.1} parent=140 // loop_exit
          _
      $region141: #{tpu_custom_call.1} parent=12 // pred_fallthru
        _
      // Predicated region
      $region160: #{tpu_custom_call.1} parent=12 // pred_check
        _
      $region161: #{tpu_custom_call.1} parent=12 // pred_check_branch
        %264 = sbr.rel (0) target = $region163
      $region162: #{tpu_custom_call.1} parent=12 // pred_region
        %265 = vsyncadd [#allocation3], 16
      $region163: #{tpu_custom_call.1} parent=12 // pred_fallthru
        _
      %s266 = sld [smem:[#allocation5 + $0x5]]
      %s267 = scalar_lea.vmem %s1, %s266
      %s268 = scalar_lea.vmem [#allocation2], 5
      %p270 = scmp.lt.u32.totalorder 1, 8
      %p271 = pneg %p270
      // Predicated region
      $region164: #{tpu_custom_call.1} parent=12 // pred_check
        _
      $region165: #{tpu_custom_call.1} parent=12 // pred_check_branch
        %273 = sbr.rel (%p270) target = $region167
      $region166: #{tpu_custom_call.1} parent=12 // pred_region
        %s288 = sand.u32 1, 7
        %p289 = scmp.eq.s32.totalorder %s288, 0
        %p290 = pneg %p289
        // Predicated region
        $region179: #{tpu_custom_call.1} parent=166 // pred_check
          _
        $region180: #{tpu_custom_call.1} parent=166 // pred_check_branch
          %292 = sbr.rel (%p289) target = $region182
        $region181: #{tpu_custom_call.1} parent=166 // pred_region
          %s293 = sand.u32 1, 7
          %s294 = ssub.s32 1, %s293
          %s295 = scalar_lea.vmem %s267, %s294
          %s296 = ssub.s32 1, %s293
          %s297 = scalar_lea.vmem %s268, %s296 [#allocation2]
          %s298 = sshllo.u32 0, %s293
          loop: start=0, step=1, limit=1
          $region183: #{tpu_custom_call.1} parent=181 // loop_pre_header
            _
          $region184: #{tpu_custom_call.1} parent=181 // loop_header
            %s300 = sphi 0, %s304
            %p301 = scmp.ge.s32.totalorder %s300, 1
            %s305 = sphi %s295, %s295
            %s306 = sphi %s297, %s297
          $region185: #{tpu_custom_call.1} parent=181 // loop_header_branch
            %303 = sbr.rel (%p301) target = $region189
          $region186: #{tpu_custom_call.1} parent=181 // loop_body
            %v307 = vld [vmem:[%s305] sm:%s298]
            %308 = vst [vmem:[%s306] sm:%s298] %v307
          $region187: #{tpu_custom_call.1} parent=181 // loop_footer
            %s304 = sadd.s32 1, %s300
          $region188: #{tpu_custom_call.1} parent=181 // loop_footer_branch
            %299 = sbr.rel target = $region184
          $region189: #{tpu_custom_call.1} parent=181 // loop_exit
            _
        $region182: #{tpu_custom_call.1} parent=166 // pred_fallthru
          _
      $region167: #{tpu_custom_call.1} parent=12 // pred_fallthru
        _
      // Predicated region
      $region168: #{tpu_custom_call.1} parent=12 // pred_check
        %p274 = pneg %p270
      $region169: #{tpu_custom_call.1} parent=12 // pred_check_branch
        %276 = sbr.rel (%p274) target = $region171
      $region170: #{tpu_custom_call.1} parent=12 // pred_region
        %s277 = sshllo.u32 0, 1
        loop: start=0, step=1, limit=1
        $region172: #{tpu_custom_call.1} parent=170 // loop_pre_header
          _
        $region173: #{tpu_custom_call.1} parent=170 // loop_header
          %s279 = sphi 0, %s283
          %p280 = scmp.ge.s32.totalorder %s279, 1
          %s284 = sphi %s267, %s267
          %s285 = sphi %s268, %s268
        $region174: #{tpu_custom_call.1} parent=170 // loop_header_branch
          %282 = sbr.rel (%p280) target = $region178
        $region175: #{tpu_custom_call.1} parent=170 // loop_body
          %v286 = vld [vmem:[%s284] sm:%s277]
          %287 = vst [vmem:[%s285] sm:%s277] %v286
        $region176: #{tpu_custom_call.1} parent=170 // loop_footer
          %s283 = sadd.s32 1, %s279
        $region177: #{tpu_custom_call.1} parent=170 // loop_footer_branch
          %278 = sbr.rel target = $region173
        $region178: #{tpu_custom_call.1} parent=170 // loop_exit
          _
      $region171: #{tpu_custom_call.1} parent=12 // pred_fallthru
        _
      // Predicated region
      $region190: #{tpu_custom_call.1} parent=12 // pred_check
        _
      $region191: #{tpu_custom_call.1} parent=12 // pred_check_branch
        %311 = sbr.rel (0) target = $region193
      $region192: #{tpu_custom_call.1} parent=12 // pred_region
        %312 = vsyncadd [#allocation3], 16
      $region193: #{tpu_custom_call.1} parent=12 // pred_fallthru
        _
      %s313 = sld [smem:[#allocation5 + $0x6]]
      %s314 = scalar_lea.vmem %s1, %s313
      %s315 = scalar_lea.vmem [#allocation2], 6
      %p317 = scmp.lt.u32.totalorder 1, 8
      %p318 = pneg %p317
      // Predicated region
      $region194: #{tpu_custom_call.1} parent=12 // pred_check
        _
      $region195: #{tpu_custom_call.1} parent=12 // pred_check_branch
        %320 = sbr.rel (%p317) target = $region197
      $region196: #{tpu_custom_call.1} parent=12 // pred_region
        %s335 = sand.u32 1, 7
        %p336 = scmp.eq.s32.totalorder %s335, 0
        %p337 = pneg %p336
        // Predicated region
        $region209: #{tpu_custom_call.1} parent=196 // pred_check
          _
        $region210: #{tpu_custom_call.1} parent=196 // pred_check_branch
          %339 = sbr.rel (%p336) target = $region212
        $region211: #{tpu_custom_call.1} parent=196 // pred_region
          %s340 = sand.u32 1, 7
          %s341 = ssub.s32 1, %s340
          %s342 = scalar_lea.vmem %s314, %s341
          %s343 = ssub.s32 1, %s340
          %s344 = scalar_lea.vmem %s315, %s343 [#allocation2]
          %s345 = sshllo.u32 0, %s340
          loop: start=0, step=1, limit=1
          $region213: #{tpu_custom_call.1} parent=211 // loop_pre_header
            _
          $region214: #{tpu_custom_call.1} parent=211 // loop_header
            %s347 = sphi 0, %s351
            %p348 = scmp.ge.s32.totalorder %s347, 1
            %s352 = sphi %s342, %s342
            %s353 = sphi %s344, %s344
          $region215: #{tpu_custom_call.1} parent=211 // loop_header_branch
            %350 = sbr.rel (%p348) target = $region219
          $region216: #{tpu_custom_call.1} parent=211 // loop_body
            %v354 = vld [vmem:[%s352] sm:%s345]
            %355 = vst [vmem:[%s353] sm:%s345] %v354
          $region217: #{tpu_custom_call.1} parent=211 // loop_footer
            %s351 = sadd.s32 1, %s347
          $region218: #{tpu_custom_call.1} parent=211 // loop_footer_branch
            %346 = sbr.rel target = $region214
          $region219: #{tpu_custom_call.1} parent=211 // loop_exit
            _
        $region212: #{tpu_custom_call.1} parent=196 // pred_fallthru
          _
      $region197: #{tpu_custom_call.1} parent=12 // pred_fallthru
        _
      // Predicated region
      $region198: #{tpu_custom_call.1} parent=12 // pred_check
        %p321 = pneg %p317
      $region199: #{tpu_custom_call.1} parent=12 // pred_check_branch
        %323 = sbr.rel (%p321) target = $region201
      $region200: #{tpu_custom_call.1} parent=12 // pred_region
        %s324 = sshllo.u32 0, 1
        loop: start=0, step=1, limit=1
        $region202: #{tpu_custom_call.1} parent=200 // loop_pre_header
          _
        $region203: #{tpu_custom_call.1} parent=200 // loop_header
          %s326 = sphi 0, %s330
          %p327 = scmp.ge.s32.totalorder %s326, 1
          %s331 = sphi %s314, %s314
          %s332 = sphi %s315, %s315
        $region204: #{tpu_custom_call.1} parent=200 // loop_header_branch
          %329 = sbr.rel (%p327) target = $region208
        $region205: #{tpu_custom_call.1} parent=200 // loop_body
          %v333 = vld [vmem:[%s331] sm:%s324]
          %334 = vst [vmem:[%s332] sm:%s324] %v333
        $region206: #{tpu_custom_call.1} parent=200 // loop_footer
          %s330 = sadd.s32 1, %s326
        $region207: #{tpu_custom_call.1} parent=200 // loop_footer_branch
          %325 = sbr.rel target = $region203
        $region208: #{tpu_custom_call.1} parent=200 // loop_exit
          _
      $region201: #{tpu_custom_call.1} parent=12 // pred_fallthru
        _
      // Predicated region
      $region220: #{tpu_custom_call.1} parent=12 // pred_check
        _
      $region221: #{tpu_custom_call.1} parent=12 // pred_check_branch
        %358 = sbr.rel (0) target = $region223
      $region222: #{tpu_custom_call.1} parent=12 // pred_region
        %359 = vsyncadd [#allocation3], 16
      $region223: #{tpu_custom_call.1} parent=12 // pred_fallthru
        _
      %s360 = sld [smem:[#allocation5 + $0x7]]
      %s361 = scalar_lea.vmem %s1, %s360
      %s362 = scalar_lea.vmem [#allocation2], 7
      %p364 = scmp.lt.u32.totalorder 1, 8
      %p365 = pneg %p364
      // Predicated region
      $region224: #{tpu_custom_call.1} parent=12 // pred_check
        _
      $region225: #{tpu_custom_call.1} parent=12 // pred_check_branch
        %367 = sbr.rel (%p364) target = $region227
      $region226: #{tpu_custom_call.1} parent=12 // pred_region
        %s382 = sand.u32 1, 7
        %p383 = scmp.eq.s32.totalorder %s382, 0
        %p384 = pneg %p383
        // Predicated region
        $region239: #{tpu_custom_call.1} parent=226 // pred_check
          _
        $region240: #{tpu_custom_call.1} parent=226 // pred_check_branch
          %386 = sbr.rel (%p383) target = $region242
        $region241: #{tpu_custom_call.1} parent=226 // pred_region
          %s387 = sand.u32 1, 7
          %s388 = ssub.s32 1, %s387
          %s389 = scalar_lea.vmem %s361, %s388
          %s390 = ssub.s32 1, %s387
          %s391 = scalar_lea.vmem %s362, %s390 [#allocation2]
          %s392 = sshllo.u32 0, %s387
          loop: start=0, step=1, limit=1
          $region243: #{tpu_custom_call.1} parent=241 // loop_pre_header
            _
          $region244: #{tpu_custom_call.1} parent=241 // loop_header
            %s394 = sphi 0, %s398
            %p395 = scmp.ge.s32.totalorder %s394, 1
            %s399 = sphi %s389, %s389
            %s400 = sphi %s391, %s391
          $region245: #{tpu_custom_call.1} parent=241 // loop_header_branch
            %397 = sbr.rel (%p395) target = $region249
          $region246: #{tpu_custom_call.1} parent=241 // loop_body
            %v401 = vld [vmem:[%s399] sm:%s392]
            %402 = vst [vmem:[%s400] sm:%s392] %v401
          $region247: #{tpu_custom_call.1} parent=241 // loop_footer
            %s398 = sadd.s32 1, %s394
          $region248: #{tpu_custom_call.1} parent=241 // loop_footer_branch
            %393 = sbr.rel target = $region244
          $region249: #{tpu_custom_call.1} parent=241 // loop_exit
            _
        $region242: #{tpu_custom_call.1} parent=226 // pred_fallthru
          _
      $region227: #{tpu_custom_call.1} parent=12 // pred_fallthru
        _
      // Predicated region
      $region228: #{tpu_custom_call.1} parent=12 // pred_check
        %p368 = pneg %p364
      $region229: #{tpu_custom_call.1} parent=12 // pred_check_branch
        %370 = sbr.rel (%p368) target = $region231
      $region230: #{tpu_custom_call.1} parent=12 // pred_region
        %s371 = sshllo.u32 0, 1
        loop: start=0, step=1, limit=1
        $region232: #{tpu_custom_call.1} parent=230 // loop_pre_header
          _
        $region233: #{tpu_custom_call.1} parent=230 // loop_header
          %s373 = sphi 0, %s377
          %p374 = scmp.ge.s32.totalorder %s373, 1
          %s378 = sphi %s361, %s361
          %s379 = sphi %s362, %s362
        $region234: #{tpu_custom_call.1} parent=230 // loop_header_branch
          %376 = sbr.rel (%p374) target = $region238
        $region235: #{tpu_custom_call.1} parent=230 // loop_body
          %v380 = vld [vmem:[%s378] sm:%s371]
          %381 = vst [vmem:[%s379] sm:%s371] %v380
        $region236: #{tpu_custom_call.1} parent=230 // loop_footer
          %s377 = sadd.s32 1, %s373
        $region237: #{tpu_custom_call.1} parent=230 // loop_footer_branch
          %372 = sbr.rel target = $region233
        $region238: #{tpu_custom_call.1} parent=230 // loop_exit
          _
      $region231: #{tpu_custom_call.1} parent=12 // pred_fallthru
        _
      // Predicated region
      $region250: #{tpu_custom_call.1} parent=12 // pred_check
        _
      $region251: #{tpu_custom_call.1} parent=12 // pred_check_branch
        %405 = sbr.rel (0) target = $region253
      $region252: #{tpu_custom_call.1} parent=12 // pred_region
        %406 = vsyncadd [#allocation3], 16
      $region253: #{tpu_custom_call.1} parent=12 // pred_fallthru
        _
      %s407 = sld [smem:[#allocation5 + $0x8]]
      %s408 = scalar_lea.vmem %s1, %s407
      %s409 = scalar_lea.vmem [#allocation2], 8
      %p411 = scmp.lt.u32.totalorder 1, 8
      %p412 = pneg %p411
      // Predicated region
      $region254: #{tpu_custom_call.1} parent=12 // pred_check
        _
      $region255: #{tpu_custom_call.1} parent=12 // pred_check_branch
        %414 = sbr.rel (%p411) target = $region257
      $region256: #{tpu_custom_call.1} parent=12 // pred_region
        %s429 = sand.u32 1, 7
        %p430 = scmp.eq.s32.totalorder %s429, 0
        %p431 = pneg %p430
        // Predicated region
        $region269: #{tpu_custom_call.1} parent=256 // pred_check
          _
        $region270: #{tpu_custom_call.1} parent=256 // pred_check_branch
          %433 = sbr.rel (%p430) target = $region272
        $region271: #{tpu_custom_call.1} parent=256 // pred_region
          %s434 = sand.u32 1, 7
          %s435 = ssub.s32 1, %s434
          %s436 = scalar_lea.vmem %s408, %s435
          %s437 = ssub.s32 1, %s434
          %s438 = scalar_lea.vmem %s409, %s437 [#allocation2]
          %s439 = sshllo.u32 0, %s434
          loop: start=0, step=1, limit=1
          $region273: #{tpu_custom_call.1} parent=271 // loop_pre_header
            _
          $region274: #{tpu_custom_call.1} parent=271 // loop_header
            %s441 = sphi 0, %s445
            %p442 = scmp.ge.s32.totalorder %s441, 1
            %s446 = sphi %s436, %s436
            %s447 = sphi %s438, %s438
          $region275: #{tpu_custom_call.1} parent=271 // loop_header_branch
            %444 = sbr.rel (%p442) target = $region279
          $region276: #{tpu_custom_call.1} parent=271 // loop_body
            %v448 = vld [vmem:[%s446] sm:%s439]
            %449 = vst [vmem:[%s447] sm:%s439] %v448
          $region277: #{tpu_custom_call.1} parent=271 // loop_footer
            %s445 = sadd.s32 1, %s441
          $region278: #{tpu_custom_call.1} parent=271 // loop_footer_branch
            %440 = sbr.rel target = $region274
          $region279: #{tpu_custom_call.1} parent=271 // loop_exit
            _
        $region272: #{tpu_custom_call.1} parent=256 // pred_fallthru
          _
      $region257: #{tpu_custom_call.1} parent=12 // pred_fallthru
        _
      // Predicated region
      $region258: #{tpu_custom_call.1} parent=12 // pred_check
        %p415 = pneg %p411
      $region259: #{tpu_custom_call.1} parent=12 // pred_check_branch
        %417 = sbr.rel (%p415) target = $region261
      $region260: #{tpu_custom_call.1} parent=12 // pred_region
        %s418 = sshllo.u32 0, 1
        loop: start=0, step=1, limit=1
        $region262: #{tpu_custom_call.1} parent=260 // loop_pre_header
          _
        $region263: #{tpu_custom_call.1} parent=260 // loop_header
          %s420 = sphi 0, %s424
          %p421 = scmp.ge.s32.totalorder %s420, 1
          %s425 = sphi %s408, %s408
          %s426 = sphi %s409, %s409
        $region264: #{tpu_custom_call.1} parent=260 // loop_header_branch
          %423 = sbr.rel (%p421) target = $region268
        $region265: #{tpu_custom_call.1} parent=260 // loop_body
          %v427 = vld [vmem:[%s425] sm:%s418]
          %428 = vst [vmem:[%s426] sm:%s418] %v427
        $region266: #{tpu_custom_call.1} parent=260 // loop_footer
          %s424 = sadd.s32 1, %s420
        $region267: #{tpu_custom_call.1} parent=260 // loop_footer_branch
          %419 = sbr.rel target = $region263
        $region268: #{tpu_custom_call.1} parent=260 // loop_exit
          _
      $region261: #{tpu_custom_call.1} parent=12 // pred_fallthru
        _
      // Predicated region
      $region280: #{tpu_custom_call.1} parent=12 // pred_check
        _
      $region281: #{tpu_custom_call.1} parent=12 // pred_check_branch
        %452 = sbr.rel (0) target = $region283
      $region282: #{tpu_custom_call.1} parent=12 // pred_region
        %453 = vsyncadd [#allocation3], 16
      $region283: #{tpu_custom_call.1} parent=12 // pred_fallthru
        _
      %s454 = sld [smem:[#allocation5 + $0x9]]
      %s455 = scalar_lea.vmem %s1, %s454
      %s456 = scalar_lea.vmem [#allocation2], 9
      %p458 = scmp.lt.u32.totalorder 1, 8
      %p459 = pneg %p458
      // Predicated region
      $region284: #{tpu_custom_call.1} parent=12 // pred_check
        _
      $region285: #{tpu_custom_call.1} parent=12 // pred_check_branch
        %461 = sbr.rel (%p458) target = $region287
      $region286: #{tpu_custom_call.1} parent=12 // pred_region
        %s476 = sand.u32 1, 7
        %p477 = scmp.eq.s32.totalorder %s476, 0
        %p478 = pneg %p477
        // Predicated region
        $region299: #{tpu_custom_call.1} parent=286 // pred_check
          _
        $region300: #{tpu_custom_call.1} parent=286 // pred_check_branch
          %480 = sbr.rel (%p477) target = $region302
        $region301: #{tpu_custom_call.1} parent=286 // pred_region
          %s481 = sand.u32 1, 7
          %s482 = ssub.s32 1, %s481
          %s483 = scalar_lea.vmem %s455, %s482
          %s484 = ssub.s32 1, %s481
          %s485 = scalar_lea.vmem %s456, %s484 [#allocation2]
          %s486 = sshllo.u32 0, %s481
          loop: start=0, step=1, limit=1
          $region303: #{tpu_custom_call.1} parent=301 // loop_pre_header
            _
          $region304: #{tpu_custom_call.1} parent=301 // loop_header
            %s488 = sphi 0, %s492
            %p489 = scmp.ge.s32.totalorder %s488, 1
            %s493 = sphi %s483, %s483
            %s494 = sphi %s485, %s485
          $region305: #{tpu_custom_call.1} parent=301 // loop_header_branch
            %491 = sbr.rel (%p489) target = $region309
          $region306: #{tpu_custom_call.1} parent=301 // loop_body
            %v495 = vld [vmem:[%s493] sm:%s486]
            %496 = vst [vmem:[%s494] sm:%s486] %v495
          $region307: #{tpu_custom_call.1} parent=301 // loop_footer
            %s492 = sadd.s32 1, %s488
          $region308: #{tpu_custom_call.1} parent=301 // loop_footer_branch
            %487 = sbr.rel target = $region304
          $region309: #{tpu_custom_call.1} parent=301 // loop_exit
            _
        $region302: #{tpu_custom_call.1} parent=286 // pred_fallthru
          _
      $region287: #{tpu_custom_call.1} parent=12 // pred_fallthru
        _
      // Predicated region
      $region288: #{tpu_custom_call.1} parent=12 // pred_check
        %p462 = pneg %p458
      $region289: #{tpu_custom_call.1} parent=12 // pred_check_branch
        %464 = sbr.rel (%p462) target = $region291
      $region290: #{tpu_custom_call.1} parent=12 // pred_region
        %s465 = sshllo.u32 0, 1
        loop: start=0, step=1, limit=1
        $region292: #{tpu_custom_call.1} parent=290 // loop_pre_header
          _
        $region293: #{tpu_custom_call.1} parent=290 // loop_header
          %s467 = sphi 0, %s471
          %p468 = scmp.ge.s32.totalorder %s467, 1
          %s472 = sphi %s455, %s455
          %s473 = sphi %s456, %s456
        $region294: #{tpu_custom_call.1} parent=290 // loop_header_branch
          %470 = sbr.rel (%p468) target = $region298
        $region295: #{tpu_custom_call.1} parent=290 // loop_body
          %v474 = vld [vmem:[%s472] sm:%s465]
          %475 = vst [vmem:[%s473] sm:%s465] %v474
        $region296: #{tpu_custom_call.1} parent=290 // loop_footer
          %s471 = sadd.s32 1, %s467
        $region297: #{tpu_custom_call.1} parent=290 // loop_footer_branch
          %466 = sbr.rel target = $region293
        $region298: #{tpu_custom_call.1} parent=290 // loop_exit
          _
      $region291: #{tpu_custom_call.1} parent=12 // pred_fallthru
        _
      // Predicated region
      $region310: #{tpu_custom_call.1} parent=12 // pred_check
        _
      $region311: #{tpu_custom_call.1} parent=12 // pred_check_branch
        %499 = sbr.rel (0) target = $region313
      $region312: #{tpu_custom_call.1} parent=12 // pred_region
        %500 = vsyncadd [#allocation3], 16
      $region313: #{tpu_custom_call.1} parent=12 // pred_fallthru
        _
      %s501 = sld [smem:[#allocation5 + $0xa]]
      %s502 = scalar_lea.vmem %s1, %s501
      %s503 = scalar_lea.vmem [#allocation2], 10
      %p505 = scmp.lt.u32.totalorder 1, 8
      %p506 = pneg %p505
      // Predicated region
      $region314: #{tpu_custom_call.1} parent=12 // pred_check
        _
      $region315: #{tpu_custom_call.1} parent=12 // pred_check_branch
        %508 = sbr.rel (%p505) target = $region317
      $region316: #{tpu_custom_call.1} parent=12 // pred_region
        %s523 = sand.u32 1, 7
        %p524 = scmp.eq.s32.totalorder %s523, 0
        %p525 = pneg %p524
        // Predicated region
        $region329: #{tpu_custom_call.1} parent=316 // pred_check
          _
        $region330: #{tpu_custom_call.1} parent=316 // pred_check_branch
          %527 = sbr.rel (%p524) target = $region332
        $region331: #{tpu_custom_call.1} parent=316 // pred_region
          %s528 = sand.u32 1, 7
          %s529 = ssub.s32 1, %s528
          %s530 = scalar_lea.vmem %s502, %s529
          %s531 = ssub.s32 1, %s528
          %s532 = scalar_lea.vmem %s503, %s531 [#allocation2]
          %s533 = sshllo.u32 0, %s528
          loop: start=0, step=1, limit=1
          $region333: #{tpu_custom_call.1} parent=331 // loop_pre_header
            _
          $region334: #{tpu_custom_call.1} parent=331 // loop_header
            %s535 = sphi 0, %s539
            %p536 = scmp.ge.s32.totalorder %s535, 1
            %s540 = sphi %s530, %s530
            %s541 = sphi %s532, %s532
          $region335: #{tpu_custom_call.1} parent=331 // loop_header_branch
            %538 = sbr.rel (%p536) target = $region339
          $region336: #{tpu_custom_call.1} parent=331 // loop_body
            %v542 = vld [vmem:[%s540] sm:%s533]
            %543 = vst [vmem:[%s541] sm:%s533] %v542
          $region337: #{tpu_custom_call.1} parent=331 // loop_footer
            %s539 = sadd.s32 1, %s535
          $region338: #{tpu_custom_call.1} parent=331 // loop_footer_branch
            %534 = sbr.rel target = $region334
          $region339: #{tpu_custom_call.1} parent=331 // loop_exit
            _
        $region332: #{tpu_custom_call.1} parent=316 // pred_fallthru
          _
      $region317: #{tpu_custom_call.1} parent=12 // pred_fallthru
        _
      // Predicated region
      $region318: #{tpu_custom_call.1} parent=12 // pred_check
        %p509 = pneg %p505
      $region319: #{tpu_custom_call.1} parent=12 // pred_check_branch
        %511 = sbr.rel (%p509) target = $region321
      $region320: #{tpu_custom_call.1} parent=12 // pred_region
        %s512 = sshllo.u32 0, 1
        loop: start=0, step=1, limit=1
        $region322: #{tpu_custom_call.1} parent=320 // loop_pre_header
          _
        $region323: #{tpu_custom_call.1} parent=320 // loop_header
          %s514 = sphi 0, %s518
          %p515 = scmp.ge.s32.totalorder %s514, 1
          %s519 = sphi %s502, %s502
          %s520 = sphi %s503, %s503
        $region324: #{tpu_custom_call.1} parent=320 // loop_header_branch
          %517 = sbr.rel (%p515) target = $region328
        $region325: #{tpu_custom_call.1} parent=320 // loop_body
          %v521 = vld [vmem:[%s519] sm:%s512]
          %522 = vst [vmem:[%s520] sm:%s512] %v521
        $region326: #{tpu_custom_call.1} parent=320 // loop_footer
          %s518 = sadd.s32 1, %s514
        $region327: #{tpu_custom_call.1} parent=320 // loop_footer_branch
          %513 = sbr.rel target = $region323
        $region328: #{tpu_custom_call.1} parent=320 // loop_exit
          _
      $region321: #{tpu_custom_call.1} parent=12 // pred_fallthru
        _
      // Predicated region
      $region340: #{tpu_custom_call.1} parent=12 // pred_check
        _
      $region341: #{tpu_custom_call.1} parent=12 // pred_check_branch
        %546 = sbr.rel (0) target = $region343
      $region342: #{tpu_custom_call.1} parent=12 // pred_region
        %547 = vsyncadd [#allocation3], 16
      $region343: #{tpu_custom_call.1} parent=12 // pred_fallthru
        _
      %s548 = sld [smem:[#allocation5 + $0xb]]
      %s549 = scalar_lea.vmem %s1, %s548
      %s550 = scalar_lea.vmem [#allocation2], 11
      %p552 = scmp.lt.u32.totalorder 1, 8
      %p553 = pneg %p552
      // Predicated region
      $region344: #{tpu_custom_call.1} parent=12 // pred_check
        _
      $region345: #{tpu_custom_call.1} parent=12 // pred_check_branch
        %555 = sbr.rel (%p552) target = $region347
      $region346: #{tpu_custom_call.1} parent=12 // pred_region
        %s570 = sand.u32 1, 7
        %p571 = scmp.eq.s32.totalorder %s570, 0
        %p572 = pneg %p571
        // Predicated region
        $region359: #{tpu_custom_call.1} parent=346 // pred_check
          _
        $region360: #{tpu_custom_call.1} parent=346 // pred_check_branch
          %574 = sbr.rel (%p571) target = $region362
        $region361: #{tpu_custom_call.1} parent=346 // pred_region
          %s575 = sand.u32 1, 7
          %s576 = ssub.s32 1, %s575
          %s577 = scalar_lea.vmem %s549, %s576
          %s578 = ssub.s32 1, %s575
          %s579 = scalar_lea.vmem %s550, %s578 [#allocation2]
          %s580 = sshllo.u32 0, %s575
          loop: start=0, step=1, limit=1
          $region363: #{tpu_custom_call.1} parent=361 // loop_pre_header
            _
          $region364: #{tpu_custom_call.1} parent=361 // loop_header
            %s582 = sphi 0, %s586
            %p583 = scmp.ge.s32.totalorder %s582, 1
            %s587 = sphi %s577, %s577
            %s588 = sphi %s579, %s579
          $region365: #{tpu_custom_call.1} parent=361 // loop_header_branch
            %585 = sbr.rel (%p583) target = $region369
          $region366: #{tpu_custom_call.1} parent=361 // loop_body
            %v589 = vld [vmem:[%s587] sm:%s580]
            %590 = vst [vmem:[%s588] sm:%s580] %v589
          $region367: #{tpu_custom_call.1} parent=361 // loop_footer
            %s586 = sadd.s32 1, %s582
          $region368: #{tpu_custom_call.1} parent=361 // loop_footer_branch
            %581 = sbr.rel target = $region364
          $region369: #{tpu_custom_call.1} parent=361 // loop_exit
            _
        $region362: #{tpu_custom_call.1} parent=346 // pred_fallthru
          _
      $region347: #{tpu_custom_call.1} parent=12 // pred_fallthru
        _
      // Predicated region
      $region348: #{tpu_custom_call.1} parent=12 // pred_check
        %p556 = pneg %p552
      $region349: #{tpu_custom_call.1} parent=12 // pred_check_branch
        %558 = sbr.rel (%p556) target = $region351
      $region350: #{tpu_custom_call.1} parent=12 // pred_region
        %s559 = sshllo.u32 0, 1
        loop: start=0, step=1, limit=1
        $region352: #{tpu_custom_call.1} parent=350 // loop_pre_header
          _
        $region353: #{tpu_custom_call.1} parent=350 // loop_header
          %s561 = sphi 0, %s565
          %p562 = scmp.ge.s32.totalorder %s561, 1
          %s566 = sphi %s549, %s549
          %s567 = sphi %s550, %s550
        $region354: #{tpu_custom_call.1} parent=350 // loop_header_branch
          %564 = sbr.rel (%p562) target = $region358
        $region355: #{tpu_custom_call.1} parent=350 // loop_body
          %v568 = vld [vmem:[%s566] sm:%s559]
          %569 = vst [vmem:[%s567] sm:%s559] %v568
        $region356: #{tpu_custom_call.1} parent=350 // loop_footer
          %s565 = sadd.s32 1, %s561
        $region357: #{tpu_custom_call.1} parent=350 // loop_footer_branch
          %560 = sbr.rel target = $region353
        $region358: #{tpu_custom_call.1} parent=350 // loop_exit
          _
      $region351: #{tpu_custom_call.1} parent=12 // pred_fallthru
        _
      // Predicated region
      $region370: #{tpu_custom_call.1} parent=12 // pred_check
        _
      $region371: #{tpu_custom_call.1} parent=12 // pred_check_branch
        %593 = sbr.rel (0) target = $region373
      $region372: #{tpu_custom_call.1} parent=12 // pred_region
        %594 = vsyncadd [#allocation3], 16
      $region373: #{tpu_custom_call.1} parent=12 // pred_fallthru
        _
      %s595 = sld [smem:[#allocation5 + $0xc]]
      %s596 = scalar_lea.vmem %s1, %s595
      %s597 = scalar_lea.vmem [#allocation2], 12
      %p599 = scmp.lt.u32.totalorder 1, 8
      %p600 = pneg %p599
      // Predicated region
      $region374: #{tpu_custom_call.1} parent=12 // pred_check
        _
      $region375: #{tpu_custom_call.1} parent=12 // pred_check_branch
        %602 = sbr.rel (%p599) target = $region377
      $region376: #{tpu_custom_call.1} parent=12 // pred_region
        %s617 = sand.u32 1, 7
        %p618 = scmp.eq.s32.totalorder %s617, 0
        %p619 = pneg %p618
        // Predicated region
        $region389: #{tpu_custom_call.1} parent=376 // pred_check
          _
        $region390: #{tpu_custom_call.1} parent=376 // pred_check_branch
          %621 = sbr.rel (%p618) target = $region392
        $region391: #{tpu_custom_call.1} parent=376 // pred_region
          %s622 = sand.u32 1, 7
          %s623 = ssub.s32 1, %s622
          %s624 = scalar_lea.vmem %s596, %s623
          %s625 = ssub.s32 1, %s622
          %s626 = scalar_lea.vmem %s597, %s625 [#allocation2]
          %s627 = sshllo.u32 0, %s622
          loop: start=0, step=1, limit=1
          $region393: #{tpu_custom_call.1} parent=391 // loop_pre_header
            _
          $region394: #{tpu_custom_call.1} parent=391 // loop_header
            %s629 = sphi 0, %s633
            %p630 = scmp.ge.s32.totalorder %s629, 1
            %s634 = sphi %s624, %s624
            %s635 = sphi %s626, %s626
          $region395: #{tpu_custom_call.1} parent=391 // loop_header_branch
            %632 = sbr.rel (%p630) target = $region399
          $region396: #{tpu_custom_call.1} parent=391 // loop_body
            %v636 = vld [vmem:[%s634] sm:%s627]
            %637 = vst [vmem:[%s635] sm:%s627] %v636
          $region397: #{tpu_custom_call.1} parent=391 // loop_footer
            %s633 = sadd.s32 1, %s629
          $region398: #{tpu_custom_call.1} parent=391 // loop_footer_branch
            %628 = sbr.rel target = $region394
          $region399: #{tpu_custom_call.1} parent=391 // loop_exit
            _
        $region392: #{tpu_custom_call.1} parent=376 // pred_fallthru
          _
      $region377: #{tpu_custom_call.1} parent=12 // pred_fallthru
        _
      // Predicated region
      $region378: #{tpu_custom_call.1} parent=12 // pred_check
        %p603 = pneg %p599
      $region379: #{tpu_custom_call.1} parent=12 // pred_check_branch
        %605 = sbr.rel (%p603) target = $region381
      $region380: #{tpu_custom_call.1} parent=12 // pred_region
        %s606 = sshllo.u32 0, 1
        loop: start=0, step=1, limit=1
        $region382: #{tpu_custom_call.1} parent=380 // loop_pre_header
          _
        $region383: #{tpu_custom_call.1} parent=380 // loop_header
          %s608 = sphi 0, %s612
          %p609 = scmp.ge.s32.totalorder %s608, 1
          %s613 = sphi %s596, %s596
          %s614 = sphi %s597, %s597
        $region384: #{tpu_custom_call.1} parent=380 // loop_header_branch
          %611 = sbr.rel (%p609) target = $region388
        $region385: #{tpu_custom_call.1} parent=380 // loop_body
          %v615 = vld [vmem:[%s613] sm:%s606]
          %616 = vst [vmem:[%s614] sm:%s606] %v615
        $region386: #{tpu_custom_call.1} parent=380 // loop_footer
          %s612 = sadd.s32 1, %s608
        $region387: #{tpu_custom_call.1} parent=380 // loop_footer_branch
          %607 = sbr.rel target = $region383
        $region388: #{tpu_custom_call.1} parent=380 // loop_exit
          _
      $region381: #{tpu_custom_call.1} parent=12 // pred_fallthru
        _
      // Predicated region
      $region400: #{tpu_custom_call.1} parent=12 // pred_check
        _
      $region401: #{tpu_custom_call.1} parent=12 // pred_check_branch
        %640 = sbr.rel (0) target = $region403
      $region402: #{tpu_custom_call.1} parent=12 // pred_region
        %641 = vsyncadd [#allocation3], 16
      $region403: #{tpu_custom_call.1} parent=12 // pred_fallthru
        _
      %s642 = sld [smem:[#allocation5 + $0xd]]
      %s643 = scalar_lea.vmem %s1, %s642
      %s644 = scalar_lea.vmem [#allocation2], 13
      %p646 = scmp.lt.u32.totalorder 1, 8
      %p647 = pneg %p646
      // Predicated region
      $region404: #{tpu_custom_call.1} parent=12 // pred_check
        _
      $region405: #{tpu_custom_call.1} parent=12 // pred_check_branch
        %649 = sbr.rel (%p646) target = $region407
      $region406: #{tpu_custom_call.1} parent=12 // pred_region
        %s664 = sand.u32 1, 7
        %p665 = scmp.eq.s32.totalorder %s664, 0
        %p666 = pneg %p665
        // Predicated region
        $region419: #{tpu_custom_call.1} parent=406 // pred_check
          _
        $region420: #{tpu_custom_call.1} parent=406 // pred_check_branch
          %668 = sbr.rel (%p665) target = $region422
        $region421: #{tpu_custom_call.1} parent=406 // pred_region
          %s669 = sand.u32 1, 7
          %s670 = ssub.s32 1, %s669
          %s671 = scalar_lea.vmem %s643, %s670
          %s672 = ssub.s32 1, %s669
          %s673 = scalar_lea.vmem %s644, %s672 [#allocation2]
          %s674 = sshllo.u32 0, %s669
          loop: start=0, step=1, limit=1
          $region423: #{tpu_custom_call.1} parent=421 // loop_pre_header
            _
          $region424: #{tpu_custom_call.1} parent=421 // loop_header
            %s676 = sphi 0, %s680
            %p677 = scmp.ge.s32.totalorder %s676, 1
            %s681 = sphi %s671, %s671
            %s682 = sphi %s673, %s673
          $region425: #{tpu_custom_call.1} parent=421 // loop_header_branch
            %679 = sbr.rel (%p677) target = $region429
          $region426: #{tpu_custom_call.1} parent=421 // loop_body
            %v683 = vld [vmem:[%s681] sm:%s674]
            %684 = vst [vmem:[%s682] sm:%s674] %v683
          $region427: #{tpu_custom_call.1} parent=421 // loop_footer
            %s680 = sadd.s32 1, %s676
          $region428: #{tpu_custom_call.1} parent=421 // loop_footer_branch
            %675 = sbr.rel target = $region424
          $region429: #{tpu_custom_call.1} parent=421 // loop_exit
            _
        $region422: #{tpu_custom_call.1} parent=406 // pred_fallthru
          _
      $region407: #{tpu_custom_call.1} parent=12 // pred_fallthru
        _
      // Predicated region
      $region408: #{tpu_custom_call.1} parent=12 // pred_check
        %p650 = pneg %p646
      $region409: #{tpu_custom_call.1} parent=12 // pred_check_branch
        %652 = sbr.rel (%p650) target = $region411
      $region410: #{tpu_custom_call.1} parent=12 // pred_region
        %s653 = sshllo.u32 0, 1
        loop: start=0, step=1, limit=1
        $region412: #{tpu_custom_call.1} parent=410 // loop_pre_header
          _
        $region413: #{tpu_custom_call.1} parent=410 // loop_header
          %s655 = sphi 0, %s659
          %p656 = scmp.ge.s32.totalorder %s655, 1
          %s660 = sphi %s643, %s643
          %s661 = sphi %s644, %s644
        $region414: #{tpu_custom_call.1} parent=410 // loop_header_branch
          %658 = sbr.rel (%p656) target = $region418
        $region415: #{tpu_custom_call.1} parent=410 // loop_body
          %v662 = vld [vmem:[%s660] sm:%s653]
          %663 = vst [vmem:[%s661] sm:%s653] %v662
        $region416: #{tpu_custom_call.1} parent=410 // loop_footer
          %s659 = sadd.s32 1, %s655
        $region417: #{tpu_custom_call.1} parent=410 // loop_footer_branch
          %654 = sbr.rel target = $region413
        $region418: #{tpu_custom_call.1} parent=410 // loop_exit
          _
      $region411: #{tpu_custom_call.1} parent=12 // pred_fallthru
        _
      // Predicated region
      $region430: #{tpu_custom_call.1} parent=12 // pred_check
        _
      $region431: #{tpu_custom_call.1} parent=12 // pred_check_branch
        %687 = sbr.rel (0) target = $region433
      $region432: #{tpu_custom_call.1} parent=12 // pred_region
        %688 = vsyncadd [#allocation3], 16
      $region433: #{tpu_custom_call.1} parent=12 // pred_fallthru
        _
      %s689 = sld [smem:[#allocation5 + $0xe]]
      %s690 = scalar_lea.vmem %s1, %s689
      %s691 = scalar_lea.vmem [#allocation2], 14
      %p693 = scmp.lt.u32.totalorder 1, 8
      %p694 = pneg %p693
      // Predicated region
      $region434: #{tpu_custom_call.1} parent=12 // pred_check
        _
      $region435: #{tpu_custom_call.1} parent=12 // pred_check_branch
        %696 = sbr.rel (%p693) target = $region437
      $region436: #{tpu_custom_call.1} parent=12 // pred_region
        %s711 = sand.u32 1, 7
        %p712 = scmp.eq.s32.totalorder %s711, 0
        %p713 = pneg %p712
        // Predicated region
        $region449: #{tpu_custom_call.1} parent=436 // pred_check
          _
        $region450: #{tpu_custom_call.1} parent=436 // pred_check_branch
          %715 = sbr.rel (%p712) target = $region452
        $region451: #{tpu_custom_call.1} parent=436 // pred_region
          %s716 = sand.u32 1, 7
          %s717 = ssub.s32 1, %s716
          %s718 = scalar_lea.vmem %s690, %s717
          %s719 = ssub.s32 1, %s716
          %s720 = scalar_lea.vmem %s691, %s719 [#allocation2]
          %s721 = sshllo.u32 0, %s716
          loop: start=0, step=1, limit=1
          $region453: #{tpu_custom_call.1} parent=451 // loop_pre_header
            _
          $region454: #{tpu_custom_call.1} parent=451 // loop_header
            %s723 = sphi 0, %s727
            %p724 = scmp.ge.s32.totalorder %s723, 1
            %s728 = sphi %s718, %s718
            %s729 = sphi %s720, %s720
          $region455: #{tpu_custom_call.1} parent=451 // loop_header_branch
            %726 = sbr.rel (%p724) target = $region459
          $region456: #{tpu_custom_call.1} parent=451 // loop_body
            %v730 = vld [vmem:[%s728] sm:%s721]
            %731 = vst [vmem:[%s729] sm:%s721] %v730
          $region457: #{tpu_custom_call.1} parent=451 // loop_footer
            %s727 = sadd.s32 1, %s723
          $region458: #{tpu_custom_call.1} parent=451 // loop_footer_branch
            %722 = sbr.rel target = $region454
          $region459: #{tpu_custom_call.1} parent=451 // loop_exit
            _
        $region452: #{tpu_custom_call.1} parent=436 // pred_fallthru
          _
      $region437: #{tpu_custom_call.1} parent=12 // pred_fallthru
        _
      // Predicated region
      $region438: #{tpu_custom_call.1} parent=12 // pred_check
        %p697 = pneg %p693
      $region439: #{tpu_custom_call.1} parent=12 // pred_check_branch
        %699 = sbr.rel (%p697) target = $region441
      $region440: #{tpu_custom_call.1} parent=12 // pred_region
        %s700 = sshllo.u32 0, 1
        loop: start=0, step=1, limit=1
        $region442: #{tpu_custom_call.1} parent=440 // loop_pre_header
          _
        $region443: #{tpu_custom_call.1} parent=440 // loop_header
          %s702 = sphi 0, %s706
          %p703 = scmp.ge.s32.totalorder %s702, 1
          %s707 = sphi %s690, %s690
          %s708 = sphi %s691, %s691
        $region444: #{tpu_custom_call.1} parent=440 // loop_header_branch
          %705 = sbr.rel (%p703) target = $region448
        $region445: #{tpu_custom_call.1} parent=440 // loop_body
          %v709 = vld [vmem:[%s707] sm:%s700]
          %710 = vst [vmem:[%s708] sm:%s700] %v709
        $region446: #{tpu_custom_call.1} parent=440 // loop_footer
          %s706 = sadd.s32 1, %s702
        $region447: #{tpu_custom_call.1} parent=440 // loop_footer_branch
          %701 = sbr.rel target = $region443
        $region448: #{tpu_custom_call.1} parent=440 // loop_exit
          _
      $region441: #{tpu_custom_call.1} parent=12 // pred_fallthru
        _
      // Predicated region
      $region460: #{tpu_custom_call.1} parent=12 // pred_check
        _
      $region461: #{tpu_custom_call.1} parent=12 // pred_check_branch
        %734 = sbr.rel (0) target = $region463
      $region462: #{tpu_custom_call.1} parent=12 // pred_region
        %735 = vsyncadd [#allocation3], 16
      $region463: #{tpu_custom_call.1} parent=12 // pred_fallthru
        _
      %s736 = sld [smem:[#allocation5 + $0xf]]
      %s737 = scalar_lea.vmem %s1, %s736
      %s738 = scalar_lea.vmem [#allocation2], 15
      %p740 = scmp.lt.u32.totalorder 1, 8
      %p741 = pneg %p740
      // Predicated region
      $region464: #{tpu_custom_call.1} parent=12 // pred_check
        _
      $region465: #{tpu_custom_call.1} parent=12 // pred_check_branch
        %743 = sbr.rel (%p740) target = $region467
      $region466: #{tpu_custom_call.1} parent=12 // pred_region
        %s758 = sand.u32 1, 7
        %p759 = scmp.eq.s32.totalorder %s758, 0
        %p760 = pneg %p759
        // Predicated region
        $region479: #{tpu_custom_call.1} parent=466 // pred_check
          _
        $region480: #{tpu_custom_call.1} parent=466 // pred_check_branch
          %762 = sbr.rel (%p759) target = $region482
        $region481: #{tpu_custom_call.1} parent=466 // pred_region
          %s763 = sand.u32 1, 7
          %s764 = ssub.s32 1, %s763
          %s765 = scalar_lea.vmem %s737, %s764
          %s766 = ssub.s32 1, %s763
          %s767 = scalar_lea.vmem %s738, %s766 [#allocation2]
          %s768 = sshllo.u32 0, %s763
          loop: start=0, step=1, limit=1
          $region483: #{tpu_custom_call.1} parent=481 // loop_pre_header
            _
          $region484: #{tpu_custom_call.1} parent=481 // loop_header
            %s770 = sphi 0, %s774
            %p771 = scmp.ge.s32.totalorder %s770, 1
            %s775 = sphi %s765, %s765
            %s776 = sphi %s767, %s767
          $region485: #{tpu_custom_call.1} parent=481 // loop_header_branch
            %773 = sbr.rel (%p771) target = $region489
          $region486: #{tpu_custom_call.1} parent=481 // loop_body
            %v777 = vld [vmem:[%s775] sm:%s768]
            %778 = vst [vmem:[%s776] sm:%s768] %v777
          $region487: #{tpu_custom_call.1} parent=481 // loop_footer
            %s774 = sadd.s32 1, %s770
          $region488: #{tpu_custom_call.1} parent=481 // loop_footer_branch
            %769 = sbr.rel target = $region484
          $region489: #{tpu_custom_call.1} parent=481 // loop_exit
            _
        $region482: #{tpu_custom_call.1} parent=466 // pred_fallthru
          _
      $region467: #{tpu_custom_call.1} parent=12 // pred_fallthru
        _
      // Predicated region
      $region468: #{tpu_custom_call.1} parent=12 // pred_check
        %p744 = pneg %p740
      $region469: #{tpu_custom_call.1} parent=12 // pred_check_branch
        %746 = sbr.rel (%p744) target = $region471
      $region470: #{tpu_custom_call.1} parent=12 // pred_region
        %s747 = sshllo.u32 0, 1
        loop: start=0, step=1, limit=1
        $region472: #{tpu_custom_call.1} parent=470 // loop_pre_header
          _
        $region473: #{tpu_custom_call.1} parent=470 // loop_header
          %s749 = sphi 0, %s753
          %p750 = scmp.ge.s32.totalorder %s749, 1
          %s754 = sphi %s737, %s737
          %s755 = sphi %s738, %s738
        $region474: #{tpu_custom_call.1} parent=470 // loop_header_branch
          %752 = sbr.rel (%p750) target = $region478
        $region475: #{tpu_custom_call.1} parent=470 // loop_body
          %v756 = vld [vmem:[%s754] sm:%s747]
          %757 = vst [vmem:[%s755] sm:%s747] %v756
        $region476: #{tpu_custom_call.1} parent=470 // loop_footer
          %s753 = sadd.s32 1, %s749
        $region477: #{tpu_custom_call.1} parent=470 // loop_footer_branch
          %748 = sbr.rel target = $region473
        $region478: #{tpu_custom_call.1} parent=470 // loop_exit
          _
      $region471: #{tpu_custom_call.1} parent=12 // pred_fallthru
        _
      // Predicated region
      $region490: #{tpu_custom_call.1} parent=12 // pred_check
        _
      $region491: #{tpu_custom_call.1} parent=12 // pred_check_branch
        %781 = sbr.rel (0) target = $region493
      $region492: #{tpu_custom_call.1} parent=12 // pred_region
        %782 = vsyncadd [#allocation3], 16
      $region493: #{tpu_custom_call.1} parent=12 // pred_fallthru
        _
    $region13: #{tpu_custom_call.1} parent=1 // pred_fallthru
      _
    %s783 = sadd.s32 0, 1
    %p784 = scmp.lt.s32.totalorder %s783, 1
    // Predicated region
    $region494: #{tpu_custom_call.1} parent=1 // pred_check
      %p785 = pneg %p784
    $region495: #{tpu_custom_call.1} parent=1 // pred_check_branch
      %787 = sbr.rel (%p785) target = $region497
    $region496: #{tpu_custom_call.1} parent=1 // pred_region
      %p788 = scmp.lt.s32.totalorder %s783, 0
      %s789 = ssub.s32 0, %s783
      %s790 = scalar_select %p788, %s789, %s783
      %s791 = sand.u32 %s790, 1
      %s792 = ssub.s32 0, %s791
      %s793 = scalar_select %p788, %s792, %s791
      %p794 = scmp.ne.s32.totalorder %s793, 0
      %p795 = scmp.lt.s32.totalorder %s793, 0
      %p796 = pnand %p795, %p794
      %p797 = pneg %p796
      %s798 = sadd.s32 %s793, 2
      %s799 = scalar_select %p797, %s798, %s793
      %s800 = smul.u32 %s783, 16
      %s801 = smul.u32 %s799, 16
      %s802 = sld [smem:[#allocation5 + %s800]]
      %s803 = scalar_lea.vmem %s1, %s802
      %s804 = scalar_lea.vmem [#allocation2], %s801
      %s805 = scalar_lea.sflag [#allocation3], %s799
      %p807 = scmp.lt.u32.totalorder 1, 8
      %p808 = pneg %p807
      // Predicated region
      $region498: #{tpu_custom_call.1} parent=496 // pred_check
        _
      $region499: #{tpu_custom_call.1} parent=496 // pred_check_branch
        %810 = sbr.rel (%p807) target = $region501
      $region500: #{tpu_custom_call.1} parent=496 // pred_region
        %s825 = sand.u32 1, 7
        %p826 = scmp.eq.s32.totalorder %s825, 0
        %p827 = pneg %p826
        // Predicated region
        $region513: #{tpu_custom_call.1} parent=500 // pred_check
          _
        $region514: #{tpu_custom_call.1} parent=500 // pred_check_branch
          %829 = sbr.rel (%p826) target = $region516
        $region515: #{tpu_custom_call.1} parent=500 // pred_region
          %s830 = sand.u32 1, 7
          %s831 = ssub.s32 1, %s830
          %s832 = scalar_lea.vmem %s803, %s831
          %s833 = ssub.s32 1, %s830
          %s834 = scalar_lea.vmem %s804, %s833 [#allocation2]
          %s835 = sshllo.u32 0, %s830
          loop: start=0, step=1, limit=1
          $region517: #{tpu_custom_call.1} parent=515 // loop_pre_header
            _
          $region518: #{tpu_custom_call.1} parent=515 // loop_header
            %s837 = sphi 0, %s841
            %p838 = scmp.ge.s32.totalorder %s837, 1
            %s842 = sphi %s832, %s832
            %s843 = sphi %s834, %s834
          $region519: #{tpu_custom_call.1} parent=515 // loop_header_branch
            %840 = sbr.rel (%p838) target = $region523
          $region520: #{tpu_custom_call.1} parent=515 // loop_body
            %v844 = vld [vmem:[%s842] sm:%s835]
            %845 = vst [vmem:[%s843] sm:%s835] %v844
          $region521: #{tpu_custom_call.1} parent=515 // loop_footer
            %s841 = sadd.s32 1, %s837
          $region522: #{tpu_custom_call.1} parent=515 // loop_footer_branch
            %836 = sbr.rel target = $region518
          $region523: #{tpu_custom_call.1} parent=515 // loop_exit
            _
        $region516: #{tpu_custom_call.1} parent=500 // pred_fallthru
          _
      $region501: #{tpu_custom_call.1} parent=496 // pred_fallthru
        _
      // Predicated region
      $region502: #{tpu_custom_call.1} parent=496 // pred_check
        %p811 = pneg %p807
      $region503: #{tpu_custom_call.1} parent=496 // pred_check_branch
        %813 = sbr.rel (%p811) target = $region505
      $region504: #{tpu_custom_call.1} parent=496 // pred_region
        %s814 = sshllo.u32 0, 1
        loop: start=0, step=1, limit=1
        $region506: #{tpu_custom_call.1} parent=504 // loop_pre_header
          _
        $region507: #{tpu_custom_call.1} parent=504 // loop_header
          %s816 = sphi 0, %s820
          %p817 = scmp.ge.s32.totalorder %s816, 1
          %s821 = sphi %s803, %s803
          %s822 = sphi %s804, %s804
        $region508: #{tpu_custom_call.1} parent=504 // loop_header_branch
          %819 = sbr.rel (%p817) target = $region512
        $region509: #{tpu_custom_call.1} parent=504 // loop_body
          %v823 = vld [vmem:[%s821] sm:%s814]
          %824 = vst [vmem:[%s822] sm:%s814] %v823
        $region510: #{tpu_custom_call.1} parent=504 // loop_footer
          %s820 = sadd.s32 1, %s816
        $region511: #{tpu_custom_call.1} parent=504 // loop_footer_branch
          %815 = sbr.rel target = $region507
        $region512: #{tpu_custom_call.1} parent=504 // loop_exit
          _
      $region505: #{tpu_custom_call.1} parent=496 // pred_fallthru
        _
      // Predicated region
      $region524: #{tpu_custom_call.1} parent=496 // pred_check
        _
      $region525: #{tpu_custom_call.1} parent=496 // pred_check_branch
        %848 = sbr.rel (0) target = $region527
      $region526: #{tpu_custom_call.1} parent=496 // pred_region
        %849 = vsyncadd %s805, 16
      $region527: #{tpu_custom_call.1} parent=496 // pred_fallthru
        _
      %s850 = sadd.s32 %s800, 1
      %s851 = sld [smem:[#allocation5 + %s850]]
      %s852 = sadd.s32 %s801, 1
      %s853 = scalar_lea.vmem %s1, %s851
      %s854 = scalar_lea.vmem [#allocation2], %s852
      %p856 = scmp.lt.u32.totalorder 1, 8
      %p857 = pneg %p856
      // Predicated region
      $region528: #{tpu_custom_call.1} parent=496 // pred_check
        _
      $region529: #{tpu_custom_call.1} parent=496 // pred_check_branch
        %859 = sbr.rel (%p856) target = $region531
      $region530: #{tpu_custom_call.1} parent=496 // pred_region
        %s874 = sand.u32 1, 7
        %p875 = scmp.eq.s32.totalorder %s874, 0
        %p876 = pneg %p875
        // Predicated region
        $region543: #{tpu_custom_call.1} parent=530 // pred_check
          _
        $region544: #{tpu_custom_call.1} parent=530 // pred_check_branch
          %878 = sbr.rel (%p875) target = $region546
        $region545: #{tpu_custom_call.1} parent=530 // pred_region
          %s879 = sand.u32 1, 7
          %s880 = ssub.s32 1, %s879
          %s881 = scalar_lea.vmem %s853, %s880
          %s882 = ssub.s32 1, %s879
          %s883 = scalar_lea.vmem %s854, %s882 [#allocation2]
          %s884 = sshllo.u32 0, %s879
          loop: start=0, step=1, limit=1
          $region547: #{tpu_custom_call.1} parent=545 // loop_pre_header
            _
          $region548: #{tpu_custom_call.1} parent=545 // loop_header
            %s886 = sphi 0, %s890
            %p887 = scmp.ge.s32.totalorder %s886, 1
            %s891 = sphi %s881, %s881
            %s892 = sphi %s883, %s883
          $region549: #{tpu_custom_call.1} parent=545 // loop_header_branch
            %889 = sbr.rel (%p887) target = $region553
          $region550: #{tpu_custom_call.1} parent=545 // loop_body
            %v893 = vld [vmem:[%s891] sm:%s884]
            %894 = vst [vmem:[%s892] sm:%s884] %v893
          $region551: #{tpu_custom_call.1} parent=545 // loop_footer
            %s890 = sadd.s32 1, %s886
          $region552: #{tpu_custom_call.1} parent=545 // loop_footer_branch
            %885 = sbr.rel target = $region548
          $region553: #{tpu_custom_call.1} parent=545 // loop_exit
            _
        $region546: #{tpu_custom_call.1} parent=530 // pred_fallthru
          _
      $region531: #{tpu_custom_call.1} parent=496 // pred_fallthru
        _
      // Predicated region
      $region532: #{tpu_custom_call.1} parent=496 // pred_check
        %p860 = pneg %p856
      $region533: #{tpu_custom_call.1} parent=496 // pred_check_branch
        %862 = sbr.rel (%p860) target = $region535
      $region534: #{tpu_custom_call.1} parent=496 // pred_region
        %s863 = sshllo.u32 0, 1
        loop: start=0, step=1, limit=1
        $region536: #{tpu_custom_call.1} parent=534 // loop_pre_header
          _
        $region537: #{tpu_custom_call.1} parent=534 // loop_header
          %s865 = sphi 0, %s869
          %p866 = scmp.ge.s32.totalorder %s865, 1
          %s870 = sphi %s853, %s853
          %s871 = sphi %s854, %s854
        $region538: #{tpu_custom_call.1} parent=534 // loop_header_branch
          %868 = sbr.rel (%p866) target = $region542
        $region539: #{tpu_custom_call.1} parent=534 // loop_body
          %v872 = vld [vmem:[%s870] sm:%s863]
          %873 = vst [vmem:[%s871] sm:%s863] %v872
        $region540: #{tpu_custom_call.1} parent=534 // loop_footer
          %s869 = sadd.s32 1, %s865
        $region541: #{tpu_custom_call.1} parent=534 // loop_footer_branch
          %864 = sbr.rel target = $region537
        $region542: #{tpu_custom_call.1} parent=534 // loop_exit
          _
      $region535: #{tpu_custom_call.1} parent=496 // pred_fallthru
        _
      // Predicated region
      $region554: #{tpu_custom_call.1} parent=496 // pred_check
        _
      $region555: #{tpu_custom_call.1} parent=496 // pred_check_branch
        %897 = sbr.rel (0) target = $region557
      $region556: #{tpu_custom_call.1} parent=496 // pred_region
        %898 = vsyncadd %s805, 16
      $region557: #{tpu_custom_call.1} parent=496 // pred_fallthru
        _
      %s899 = sadd.s32 %s800, 2
      %s900 = sld [smem:[#allocation5 + %s899]]
      %s901 = sadd.s32 %s801, 2
      %s902 = scalar_lea.vmem %s1, %s900
      %s903 = scalar_lea.vmem [#allocation2], %s901
      %p905 = scmp.lt.u32.totalorder 1, 8
      %p906 = pneg %p905
      // Predicated region
      $region558: #{tpu_custom_call.1} parent=496 // pred_check
        _
      $region559: #{tpu_custom_call.1} parent=496 // pred_check_branch
        %908 = sbr.rel (%p905) target = $region561
      $region560: #{tpu_custom_call.1} parent=496 // pred_region
        %s923 = sand.u32 1, 7
        %p924 = scmp.eq.s32.totalorder %s923, 0
        %p925 = pneg %p924
        // Predicated region
        $region573: #{tpu_custom_call.1} parent=560 // pred_check
          _
        $region574: #{tpu_custom_call.1} parent=560 // pred_check_branch
          %927 = sbr.rel (%p924) target = $region576
        $region575: #{tpu_custom_call.1} parent=560 // pred_region
          %s928 = sand.u32 1, 7
          %s929 = ssub.s32 1, %s928
          %s930 = scalar_lea.vmem %s902, %s929
          %s931 = ssub.s32 1, %s928
          %s932 = scalar_lea.vmem %s903, %s931 [#allocation2]
          %s933 = sshllo.u32 0, %s928
          loop: start=0, step=1, limit=1
          $region577: #{tpu_custom_call.1} parent=575 // loop_pre_header
            _
          $region578: #{tpu_custom_call.1} parent=575 // loop_header
            %s935 = sphi 0, %s939
            %p936 = scmp.ge.s32.totalorder %s935, 1
            %s940 = sphi %s930, %s930
            %s941 = sphi %s932, %s932
          $region579: #{tpu_custom_call.1} parent=575 // loop_header_branch
            %938 = sbr.rel (%p936) target = $region583
          $region580: #{tpu_custom_call.1} parent=575 // loop_body
            %v942 = vld [vmem:[%s940] sm:%s933]
            %943 = vst [vmem:[%s941] sm:%s933] %v942
          $region581: #{tpu_custom_call.1} parent=575 // loop_footer
            %s939 = sadd.s32 1, %s935
          $region582: #{tpu_custom_call.1} parent=575 // loop_footer_branch
            %934 = sbr.rel target = $region578
          $region583: #{tpu_custom_call.1} parent=575 // loop_exit
            _
        $region576: #{tpu_custom_call.1} parent=560 // pred_fallthru
          _
      $region561: #{tpu_custom_call.1} parent=496 // pred_fallthru
        _
      // Predicated region
      $region562: #{tpu_custom_call.1} parent=496 // pred_check
        %p909 = pneg %p905
      $region563: #{tpu_custom_call.1} parent=496 // pred_check_branch
        %911 = sbr.rel (%p909) target = $region565
      $region564: #{tpu_custom_call.1} parent=496 // pred_region
        %s912 = sshllo.u32 0, 1
        loop: start=0, step=1, limit=1
        $region566: #{tpu_custom_call.1} parent=564 // loop_pre_header
          _
        $region567: #{tpu_custom_call.1} parent=564 // loop_header
          %s914 = sphi 0, %s918
          %p915 = scmp.ge.s32.totalorder %s914, 1
          %s919 = sphi %s902, %s902
          %s920 = sphi %s903, %s903
        $region568: #{tpu_custom_call.1} parent=564 // loop_header_branch
          %917 = sbr.rel (%p915) target = $region572
        $region569: #{tpu_custom_call.1} parent=564 // loop_body
          %v921 = vld [vmem:[%s919] sm:%s912]
          %922 = vst [vmem:[%s920] sm:%s912] %v921
        $region570: #{tpu_custom_call.1} parent=564 // loop_footer
          %s918 = sadd.s32 1, %s914
        $region571: #{tpu_custom_call.1} parent=564 // loop_footer_branch
          %913 = sbr.rel target = $region567
        $region572: #{tpu_custom_call.1} parent=564 // loop_exit
          _
      $region565: #{tpu_custom_call.1} parent=496 // pred_fallthru
        _
      // Predicated region
      $region584: #{tpu_custom_call.1} parent=496 // pred_check
        _
      $region585: #{tpu_custom_call.1} parent=496 // pred_check_branch
        %946 = sbr.rel (0) target = $region587
      $region586: #{tpu_custom_call.1} parent=496 // pred_region
        %947 = vsyncadd %s805, 16
      $region587: #{tpu_custom_call.1} parent=496 // pred_fallthru
        _
      %s948 = sadd.s32 %s800, 3
      %s949 = sld [smem:[#allocation5 + %s948]]
      %s950 = sadd.s32 %s801, 3
      %s951 = scalar_lea.vmem %s1, %s949
      %s952 = scalar_lea.vmem [#allocation2], %s950
      %p954 = scmp.lt.u32.totalorder 1, 8
      %p955 = pneg %p954
      // Predicated region
      $region588: #{tpu_custom_call.1} parent=496 // pred_check
        _
      $region589: #{tpu_custom_call.1} parent=496 // pred_check_branch
        %957 = sbr.rel (%p954) target = $region591
      $region590: #{tpu_custom_call.1} parent=496 // pred_region
        %s972 = sand.u32 1, 7
        %p973 = scmp.eq.s32.totalorder %s972, 0
        %p974 = pneg %p973
        // Predicated region
        $region603: #{tpu_custom_call.1} parent=590 // pred_check
          _
        $region604: #{tpu_custom_call.1} parent=590 // pred_check_branch
          %976 = sbr.rel (%p973) target = $region606
        $region605: #{tpu_custom_call.1} parent=590 // pred_region
          %s977 = sand.u32 1, 7
          %s978 = ssub.s32 1, %s977
          %s979 = scalar_lea.vmem %s951, %s978
          %s980 = ssub.s32 1, %s977
          %s981 = scalar_lea.vmem %s952, %s980 [#allocation2]
          %s982 = sshllo.u32 0, %s977
          loop: start=0, step=1, limit=1
          $region607: #{tpu_custom_call.1} parent=605 // loop_pre_header
            _
          $region608: #{tpu_custom_call.1} parent=605 // loop_header
            %s984 = sphi 0, %s988
            %p985 = scmp.ge.s32.totalorder %s984, 1
            %s989 = sphi %s979, %s979
            %s990 = sphi %s981, %s981
          $region609: #{tpu_custom_call.1} parent=605 // loop_header_branch
            %987 = sbr.rel (%p985) target = $region613
          $region610: #{tpu_custom_call.1} parent=605 // loop_body
            %v991 = vld [vmem:[%s989] sm:%s982]
            %992 = vst [vmem:[%s990] sm:%s982] %v991
          $region611: #{tpu_custom_call.1} parent=605 // loop_footer
            %s988 = sadd.s32 1, %s984
          $region612: #{tpu_custom_call.1} parent=605 // loop_footer_branch
            %983 = sbr.rel target = $region608
          $region613: #{tpu_custom_call.1} parent=605 // loop_exit
            _
        $region606: #{tpu_custom_call.1} parent=590 // pred_fallthru
          _
      $region591: #{tpu_custom_call.1} parent=496 // pred_fallthru
        _
      // Predicated region
      $region592: #{tpu_custom_call.1} parent=496 // pred_check
        %p958 = pneg %p954
      $region593: #{tpu_custom_call.1} parent=496 // pred_check_branch
        %960 = sbr.rel (%p958) target = $region595
      $region594: #{tpu_custom_call.1} parent=496 // pred_region
        %s961 = sshllo.u32 0, 1
        loop: start=0, step=1, limit=1
        $region596: #{tpu_custom_call.1} parent=594 // loop_pre_header
          _
        $region597: #{tpu_custom_call.1} parent=594 // loop_header
          %s963 = sphi 0, %s967
          %p964 = scmp.ge.s32.totalorder %s963, 1
          %s968 = sphi %s951, %s951
          %s969 = sphi %s952, %s952
        $region598: #{tpu_custom_call.1} parent=594 // loop_header_branch
          %966 = sbr.rel (%p964) target = $region602
        $region599: #{tpu_custom_call.1} parent=594 // loop_body
          %v970 = vld [vmem:[%s968] sm:%s961]
          %971 = vst [vmem:[%s969] sm:%s961] %v970
        $region600: #{tpu_custom_call.1} parent=594 // loop_footer
          %s967 = sadd.s32 1, %s963
        $region601: #{tpu_custom_call.1} parent=594 // loop_footer_branch
          %962 = sbr.rel target = $region597
        $region602: #{tpu_custom_call.1} parent=594 // loop_exit
          _
      $region595: #{tpu_custom_call.1} parent=496 // pred_fallthru
        _
      // Predicated region
      $region614: #{tpu_custom_call.1} parent=496 // pred_check
        _
      $region615: #{tpu_custom_call.1} parent=496 // pred_check_branch
        %995 = sbr.rel (0) target = $region617
      $region616: #{tpu_custom_call.1} parent=496 // pred_region
        %996 = vsyncadd %s805, 16
      $region617: #{tpu_custom_call.1} parent=496 // pred_fallthru
        _
      %s997 = sadd.s32 %s800, 4
      %s998 = sld [smem:[#allocation5 + %s997]]
      %s999 = sadd.s32 %s801, 4
      %s1000 = scalar_lea.vmem %s1, %s998
      %s1001 = scalar_lea.vmem [#allocation2], %s999
      %p1003 = scmp.lt.u32.totalorder 1, 8
      %p1004 = pneg %p1003
      // Predicated region
      $region618: #{tpu_custom_call.1} parent=496 // pred_check
        _
      $region619: #{tpu_custom_call.1} parent=496 // pred_check_branch
        %1006 = sbr.rel (%p1003) target = $region621
      $region620: #{tpu_custom_call.1} parent=496 // pred_region
        %s1021 = sand.u32 1, 7
        %p1022 = scmp.eq.s32.totalorder %s1021, 0
        %p1023 = pneg %p1022
        // Predicated region
        $region633: #{tpu_custom_call.1} parent=620 // pred_check
          _
        $region634: #{tpu_custom_call.1} parent=620 // pred_check_branch
          %1025 = sbr.rel (%p1022) target = $region636
        $region635: #{tpu_custom_call.1} parent=620 // pred_region
          %s1026 = sand.u32 1, 7
          %s1027 = ssub.s32 1, %s1026
          %s1028 = scalar_lea.vmem %s1000, %s1027
          %s1029 = ssub.s32 1, %s1026
          %s1030 = scalar_lea.vmem %s1001, %s1029 [#allocation2]
          %s1031 = sshllo.u32 0, %s1026
          loop: start=0, step=1, limit=1
          $region637: #{tpu_custom_call.1} parent=635 // loop_pre_header
            _
          $region638: #{tpu_custom_call.1} parent=635 // loop_header
            %s1033 = sphi 0, %s1037
            %p1034 = scmp.ge.s32.totalorder %s1033, 1
            %s1038 = sphi %s1028, %s1028
            %s1039 = sphi %s1030, %s1030
          $region639: #{tpu_custom_call.1} parent=635 // loop_header_branch
            %1036 = sbr.rel (%p1034) target = $region643
          $region640: #{tpu_custom_call.1} parent=635 // loop_body
            %v1040 = vld [vmem:[%s1038] sm:%s1031]
            %1041 = vst [vmem:[%s1039] sm:%s1031] %v1040
          $region641: #{tpu_custom_call.1} parent=635 // loop_footer
            %s1037 = sadd.s32 1, %s1033
          $region642: #{tpu_custom_call.1} parent=635 // loop_footer_branch
            %1032 = sbr.rel target = $region638
          $region643: #{tpu_custom_call.1} parent=635 // loop_exit
            _
        $region636: #{tpu_custom_call.1} parent=620 // pred_fallthru
          _
      $region621: #{tpu_custom_call.1} parent=496 // pred_fallthru
        _
      // Predicated region
      $region622: #{tpu_custom_call.1} parent=496 // pred_check
        %p1007 = pneg %p1003
      $region623: #{tpu_custom_call.1} parent=496 // pred_check_branch
        %1009 = sbr.rel (%p1007) target = $region625
      $region624: #{tpu_custom_call.1} parent=496 // pred_region
        %s1010 = sshllo.u32 0, 1
        loop: start=0, step=1, limit=1
        $region626: #{tpu_custom_call.1} parent=624 // loop_pre_header
          _
        $region627: #{tpu_custom_call.1} parent=624 // loop_header
          %s1012 = sphi 0, %s1016
          %p1013 = scmp.ge.s32.totalorder %s1012, 1
          %s1017 = sphi %s1000, %s1000
          %s1018 = sphi %s1001, %s1001
        $region628: #{tpu_custom_call.1} parent=624 // loop_header_branch
          %1015 = sbr.rel (%p1013) target = $region632
        $region629: #{tpu_custom_call.1} parent=624 // loop_body
          %v1019 = vld [vmem:[%s1017] sm:%s1010]
          %1020 = vst [vmem:[%s1018] sm:%s1010] %v1019
        $region630: #{tpu_custom_call.1} parent=624 // loop_footer
          %s1016 = sadd.s32 1, %s1012
        $region631: #{tpu_custom_call.1} parent=624 // loop_footer_branch
          %1011 = sbr.rel target = $region627
        $region632: #{tpu_custom_call.1} parent=624 // loop_exit
          _
      $region625: #{tpu_custom_call.1} parent=496 // pred_fallthru
        _
      // Predicated region
      $region644: #{tpu_custom_call.1} parent=496 // pred_check
        _
      $region645: #{tpu_custom_call.1} parent=496 // pred_check_branch
        %1044 = sbr.rel (0) target = $region647
      $region646: #{tpu_custom_call.1} parent=496 // pred_region
        %1045 = vsyncadd %s805, 16
      $region647: #{tpu_custom_call.1} parent=496 // pred_fallthru
        _
      %s1046 = sadd.s32 %s800, 5
      %s1047 = sld [smem:[#allocation5 + %s1046]]
      %s1048 = sadd.s32 %s801, 5
      %s1049 = scalar_lea.vmem %s1, %s1047
      %s1050 = scalar_lea.vmem [#allocation2], %s1048
      %p1052 = scmp.lt.u32.totalorder 1, 8
      %p1053 = pneg %p1052
      // Predicated region
      $region648: #{tpu_custom_call.1} parent=496 // pred_check
        _
      $region649: #{tpu_custom_call.1} parent=496 // pred_check_branch
        %1055 = sbr.rel (%p1052) target = $region651
      $region650: #{tpu_custom_call.1} parent=496 // pred_region
        %s1070 = sand.u32 1, 7
        %p1071 = scmp.eq.s32.totalorder %s1070, 0
        %p1072 = pneg %p1071
        // Predicated region
        $region663: #{tpu_custom_call.1} parent=650 // pred_check
          _
        $region664: #{tpu_custom_call.1} parent=650 // pred_check_branch
          %1074 = sbr.rel (%p1071) target = $region666
        $region665: #{tpu_custom_call.1} parent=650 // pred_region
          %s1075 = sand.u32 1, 7
          %s1076 = ssub.s32 1, %s1075
          %s1077 = scalar_lea.vmem %s1049, %s1076
          %s1078 = ssub.s32 1, %s1075
          %s1079 = scalar_lea.vmem %s1050, %s1078 [#allocation2]
          %s1080 = sshllo.u32 0, %s1075
          loop: start=0, step=1, limit=1
          $region667: #{tpu_custom_call.1} parent=665 // loop_pre_header
            _
          $region668: #{tpu_custom_call.1} parent=665 // loop_header
            %s1082 = sphi 0, %s1086
            %p1083 = scmp.ge.s32.totalorder %s1082, 1
            %s1087 = sphi %s1077, %s1077
            %s1088 = sphi %s1079, %s1079
          $region669: #{tpu_custom_call.1} parent=665 // loop_header_branch
            %1085 = sbr.rel (%p1083) target = $region673
          $region670: #{tpu_custom_call.1} parent=665 // loop_body
            %v1089 = vld [vmem:[%s1087] sm:%s1080]
            %1090 = vst [vmem:[%s1088] sm:%s1080] %v1089
          $region671: #{tpu_custom_call.1} parent=665 // loop_footer
            %s1086 = sadd.s32 1, %s1082
          $region672: #{tpu_custom_call.1} parent=665 // loop_footer_branch
            %1081 = sbr.rel target = $region668
          $region673: #{tpu_custom_call.1} parent=665 // loop_exit
            _
        $region666: #{tpu_custom_call.1} parent=650 // pred_fallthru
          _
      $region651: #{tpu_custom_call.1} parent=496 // pred_fallthru
        _
      // Predicated region
      $region652: #{tpu_custom_call.1} parent=496 // pred_check
        %p1056 = pneg %p1052
      $region653: #{tpu_custom_call.1} parent=496 // pred_check_branch
        %1058 = sbr.rel (%p1056) target = $region655
      $region654: #{tpu_custom_call.1} parent=496 // pred_region
        %s1059 = sshllo.u32 0, 1
        loop: start=0, step=1, limit=1
        $region656: #{tpu_custom_call.1} parent=654 // loop_pre_header
          _
        $region657: #{tpu_custom_call.1} parent=654 // loop_header
          %s1061 = sphi 0, %s1065
          %p1062 = scmp.ge.s32.totalorder %s1061, 1
          %s1066 = sphi %s1049, %s1049
          %s1067 = sphi %s1050, %s1050
        $region658: #{tpu_custom_call.1} parent=654 // loop_header_branch
          %1064 = sbr.rel (%p1062) target = $region662
        $region659: #{tpu_custom_call.1} parent=654 // loop_body
          %v1068 = vld [vmem:[%s1066] sm:%s1059]
          %1069 = vst [vmem:[%s1067] sm:%s1059] %v1068
        $region660: #{tpu_custom_call.1} parent=654 // loop_footer
          %s1065 = sadd.s32 1, %s1061
        $region661: #{tpu_custom_call.1} parent=654 // loop_footer_branch
          %1060 = sbr.rel target = $region657
        $region662: #{tpu_custom_call.1} parent=654 // loop_exit
          _
      $region655: #{tpu_custom_call.1} parent=496 // pred_fallthru
        _
      // Predicated region
      $region674: #{tpu_custom_call.1} parent=496 // pred_check
        _
      $region675: #{tpu_custom_call.1} parent=496 // pred_check_branch
        %1093 = sbr.rel (0) target = $region677
      $region676: #{tpu_custom_call.1} parent=496 // pred_region
        %1094 = vsyncadd %s805, 16
      $region677: #{tpu_custom_call.1} parent=496 // pred_fallthru
        _
      %s1095 = sadd.s32 %s800, 6
      %s1096 = sld [smem:[#allocation5 + %s1095]]
      %s1097 = sadd.s32 %s801, 6
      %s1098 = scalar_lea.vmem %s1, %s1096
      %s1099 = scalar_lea.vmem [#allocation2], %s1097
      %p1101 = scmp.lt.u32.totalorder 1, 8
      %p1102 = pneg %p1101
      // Predicated region
      $region678: #{tpu_custom_call.1} parent=496 // pred_check
        _
      $region679: #{tpu_custom_call.1} parent=496 // pred_check_branch
        %1104 = sbr.rel (%p1101) target = $region681
      $region680: #{tpu_custom_call.1} parent=496 // pred_region
        %s1119 = sand.u32 1, 7
        %p1120 = scmp.eq.s32.totalorder %s1119, 0
        %p1121 = pneg %p1120
        // Predicated region
        $region693: #{tpu_custom_call.1} parent=680 // pred_check
          _
        $region694: #{tpu_custom_call.1} parent=680 // pred_check_branch
          %1123 = sbr.rel (%p1120) target = $region696
        $region695: #{tpu_custom_call.1} parent=680 // pred_region
          %s1124 = sand.u32 1, 7
          %s1125 = ssub.s32 1, %s1124
          %s1126 = scalar_lea.vmem %s1098, %s1125
          %s1127 = ssub.s32 1, %s1124
          %s1128 = scalar_lea.vmem %s1099, %s1127 [#allocation2]
          %s1129 = sshllo.u32 0, %s1124
          loop: start=0, step=1, limit=1
          $region697: #{tpu_custom_call.1} parent=695 // loop_pre_header
            _
          $region698: #{tpu_custom_call.1} parent=695 // loop_header
            %s1131 = sphi 0, %s1135
            %p1132 = scmp.ge.s32.totalorder %s1131, 1
            %s1136 = sphi %s1126, %s1126
            %s1137 = sphi %s1128, %s1128
          $region699: #{tpu_custom_call.1} parent=695 // loop_header_branch
            %1134 = sbr.rel (%p1132) target = $region703
          $region700: #{tpu_custom_call.1} parent=695 // loop_body
            %v1138 = vld [vmem:[%s1136] sm:%s1129]
            %1139 = vst [vmem:[%s1137] sm:%s1129] %v1138
          $region701: #{tpu_custom_call.1} parent=695 // loop_footer
            %s1135 = sadd.s32 1, %s1131
          $region702: #{tpu_custom_call.1} parent=695 // loop_footer_branch
            %1130 = sbr.rel target = $region698
          $region703: #{tpu_custom_call.1} parent=695 // loop_exit
            _
        $region696: #{tpu_custom_call.1} parent=680 // pred_fallthru
          _
      $region681: #{tpu_custom_call.1} parent=496 // pred_fallthru
        _
      // Predicated region
      $region682: #{tpu_custom_call.1} parent=496 // pred_check
        %p1105 = pneg %p1101
      $region683: #{tpu_custom_call.1} parent=496 // pred_check_branch
        %1107 = sbr.rel (%p1105) target = $region685
      $region684: #{tpu_custom_call.1} parent=496 // pred_region
        %s1108 = sshllo.u32 0, 1
        loop: start=0, step=1, limit=1
        $region686: #{tpu_custom_call.1} parent=684 // loop_pre_header
          _
        $region687: #{tpu_custom_call.1} parent=684 // loop_header
          %s1110 = sphi 0, %s1114
          %p1111 = scmp.ge.s32.totalorder %s1110, 1
          %s1115 = sphi %s1098, %s1098
          %s1116 = sphi %s1099, %s1099
        $region688: #{tpu_custom_call.1} parent=684 // loop_header_branch
          %1113 = sbr.rel (%p1111) target = $region692
        $region689: #{tpu_custom_call.1} parent=684 // loop_body
          %v1117 = vld [vmem:[%s1115] sm:%s1108]
          %1118 = vst [vmem:[%s1116] sm:%s1108] %v1117
        $region690: #{tpu_custom_call.1} parent=684 // loop_footer
          %s1114 = sadd.s32 1, %s1110
        $region691: #{tpu_custom_call.1} parent=684 // loop_footer_branch
          %1109 = sbr.rel target = $region687
        $region692: #{tpu_custom_call.1} parent=684 // loop_exit
          _
      $region685: #{tpu_custom_call.1} parent=496 // pred_fallthru
        _
      // Predicated region
      $region704: #{tpu_custom_call.1} parent=496 // pred_check
        _
      $region705: #{tpu_custom_call.1} parent=496 // pred_check_branch
        %1142 = sbr.rel (0) target = $region707
      $region706: #{tpu_custom_call.1} parent=496 // pred_region
        %1143 = vsyncadd %s805, 16
      $region707: #{tpu_custom_call.1} parent=496 // pred_fallthru
        _
      %s1144 = sadd.s32 %s800, 7
      %s1145 = sld [smem:[#allocation5 + %s1144]]
      %s1146 = sadd.s32 %s801, 7
      %s1147 = scalar_lea.vmem %s1, %s1145
      %s1148 = scalar_lea.vmem [#allocation2], %s1146
      %p1150 = scmp.lt.u32.totalorder 1, 8
      %p1151 = pneg %p1150
      // Predicated region
      $region708: #{tpu_custom_call.1} parent=496 // pred_check
        _
      $region709: #{tpu_custom_call.1} parent=496 // pred_check_branch
        %1153 = sbr.rel (%p1150) target = $region711
      $region710: #{tpu_custom_call.1} parent=496 // pred_region
        %s1168 = sand.u32 1, 7
        %p1169 = scmp.eq.s32.totalorder %s1168, 0
        %p1170 = pneg %p1169
        // Predicated region
        $region723: #{tpu_custom_call.1} parent=710 // pred_check
          _
        $region724: #{tpu_custom_call.1} parent=710 // pred_check_branch
          %1172 = sbr.rel (%p1169) target = $region726
        $region725: #{tpu_custom_call.1} parent=710 // pred_region
          %s1173 = sand.u32 1, 7
          %s1174 = ssub.s32 1, %s1173
          %s1175 = scalar_lea.vmem %s1147, %s1174
          %s1176 = ssub.s32 1, %s1173
          %s1177 = scalar_lea.vmem %s1148, %s1176 [#allocation2]
          %s1178 = sshllo.u32 0, %s1173
          loop: start=0, step=1, limit=1
          $region727: #{tpu_custom_call.1} parent=725 // loop_pre_header
            _
          $region728: #{tpu_custom_call.1} parent=725 // loop_header
            %s1180 = sphi 0, %s1184
            %p1181 = scmp.ge.s32.totalorder %s1180, 1
            %s1185 = sphi %s1175, %s1175
            %s1186 = sphi %s1177, %s1177
          $region729: #{tpu_custom_call.1} parent=725 // loop_header_branch
            %1183 = sbr.rel (%p1181) target = $region733
          $region730: #{tpu_custom_call.1} parent=725 // loop_body
            %v1187 = vld [vmem:[%s1185] sm:%s1178]
            %1188 = vst [vmem:[%s1186] sm:%s1178] %v1187
          $region731: #{tpu_custom_call.1} parent=725 // loop_footer
            %s1184 = sadd.s32 1, %s1180
          $region732: #{tpu_custom_call.1} parent=725 // loop_footer_branch
            %1179 = sbr.rel target = $region728
          $region733: #{tpu_custom_call.1} parent=725 // loop_exit
            _
        $region726: #{tpu_custom_call.1} parent=710 // pred_fallthru
          _
      $region711: #{tpu_custom_call.1} parent=496 // pred_fallthru
        _
      // Predicated region
      $region712: #{tpu_custom_call.1} parent=496 // pred_check
        %p1154 = pneg %p1150
      $region713: #{tpu_custom_call.1} parent=496 // pred_check_branch
        %1156 = sbr.rel (%p1154) target = $region715
      $region714: #{tpu_custom_call.1} parent=496 // pred_region
        %s1157 = sshllo.u32 0, 1
        loop: start=0, step=1, limit=1
        $region716: #{tpu_custom_call.1} parent=714 // loop_pre_header
          _
        $region717: #{tpu_custom_call.1} parent=714 // loop_header
          %s1159 = sphi 0, %s1163
          %p1160 = scmp.ge.s32.totalorder %s1159, 1
          %s1164 = sphi %s1147, %s1147
          %s1165 = sphi %s1148, %s1148
        $region718: #{tpu_custom_call.1} parent=714 // loop_header_branch
          %1162 = sbr.rel (%p1160) target = $region722
        $region719: #{tpu_custom_call.1} parent=714 // loop_body
          %v1166 = vld [vmem:[%s1164] sm:%s1157]
          %1167 = vst [vmem:[%s1165] sm:%s1157] %v1166
        $region720: #{tpu_custom_call.1} parent=714 // loop_footer
          %s1163 = sadd.s32 1, %s1159
        $region721: #{tpu_custom_call.1} parent=714 // loop_footer_branch
          %1158 = sbr.rel target = $region717
        $region722: #{tpu_custom_call.1} parent=714 // loop_exit
          _
      $region715: #{tpu_custom_call.1} parent=496 // pred_fallthru
        _
      // Predicated region
      $region734: #{tpu_custom_call.1} parent=496 // pred_check
        _
      $region735: #{tpu_custom_call.1} parent=496 // pred_check_branch
        %1191 = sbr.rel (0) target = $region737
      $region736: #{tpu_custom_call.1} parent=496 // pred_region
        %1192 = vsyncadd %s805, 16
      $region737: #{tpu_custom_call.1} parent=496 // pred_fallthru
        _
      %s1193 = sadd.s32 %s800, 8
      %s1194 = sld [smem:[#allocation5 + %s1193]]
      %s1195 = sadd.s32 %s801, 8
      %s1196 = scalar_lea.vmem %s1, %s1194
      %s1197 = scalar_lea.vmem [#allocation2], %s1195
      %p1199 = scmp.lt.u32.totalorder 1, 8
      %p1200 = pneg %p1199
      // Predicated region
      $region738: #{tpu_custom_call.1} parent=496 // pred_check
        _
      $region739: #{tpu_custom_call.1} parent=496 // pred_check_branch
        %1202 = sbr.rel (%p1199) target = $region741
      $region740: #{tpu_custom_call.1} parent=496 // pred_region
        %s1217 = sand.u32 1, 7
        %p1218 = scmp.eq.s32.totalorder %s1217, 0
        %p1219 = pneg %p1218
        // Predicated region
        $region753: #{tpu_custom_call.1} parent=740 // pred_check
          _
        $region754: #{tpu_custom_call.1} parent=740 // pred_check_branch
          %1221 = sbr.rel (%p1218) target = $region756
        $region755: #{tpu_custom_call.1} parent=740 // pred_region
          %s1222 = sand.u32 1, 7
          %s1223 = ssub.s32 1, %s1222
          %s1224 = scalar_lea.vmem %s1196, %s1223
          %s1225 = ssub.s32 1, %s1222
          %s1226 = scalar_lea.vmem %s1197, %s1225 [#allocation2]
          %s1227 = sshllo.u32 0, %s1222
          loop: start=0, step=1, limit=1
          $region757: #{tpu_custom_call.1} parent=755 // loop_pre_header
            _
          $region758: #{tpu_custom_call.1} parent=755 // loop_header
            %s1229 = sphi 0, %s1233
            %p1230 = scmp.ge.s32.totalorder %s1229, 1
            %s1234 = sphi %s1224, %s1224
            %s1235 = sphi %s1226, %s1226
          $region759: #{tpu_custom_call.1} parent=755 // loop_header_branch
            %1232 = sbr.rel (%p1230) target = $region763
          $region760: #{tpu_custom_call.1} parent=755 // loop_body
            %v1236 = vld [vmem:[%s1234] sm:%s1227]
            %1237 = vst [vmem:[%s1235] sm:%s1227] %v1236
          $region761: #{tpu_custom_call.1} parent=755 // loop_footer
            %s1233 = sadd.s32 1, %s1229
          $region762: #{tpu_custom_call.1} parent=755 // loop_footer_branch
            %1228 = sbr.rel target = $region758
          $region763: #{tpu_custom_call.1} parent=755 // loop_exit
            _
        $region756: #{tpu_custom_call.1} parent=740 // pred_fallthru
          _
      $region741: #{tpu_custom_call.1} parent=496 // pred_fallthru
        _
      // Predicated region
      $region742: #{tpu_custom_call.1} parent=496 // pred_check
        %p1203 = pneg %p1199
      $region743: #{tpu_custom_call.1} parent=496 // pred_check_branch
        %1205 = sbr.rel (%p1203) target = $region745
      $region744: #{tpu_custom_call.1} parent=496 // pred_region
        %s1206 = sshllo.u32 0, 1
        loop: start=0, step=1, limit=1
        $region746: #{tpu_custom_call.1} parent=744 // loop_pre_header
          _
        $region747: #{tpu_custom_call.1} parent=744 // loop_header
          %s1208 = sphi 0, %s1212
          %p1209 = scmp.ge.s32.totalorder %s1208, 1
          %s1213 = sphi %s1196, %s1196
          %s1214 = sphi %s1197, %s1197
        $region748: #{tpu_custom_call.1} parent=744 // loop_header_branch
          %1211 = sbr.rel (%p1209) target = $region752
        $region749: #{tpu_custom_call.1} parent=744 // loop_body
          %v1215 = vld [vmem:[%s1213] sm:%s1206]
          %1216 = vst [vmem:[%s1214] sm:%s1206] %v1215
        $region750: #{tpu_custom_call.1} parent=744 // loop_footer
          %s1212 = sadd.s32 1, %s1208
        $region751: #{tpu_custom_call.1} parent=744 // loop_footer_branch
          %1207 = sbr.rel target = $region747
        $region752: #{tpu_custom_call.1} parent=744 // loop_exit
          _
      $region745: #{tpu_custom_call.1} parent=496 // pred_fallthru
        _
      // Predicated region
      $region764: #{tpu_custom_call.1} parent=496 // pred_check
        _
      $region765: #{tpu_custom_call.1} parent=496 // pred_check_branch
        %1240 = sbr.rel (0) target = $region767
      $region766: #{tpu_custom_call.1} parent=496 // pred_region
        %1241 = vsyncadd %s805, 16
      $region767: #{tpu_custom_call.1} parent=496 // pred_fallthru
        _
      %s1242 = sadd.s32 %s800, 9
      %s1243 = sld [smem:[#allocation5 + %s1242]]
      %s1244 = sadd.s32 %s801, 9
      %s1245 = scalar_lea.vmem %s1, %s1243
      %s1246 = scalar_lea.vmem [#allocation2], %s1244
      %p1248 = scmp.lt.u32.totalorder 1, 8
      %p1249 = pneg %p1248
      // Predicated region
      $region768: #{tpu_custom_call.1} parent=496 // pred_check
        _
      $region769: #{tpu_custom_call.1} parent=496 // pred_check_branch
        %1251 = sbr.rel (%p1248) target = $region771
      $region770: #{tpu_custom_call.1} parent=496 // pred_region
        %s1266 = sand.u32 1, 7
        %p1267 = scmp.eq.s32.totalorder %s1266, 0
        %p1268 = pneg %p1267
        // Predicated region
        $region783: #{tpu_custom_call.1} parent=770 // pred_check
          _
        $region784: #{tpu_custom_call.1} parent=770 // pred_check_branch
          %1270 = sbr.rel (%p1267) target = $region786
        $region785: #{tpu_custom_call.1} parent=770 // pred_region
          %s1271 = sand.u32 1, 7
          %s1272 = ssub.s32 1, %s1271
          %s1273 = scalar_lea.vmem %s1245, %s1272
          %s1274 = ssub.s32 1, %s1271
          %s1275 = scalar_lea.vmem %s1246, %s1274 [#allocation2]
          %s1276 = sshllo.u32 0, %s1271
          loop: start=0, step=1, limit=1
          $region787: #{tpu_custom_call.1} parent=785 // loop_pre_header
            _
          $region788: #{tpu_custom_call.1} parent=785 // loop_header
            %s1278 = sphi 0, %s1282
            %p1279 = scmp.ge.s32.totalorder %s1278, 1
            %s1283 = sphi %s1273, %s1273
            %s1284 = sphi %s1275, %s1275
          $region789: #{tpu_custom_call.1} parent=785 // loop_header_branch
            %1281 = sbr.rel (%p1279) target = $region793
          $region790: #{tpu_custom_call.1} parent=785 // loop_body
            %v1285 = vld [vmem:[%s1283] sm:%s1276]
            %1286 = vst [vmem:[%s1284] sm:%s1276] %v1285
          $region791: #{tpu_custom_call.1} parent=785 // loop_footer
            %s1282 = sadd.s32 1, %s1278
          $region792: #{tpu_custom_call.1} parent=785 // loop_footer_branch
            %1277 = sbr.rel target = $region788
          $region793: #{tpu_custom_call.1} parent=785 // loop_exit
            _
        $region786: #{tpu_custom_call.1} parent=770 // pred_fallthru
          _
      $region771: #{tpu_custom_call.1} parent=496 // pred_fallthru
        _
      // Predicated region
      $region772: #{tpu_custom_call.1} parent=496 // pred_check
        %p1252 = pneg %p1248
      $region773: #{tpu_custom_call.1} parent=496 // pred_check_branch
        %1254 = sbr.rel (%p1252) target = $region775
      $region774: #{tpu_custom_call.1} parent=496 // pred_region
        %s1255 = sshllo.u32 0, 1
        loop: start=0, step=1, limit=1
        $region776: #{tpu_custom_call.1} parent=774 // loop_pre_header
          _
        $region777: #{tpu_custom_call.1} parent=774 // loop_header
          %s1257 = sphi 0, %s1261
          %p1258 = scmp.ge.s32.totalorder %s1257, 1
          %s1262 = sphi %s1245, %s1245
          %s1263 = sphi %s1246, %s1246
        $region778: #{tpu_custom_call.1} parent=774 // loop_header_branch
          %1260 = sbr.rel (%p1258) target = $region782
        $region779: #{tpu_custom_call.1} parent=774 // loop_body
          %v1264 = vld [vmem:[%s1262] sm:%s1255]
          %1265 = vst [vmem:[%s1263] sm:%s1255] %v1264
        $region780: #{tpu_custom_call.1} parent=774 // loop_footer
          %s1261 = sadd.s32 1, %s1257
        $region781: #{tpu_custom_call.1} parent=774 // loop_footer_branch
          %1256 = sbr.rel target = $region777
        $region782: #{tpu_custom_call.1} parent=774 // loop_exit
          _
      $region775: #{tpu_custom_call.1} parent=496 // pred_fallthru
        _
      // Predicated region
      $region794: #{tpu_custom_call.1} parent=496 // pred_check
        _
      $region795: #{tpu_custom_call.1} parent=496 // pred_check_branch
        %1289 = sbr.rel (0) target = $region797
      $region796: #{tpu_custom_call.1} parent=496 // pred_region
        %1290 = vsyncadd %s805, 16
      $region797: #{tpu_custom_call.1} parent=496 // pred_fallthru
        _
      %s1291 = sadd.s32 %s800, 10
      %s1292 = sld [smem:[#allocation5 + %s1291]]
      %s1293 = sadd.s32 %s801, 10
      %s1294 = scalar_lea.vmem %s1, %s1292
      %s1295 = scalar_lea.vmem [#allocation2], %s1293
      %p1297 = scmp.lt.u32.totalorder 1, 8
      %p1298 = pneg %p1297
      // Predicated region
      $region798: #{tpu_custom_call.1} parent=496 // pred_check
        _
      $region799: #{tpu_custom_call.1} parent=496 // pred_check_branch
        %1300 = sbr.rel (%p1297) target = $region801
      $region800: #{tpu_custom_call.1} parent=496 // pred_region
        %s1315 = sand.u32 1, 7
        %p1316 = scmp.eq.s32.totalorder %s1315, 0
        %p1317 = pneg %p1316
        // Predicated region
        $region813: #{tpu_custom_call.1} parent=800 // pred_check
          _
        $region814: #{tpu_custom_call.1} parent=800 // pred_check_branch
          %1319 = sbr.rel (%p1316) target = $region816
        $region815: #{tpu_custom_call.1} parent=800 // pred_region
          %s1320 = sand.u32 1, 7
          %s1321 = ssub.s32 1, %s1320
          %s1322 = scalar_lea.vmem %s1294, %s1321
          %s1323 = ssub.s32 1, %s1320
          %s1324 = scalar_lea.vmem %s1295, %s1323 [#allocation2]
          %s1325 = sshllo.u32 0, %s1320
          loop: start=0, step=1, limit=1
          $region817: #{tpu_custom_call.1} parent=815 // loop_pre_header
            _
          $region818: #{tpu_custom_call.1} parent=815 // loop_header
            %s1327 = sphi 0, %s1331
            %p1328 = scmp.ge.s32.totalorder %s1327, 1
            %s1332 = sphi %s1322, %s1322
            %s1333 = sphi %s1324, %s1324
          $region819: #{tpu_custom_call.1} parent=815 // loop_header_branch
            %1330 = sbr.rel (%p1328) target = $region823
          $region820: #{tpu_custom_call.1} parent=815 // loop_body
            %v1334 = vld [vmem:[%s1332] sm:%s1325]
            %1335 = vst [vmem:[%s1333] sm:%s1325] %v1334
          $region821: #{tpu_custom_call.1} parent=815 // loop_footer
            %s1331 = sadd.s32 1, %s1327
          $region822: #{tpu_custom_call.1} parent=815 // loop_footer_branch
            %1326 = sbr.rel target = $region818
          $region823: #{tpu_custom_call.1} parent=815 // loop_exit
            _
        $region816: #{tpu_custom_call.1} parent=800 // pred_fallthru
          _
      $region801: #{tpu_custom_call.1} parent=496 // pred_fallthru
        _
      // Predicated region
      $region802: #{tpu_custom_call.1} parent=496 // pred_check
        %p1301 = pneg %p1297
      $region803: #{tpu_custom_call.1} parent=496 // pred_check_branch
        %1303 = sbr.rel (%p1301) target = $region805
      $region804: #{tpu_custom_call.1} parent=496 // pred_region
        %s1304 = sshllo.u32 0, 1
        loop: start=0, step=1, limit=1
        $region806: #{tpu_custom_call.1} parent=804 // loop_pre_header
          _
        $region807: #{tpu_custom_call.1} parent=804 // loop_header
          %s1306 = sphi 0, %s1310
          %p1307 = scmp.ge.s32.totalorder %s1306, 1
          %s1311 = sphi %s1294, %s1294
          %s1312 = sphi %s1295, %s1295
        $region808: #{tpu_custom_call.1} parent=804 // loop_header_branch
          %1309 = sbr.rel (%p1307) target = $region812
        $region809: #{tpu_custom_call.1} parent=804 // loop_body
          %v1313 = vld [vmem:[%s1311] sm:%s1304]
          %1314 = vst [vmem:[%s1312] sm:%s1304] %v1313
        $region810: #{tpu_custom_call.1} parent=804 // loop_footer
          %s1310 = sadd.s32 1, %s1306
        $region811: #{tpu_custom_call.1} parent=804 // loop_footer_branch
          %1305 = sbr.rel target = $region807
        $region812: #{tpu_custom_call.1} parent=804 // loop_exit
          _
      $region805: #{tpu_custom_call.1} parent=496 // pred_fallthru
        _
      // Predicated region
      $region824: #{tpu_custom_call.1} parent=496 // pred_check
        _
      $region825: #{tpu_custom_call.1} parent=496 // pred_check_branch
        %1338 = sbr.rel (0) target = $region827
      $region826: #{tpu_custom_call.1} parent=496 // pred_region
        %1339 = vsyncadd %s805, 16
      $region827: #{tpu_custom_call.1} parent=496 // pred_fallthru
        _
      %s1340 = sadd.s32 %s800, 11
      %s1341 = sld [smem:[#allocation5 + %s1340]]
      %s1342 = sadd.s32 %s801, 11
      %s1343 = scalar_lea.vmem %s1, %s1341
      %s1344 = scalar_lea.vmem [#allocation2], %s1342
      %p1346 = scmp.lt.u32.totalorder 1, 8
      %p1347 = pneg %p1346
      // Predicated region
      $region828: #{tpu_custom_call.1} parent=496 // pred_check
        _
      $region829: #{tpu_custom_call.1} parent=496 // pred_check_branch
        %1349 = sbr.rel (%p1346) target = $region831
      $region830: #{tpu_custom_call.1} parent=496 // pred_region
        %s1364 = sand.u32 1, 7
        %p1365 = scmp.eq.s32.totalorder %s1364, 0
        %p1366 = pneg %p1365
        // Predicated region
        $region843: #{tpu_custom_call.1} parent=830 // pred_check
          _
        $region844: #{tpu_custom_call.1} parent=830 // pred_check_branch
          %1368 = sbr.rel (%p1365) target = $region846
        $region845: #{tpu_custom_call.1} parent=830 // pred_region
          %s1369 = sand.u32 1, 7
          %s1370 = ssub.s32 1, %s1369
          %s1371 = scalar_lea.vmem %s1343, %s1370
          %s1372 = ssub.s32 1, %s1369
          %s1373 = scalar_lea.vmem %s1344, %s1372 [#allocation2]
          %s1374 = sshllo.u32 0, %s1369
          loop: start=0, step=1, limit=1
          $region847: #{tpu_custom_call.1} parent=845 // loop_pre_header
            _
          $region848: #{tpu_custom_call.1} parent=845 // loop_header
            %s1376 = sphi 0, %s1380
            %p1377 = scmp.ge.s32.totalorder %s1376, 1
            %s1381 = sphi %s1371, %s1371
            %s1382 = sphi %s1373, %s1373
          $region849: #{tpu_custom_call.1} parent=845 // loop_header_branch
            %1379 = sbr.rel (%p1377) target = $region853
          $region850: #{tpu_custom_call.1} parent=845 // loop_body
            %v1383 = vld [vmem:[%s1381] sm:%s1374]
            %1384 = vst [vmem:[%s1382] sm:%s1374] %v1383
          $region851: #{tpu_custom_call.1} parent=845 // loop_footer
            %s1380 = sadd.s32 1, %s1376
          $region852: #{tpu_custom_call.1} parent=845 // loop_footer_branch
            %1375 = sbr.rel target = $region848
          $region853: #{tpu_custom_call.1} parent=845 // loop_exit
            _
        $region846: #{tpu_custom_call.1} parent=830 // pred_fallthru
          _
      $region831: #{tpu_custom_call.1} parent=496 // pred_fallthru
        _
      // Predicated region
      $region832: #{tpu_custom_call.1} parent=496 // pred_check
        %p1350 = pneg %p1346
      $region833: #{tpu_custom_call.1} parent=496 // pred_check_branch
        %1352 = sbr.rel (%p1350) target = $region835
      $region834: #{tpu_custom_call.1} parent=496 // pred_region
        %s1353 = sshllo.u32 0, 1
        loop: start=0, step=1, limit=1
        $region836: #{tpu_custom_call.1} parent=834 // loop_pre_header
          _
        $region837: #{tpu_custom_call.1} parent=834 // loop_header
          %s1355 = sphi 0, %s1359
          %p1356 = scmp.ge.s32.totalorder %s1355, 1
          %s1360 = sphi %s1343, %s1343
          %s1361 = sphi %s1344, %s1344
        $region838: #{tpu_custom_call.1} parent=834 // loop_header_branch
          %1358 = sbr.rel (%p1356) target = $region842
        $region839: #{tpu_custom_call.1} parent=834 // loop_body
          %v1362 = vld [vmem:[%s1360] sm:%s1353]
          %1363 = vst [vmem:[%s1361] sm:%s1353] %v1362
        $region840: #{tpu_custom_call.1} parent=834 // loop_footer
          %s1359 = sadd.s32 1, %s1355
        $region841: #{tpu_custom_call.1} parent=834 // loop_footer_branch
          %1354 = sbr.rel target = $region837
        $region842: #{tpu_custom_call.1} parent=834 // loop_exit
          _
      $region835: #{tpu_custom_call.1} parent=496 // pred_fallthru
        _
      // Predicated region
      $region854: #{tpu_custom_call.1} parent=496 // pred_check
        _
      $region855: #{tpu_custom_call.1} parent=496 // pred_check_branch
        %1387 = sbr.rel (0) target = $region857
      $region856: #{tpu_custom_call.1} parent=496 // pred_region
        %1388 = vsyncadd %s805, 16
      $region857: #{tpu_custom_call.1} parent=496 // pred_fallthru
        _
      %s1389 = sadd.s32 %s800, 12
      %s1390 = sld [smem:[#allocation5 + %s1389]]
      %s1391 = sadd.s32 %s801, 12
      %s1392 = scalar_lea.vmem %s1, %s1390
      %s1393 = scalar_lea.vmem [#allocation2], %s1391
      %p1395 = scmp.lt.u32.totalorder 1, 8
      %p1396 = pneg %p1395
      // Predicated region
      $region858: #{tpu_custom_call.1} parent=496 // pred_check
        _
      $region859: #{tpu_custom_call.1} parent=496 // pred_check_branch
        %1398 = sbr.rel (%p1395) target = $region861
      $region860: #{tpu_custom_call.1} parent=496 // pred_region
        %s1413 = sand.u32 1, 7
        %p1414 = scmp.eq.s32.totalorder %s1413, 0
        %p1415 = pneg %p1414
        // Predicated region
        $region873: #{tpu_custom_call.1} parent=860 // pred_check
          _
        $region874: #{tpu_custom_call.1} parent=860 // pred_check_branch
          %1417 = sbr.rel (%p1414) target = $region876
        $region875: #{tpu_custom_call.1} parent=860 // pred_region
          %s1418 = sand.u32 1, 7
          %s1419 = ssub.s32 1, %s1418
          %s1420 = scalar_lea.vmem %s1392, %s1419
          %s1421 = ssub.s32 1, %s1418
          %s1422 = scalar_lea.vmem %s1393, %s1421 [#allocation2]
          %s1423 = sshllo.u32 0, %s1418
          loop: start=0, step=1, limit=1
          $region877: #{tpu_custom_call.1} parent=875 // loop_pre_header
            _
          $region878: #{tpu_custom_call.1} parent=875 // loop_header
            %s1425 = sphi 0, %s1429
            %p1426 = scmp.ge.s32.totalorder %s1425, 1
            %s1430 = sphi %s1420, %s1420
            %s1431 = sphi %s1422, %s1422
          $region879: #{tpu_custom_call.1} parent=875 // loop_header_branch
            %1428 = sbr.rel (%p1426) target = $region883
          $region880: #{tpu_custom_call.1} parent=875 // loop_body
            %v1432 = vld [vmem:[%s1430] sm:%s1423]
            %1433 = vst [vmem:[%s1431] sm:%s1423] %v1432
          $region881: #{tpu_custom_call.1} parent=875 // loop_footer
            %s1429 = sadd.s32 1, %s1425
          $region882: #{tpu_custom_call.1} parent=875 // loop_footer_branch
            %1424 = sbr.rel target = $region878
          $region883: #{tpu_custom_call.1} parent=875 // loop_exit
            _
        $region876: #{tpu_custom_call.1} parent=860 // pred_fallthru
          _
      $region861: #{tpu_custom_call.1} parent=496 // pred_fallthru
        _
      // Predicated region
      $region862: #{tpu_custom_call.1} parent=496 // pred_check
        %p1399 = pneg %p1395
      $region863: #{tpu_custom_call.1} parent=496 // pred_check_branch
        %1401 = sbr.rel (%p1399) target = $region865
      $region864: #{tpu_custom_call.1} parent=496 // pred_region
        %s1402 = sshllo.u32 0, 1
        loop: start=0, step=1, limit=1
        $region866: #{tpu_custom_call.1} parent=864 // loop_pre_header
          _
        $region867: #{tpu_custom_call.1} parent=864 // loop_header
          %s1404 = sphi 0, %s1408
          %p1405 = scmp.ge.s32.totalorder %s1404, 1
          %s1409 = sphi %s1392, %s1392
          %s1410 = sphi %s1393, %s1393
        $region868: #{tpu_custom_call.1} parent=864 // loop_header_branch
          %1407 = sbr.rel (%p1405) target = $region872
        $region869: #{tpu_custom_call.1} parent=864 // loop_body
          %v1411 = vld [vmem:[%s1409] sm:%s1402]
          %1412 = vst [vmem:[%s1410] sm:%s1402] %v1411
        $region870: #{tpu_custom_call.1} parent=864 // loop_footer
          %s1408 = sadd.s32 1, %s1404
        $region871: #{tpu_custom_call.1} parent=864 // loop_footer_branch
          %1403 = sbr.rel target = $region867
        $region872: #{tpu_custom_call.1} parent=864 // loop_exit
          _
      $region865: #{tpu_custom_call.1} parent=496 // pred_fallthru
        _
      // Predicated region
      $region884: #{tpu_custom_call.1} parent=496 // pred_check
        _
      $region885: #{tpu_custom_call.1} parent=496 // pred_check_branch
        %1436 = sbr.rel (0) target = $region887
      $region886: #{tpu_custom_call.1} parent=496 // pred_region
        %1437 = vsyncadd %s805, 16
      $region887: #{tpu_custom_call.1} parent=496 // pred_fallthru
        _
      %s1438 = sadd.s32 %s800, 13
      %s1439 = sld [smem:[#allocation5 + %s1438]]
      %s1440 = sadd.s32 %s801, 13
      %s1441 = scalar_lea.vmem %s1, %s1439
      %s1442 = scalar_lea.vmem [#allocation2], %s1440
      %p1444 = scmp.lt.u32.totalorder 1, 8
      %p1445 = pneg %p1444
      // Predicated region
      $region888: #{tpu_custom_call.1} parent=496 // pred_check
        _
      $region889: #{tpu_custom_call.1} parent=496 // pred_check_branch
        %1447 = sbr.rel (%p1444) target = $region891
      $region890: #{tpu_custom_call.1} parent=496 // pred_region
        %s1462 = sand.u32 1, 7
        %p1463 = scmp.eq.s32.totalorder %s1462, 0
        %p1464 = pneg %p1463
        // Predicated region
        $region903: #{tpu_custom_call.1} parent=890 // pred_check
          _
        $region904: #{tpu_custom_call.1} parent=890 // pred_check_branch
          %1466 = sbr.rel (%p1463) target = $region906
        $region905: #{tpu_custom_call.1} parent=890 // pred_region
          %s1467 = sand.u32 1, 7
          %s1468 = ssub.s32 1, %s1467
          %s1469 = scalar_lea.vmem %s1441, %s1468
          %s1470 = ssub.s32 1, %s1467
          %s1471 = scalar_lea.vmem %s1442, %s1470 [#allocation2]
          %s1472 = sshllo.u32 0, %s1467
          loop: start=0, step=1, limit=1
          $region907: #{tpu_custom_call.1} parent=905 // loop_pre_header
            _
          $region908: #{tpu_custom_call.1} parent=905 // loop_header
            %s1474 = sphi 0, %s1478
            %p1475 = scmp.ge.s32.totalorder %s1474, 1
            %s1479 = sphi %s1469, %s1469
            %s1480 = sphi %s1471, %s1471
          $region909: #{tpu_custom_call.1} parent=905 // loop_header_branch
            %1477 = sbr.rel (%p1475) target = $region913
          $region910: #{tpu_custom_call.1} parent=905 // loop_body
            %v1481 = vld [vmem:[%s1479] sm:%s1472]
            %1482 = vst [vmem:[%s1480] sm:%s1472] %v1481
          $region911: #{tpu_custom_call.1} parent=905 // loop_footer
            %s1478 = sadd.s32 1, %s1474
          $region912: #{tpu_custom_call.1} parent=905 // loop_footer_branch
            %1473 = sbr.rel target = $region908
          $region913: #{tpu_custom_call.1} parent=905 // loop_exit
            _
        $region906: #{tpu_custom_call.1} parent=890 // pred_fallthru
          _
      $region891: #{tpu_custom_call.1} parent=496 // pred_fallthru
        _
      // Predicated region
      $region892: #{tpu_custom_call.1} parent=496 // pred_check
        %p1448 = pneg %p1444
      $region893: #{tpu_custom_call.1} parent=496 // pred_check_branch
        %1450 = sbr.rel (%p1448) target = $region895
      $region894: #{tpu_custom_call.1} parent=496 // pred_region
        %s1451 = sshllo.u32 0, 1
        loop: start=0, step=1, limit=1
        $region896: #{tpu_custom_call.1} parent=894 // loop_pre_header
          _
        $region897: #{tpu_custom_call.1} parent=894 // loop_header
          %s1453 = sphi 0, %s1457
          %p1454 = scmp.ge.s32.totalorder %s1453, 1
          %s1458 = sphi %s1441, %s1441
          %s1459 = sphi %s1442, %s1442
        $region898: #{tpu_custom_call.1} parent=894 // loop_header_branch
          %1456 = sbr.rel (%p1454) target = $region902
        $region899: #{tpu_custom_call.1} parent=894 // loop_body
          %v1460 = vld [vmem:[%s1458] sm:%s1451]
          %1461 = vst [vmem:[%s1459] sm:%s1451] %v1460
        $region900: #{tpu_custom_call.1} parent=894 // loop_footer
          %s1457 = sadd.s32 1, %s1453
        $region901: #{tpu_custom_call.1} parent=894 // loop_footer_branch
          %1452 = sbr.rel target = $region897
        $region902: #{tpu_custom_call.1} parent=894 // loop_exit
          _
      $region895: #{tpu_custom_call.1} parent=496 // pred_fallthru
        _
      // Predicated region
      $region914: #{tpu_custom_call.1} parent=496 // pred_check
        _
      $region915: #{tpu_custom_call.1} parent=496 // pred_check_branch
        %1485 = sbr.rel (0) target = $region917
      $region916: #{tpu_custom_call.1} parent=496 // pred_region
        %1486 = vsyncadd %s805, 16
      $region917: #{tpu_custom_call.1} parent=496 // pred_fallthru
        _
      %s1487 = sadd.s32 %s800, 14
      %s1488 = sld [smem:[#allocation5 + %s1487]]
      %s1489 = sadd.s32 %s801, 14
      %s1490 = scalar_lea.vmem %s1, %s1488
      %s1491 = scalar_lea.vmem [#allocation2], %s1489
      %p1493 = scmp.lt.u32.totalorder 1, 8
      %p1494 = pneg %p1493
      // Predicated region
      $region918: #{tpu_custom_call.1} parent=496 // pred_check
        _
      $region919: #{tpu_custom_call.1} parent=496 // pred_check_branch
        %1496 = sbr.rel (%p1493) target = $region921
      $region920: #{tpu_custom_call.1} parent=496 // pred_region
        %s1511 = sand.u32 1, 7
        %p1512 = scmp.eq.s32.totalorder %s1511, 0
        %p1513 = pneg %p1512
        // Predicated region
        $region933: #{tpu_custom_call.1} parent=920 // pred_check
          _
        $region934: #{tpu_custom_call.1} parent=920 // pred_check_branch
          %1515 = sbr.rel (%p1512) target = $region936
        $region935: #{tpu_custom_call.1} parent=920 // pred_region
          %s1516 = sand.u32 1, 7
          %s1517 = ssub.s32 1, %s1516
          %s1518 = scalar_lea.vmem %s1490, %s1517
          %s1519 = ssub.s32 1, %s1516
          %s1520 = scalar_lea.vmem %s1491, %s1519 [#allocation2]
          %s1521 = sshllo.u32 0, %s1516
          loop: start=0, step=1, limit=1
          $region937: #{tpu_custom_call.1} parent=935 // loop_pre_header
            _
          $region938: #{tpu_custom_call.1} parent=935 // loop_header
            %s1523 = sphi 0, %s1527
            %p1524 = scmp.ge.s32.totalorder %s1523, 1
            %s1528 = sphi %s1518, %s1518
            %s1529 = sphi %s1520, %s1520
          $region939: #{tpu_custom_call.1} parent=935 // loop_header_branch
            %1526 = sbr.rel (%p1524) target = $region943
          $region940: #{tpu_custom_call.1} parent=935 // loop_body
            %v1530 = vld [vmem:[%s1528] sm:%s1521]
            %1531 = vst [vmem:[%s1529] sm:%s1521] %v1530
          $region941: #{tpu_custom_call.1} parent=935 // loop_footer
            %s1527 = sadd.s32 1, %s1523
          $region942: #{tpu_custom_call.1} parent=935 // loop_footer_branch
            %1522 = sbr.rel target = $region938
          $region943: #{tpu_custom_call.1} parent=935 // loop_exit
            _
        $region936: #{tpu_custom_call.1} parent=920 // pred_fallthru
          _
      $region921: #{tpu_custom_call.1} parent=496 // pred_fallthru
        _
      // Predicated region
      $region922: #{tpu_custom_call.1} parent=496 // pred_check
        %p1497 = pneg %p1493
      $region923: #{tpu_custom_call.1} parent=496 // pred_check_branch
        %1499 = sbr.rel (%p1497) target = $region925
      $region924: #{tpu_custom_call.1} parent=496 // pred_region
        %s1500 = sshllo.u32 0, 1
        loop: start=0, step=1, limit=1
        $region926: #{tpu_custom_call.1} parent=924 // loop_pre_header
          _
        $region927: #{tpu_custom_call.1} parent=924 // loop_header
          %s1502 = sphi 0, %s1506
          %p1503 = scmp.ge.s32.totalorder %s1502, 1
          %s1507 = sphi %s1490, %s1490
          %s1508 = sphi %s1491, %s1491
        $region928: #{tpu_custom_call.1} parent=924 // loop_header_branch
          %1505 = sbr.rel (%p1503) target = $region932
        $region929: #{tpu_custom_call.1} parent=924 // loop_body
          %v1509 = vld [vmem:[%s1507] sm:%s1500]
          %1510 = vst [vmem:[%s1508] sm:%s1500] %v1509
        $region930: #{tpu_custom_call.1} parent=924 // loop_footer
          %s1506 = sadd.s32 1, %s1502
        $region931: #{tpu_custom_call.1} parent=924 // loop_footer_branch
          %1501 = sbr.rel target = $region927
        $region932: #{tpu_custom_call.1} parent=924 // loop_exit
          _
      $region925: #{tpu_custom_call.1} parent=496 // pred_fallthru
        _
      // Predicated region
      $region944: #{tpu_custom_call.1} parent=496 // pred_check
        _
      $region945: #{tpu_custom_call.1} parent=496 // pred_check_branch
        %1534 = sbr.rel (0) target = $region947
      $region946: #{tpu_custom_call.1} parent=496 // pred_region
        %1535 = vsyncadd %s805, 16
      $region947: #{tpu_custom_call.1} parent=496 // pred_fallthru
        _
      %s1536 = sadd.s32 %s800, 15
      %s1537 = sld [smem:[#allocation5 + %s1536]]
      %s1538 = sadd.s32 %s801, 15
      %s1539 = scalar_lea.vmem %s1, %s1537
      %s1540 = scalar_lea.vmem [#allocation2], %s1538
      %p1542 = scmp.lt.u32.totalorder 1, 8
      %p1543 = pneg %p1542
      // Predicated region
      $region948: #{tpu_custom_call.1} parent=496 // pred_check
        _
      $region949: #{tpu_custom_call.1} parent=496 // pred_check_branch
        %1545 = sbr.rel (%p1542) target = $region951
      $region950: #{tpu_custom_call.1} parent=496 // pred_region
        %s1560 = sand.u32 1, 7
        %p1561 = scmp.eq.s32.totalorder %s1560, 0
        %p1562 = pneg %p1561
        // Predicated region
        $region963: #{tpu_custom_call.1} parent=950 // pred_check
          _
        $region964: #{tpu_custom_call.1} parent=950 // pred_check_branch
          %1564 = sbr.rel (%p1561) target = $region966
        $region965: #{tpu_custom_call.1} parent=950 // pred_region
          %s1565 = sand.u32 1, 7
          %s1566 = ssub.s32 1, %s1565
          %s1567 = scalar_lea.vmem %s1539, %s1566
          %s1568 = ssub.s32 1, %s1565
          %s1569 = scalar_lea.vmem %s1540, %s1568 [#allocation2]
          %s1570 = sshllo.u32 0, %s1565
          loop: start=0, step=1, limit=1
          $region967: #{tpu_custom_call.1} parent=965 // loop_pre_header
            _
          $region968: #{tpu_custom_call.1} parent=965 // loop_header
            %s1572 = sphi 0, %s1576
            %p1573 = scmp.ge.s32.totalorder %s1572, 1
            %s1577 = sphi %s1567, %s1567
            %s1578 = sphi %s1569, %s1569
          $region969: #{tpu_custom_call.1} parent=965 // loop_header_branch
            %1575 = sbr.rel (%p1573) target = $region973
          $region970: #{tpu_custom_call.1} parent=965 // loop_body
            %v1579 = vld [vmem:[%s1577] sm:%s1570]
            %1580 = vst [vmem:[%s1578] sm:%s1570] %v1579
          $region971: #{tpu_custom_call.1} parent=965 // loop_footer
            %s1576 = sadd.s32 1, %s1572
          $region972: #{tpu_custom_call.1} parent=965 // loop_footer_branch
            %1571 = sbr.rel target = $region968
          $region973: #{tpu_custom_call.1} parent=965 // loop_exit
            _
        $region966: #{tpu_custom_call.1} parent=950 // pred_fallthru
          _
      $region951: #{tpu_custom_call.1} parent=496 // pred_fallthru
        _
      // Predicated region
      $region952: #{tpu_custom_call.1} parent=496 // pred_check
        %p1546 = pneg %p1542
      $region953: #{tpu_custom_call.1} parent=496 // pred_check_branch
        %1548 = sbr.rel (%p1546) target = $region955
      $region954: #{tpu_custom_call.1} parent=496 // pred_region
        %s1549 = sshllo.u32 0, 1
        loop: start=0, step=1, limit=1
        $region956: #{tpu_custom_call.1} parent=954 // loop_pre_header
          _
        $region957: #{tpu_custom_call.1} parent=954 // loop_header
          %s1551 = sphi 0, %s1555
          %p1552 = scmp.ge.s32.totalorder %s1551, 1
          %s1556 = sphi %s1539, %s1539
          %s1557 = sphi %s1540, %s1540
        $region958: #{tpu_custom_call.1} parent=954 // loop_header_branch
          %1554 = sbr.rel (%p1552) target = $region962
        $region959: #{tpu_custom_call.1} parent=954 // loop_body
          %v1558 = vld [vmem:[%s1556] sm:%s1549]
          %1559 = vst [vmem:[%s1557] sm:%s1549] %v1558
        $region960: #{tpu_custom_call.1} parent=954 // loop_footer
          %s1555 = sadd.s32 1, %s1551
        $region961: #{tpu_custom_call.1} parent=954 // loop_footer_branch
          %1550 = sbr.rel target = $region957
        $region962: #{tpu_custom_call.1} parent=954 // loop_exit
          _
      $region955: #{tpu_custom_call.1} parent=496 // pred_fallthru
        _
      // Predicated region
      $region974: #{tpu_custom_call.1} parent=496 // pred_check
        _
      $region975: #{tpu_custom_call.1} parent=496 // pred_check_branch
        %1583 = sbr.rel (0) target = $region977
      $region976: #{tpu_custom_call.1} parent=496 // pred_region
        %1584 = vsyncadd %s805, 16
      $region977: #{tpu_custom_call.1} parent=496 // pred_fallthru
        _
    $region497: #{tpu_custom_call.1} parent=1 // pred_fallthru
      _
    %s1585 = smul.u32 %s27, 16
    %s1586 = scalar_lea.sflag [#allocation3], %s27
    %s1587 = smul.u32 16, 1
    %s1588 = sshll.u32 %s1587, 4
    %1589 = dma.done %s1586, %s1588
    %s1590 = scalar_lea.vmem [#allocation2], %s1585
    %v1591 = vld [vmem:[%s1590] sm:$0xff]
    %v1592 = vld [vmem:[%s1590 + $0x8] sm:$0xff]
    %v1593 = vld [vmem:[%s2] sm:$0x1]
    %v1594 = vld [vmem:[%s3] sm:$0x1]
    %vm1595 = vcmask 261120
    %v1596 = vsel %vm1595, %v1591, 0.0
    %1597 = vadd.xlane.f32.xlu0 %v1596
    %v1598 = vpop.xlane.xlu0 %1597
    %v1599 = vsel %vm1595, %v1592, 0.0
    %1600 = vadd.xlane.f32.xlu0 %v1599
    %v1601 = vpop.xlane.xlu0 %1600
    %v1602 = vrcp.pop 32.0
    %v1603 = vmul.f32 %v1598, %v1602
    %v1604 = vmul.f32 %v1601, %v1602
    %v1605 = vsub.f32 %v1591, %v1603
    %v1606 = vsub.f32 %v1592, %v1604
    %v1607 = vmul.f32 %v1605, %v1605
    %v1608 = vmul.f32 %v1606, %v1606
    %v1609 = vsel %vm1595, %v1607, 0.0
    %1610 = vadd.xlane.f32.xlu0 %v1609
    %v1611 = vpop.xlane.xlu0 %1610
    %v1612 = vsel %vm1595, %v1608, 0.0
    %1613 = vadd.xlane.f32.xlu0 %v1612
    %v1614 = vpop.xlane.xlu0 %1613
    %v1615 = vmul.f32 %v1611, %v1602
    %v1616 = vmul.f32 %v1614, %v1602
    %v1617 = vadd.f32 %v1615, 1e-05
    %v1618 = vadd.f32 %v1616, 1e-05
    %v1619 = vrsqrt.pop %v1617
    %v1620 = vrsqrt.pop %v1618
    %v1621 = vmul.f32 %v1605, %v1619
    %v1622 = vmul.f32 %v1606, %v1620
    %v1624 = vlaneseq
    %v1625 = vshrl.u32 %v1624, 7
    %v1626 = vsub.s32 0, %v1625
    %v1627 = vrot.slane %v1593, %v1626
    %v1629 = vmul.f32 %v1621, %v1627
    %v1630 = vmul.f32 %v1622, %v1627
    %v1632 = vlaneseq
    %v1633 = vshrl.u32 %v1632, 7
    %v1634 = vsub.s32 0, %v1633
    %v1635 = vrot.slane %v1594, %v1634
    %v1637 = vadd.f32 %v1629, %v1635
    %v1638 = vadd.f32 %v1630, %v1635
    %1639 = vst.msk [vmem:[#allocation6] sm:$0xff] %vm1595, %v1637
    %1640 = vst.msk [vmem:[#allocation6 + $0x8] sm:$0xff] %vm1595, %v1638
    // Predicated region
    $region978: #{tpu_custom_call.1} parent=1 // pred_check
      _
    $region979: #{tpu_custom_call.1} parent=1 // pred_check_branch
      %1642 = sbr.rel (0) target = $region981
    $region980: #{tpu_custom_call.1} parent=1 // pred_region
      %s1644 = ssub.s32 256, 256
      %1645 = vsyncadd [#allocation7], %s1644
      %s1646 = sshll.u32 [#allocation6], 4
      %s1647 = int_to_ptr.vmem [resolvable:$true] %s1646
      %1652 = dma.vmem_to_hbm [thread:$0]  %s1647, 256, %s4, [#allocation7], 128, 128, 8
    $region981: #{tpu_custom_call.1} parent=1 // pred_fallthru
      _
    // Predicated region
    $region982: #{tpu_custom_call.1} parent=1 // pred_check
      _
    $region983: #{tpu_custom_call.1} parent=1 // pred_check_branch
      %1654 = sbr.rel (0) target = $region985
    $region984: #{tpu_custom_call.1} parent=1 // pred_region
      %1655 = dma.done [#allocation7], 256
    $region985: #{tpu_custom_call.1} parent=1 // pred_fallthru
      _
    %1656 = vsyncpa [#allocation7], 1
  %1657 = vsyncmov [#allocation3]
  %s1658 = vpop.sfrf %1657
  %p1659 = scmp.eq.s32.totalorder %s1658, 0
  %p1660 = pneg %p1659
  %1662 = shalt.err (%p1660)
  %s1663 = scalar_lea.sflag [#allocation3], 1
  %1664 = vsyncmov %s1663
  %s1665 = vpop.sfrf %1664
  %p1666 = scmp.eq.s32.totalorder %s1665, 0
  %p1667 = pneg %p1666
  %1669 = shalt.err (%p1667)

</llo_original>
